<compile_context>
chip_gen: v7x
topology: tpu7x:2x2x1
jax: 0.10.0
libtpu: 0.0.40
codegen_flags: <defaults>
</compile_context>

<pallas_src>
import math

import jax
import jax.numpy as jnp
from jax.experimental import pallas as pl
from jax.experimental.pallas import tpu as pltpu

# ---------------------------------------------------------------- configuration
HAND_SHAPE = (4, 16)           # handcards_dim
ACT_SHAPE = (4, 16)            # action_dim
H_FLAT = HAND_SHAPE[0] * HAND_SHAPE[1]      # 64
A_FLAT = ACT_SHAPE[0] * ACT_SHAPE[1]        # 64
FEAT = 128                     # feature_dim
HEADS = 4                      # atten_head
DH = FEAT // HEADS             # 32
S_DESK = 8                     # desk_cards sequence length
S_HIST = 8                     # history_actions sequence length
LSTM_H = 128                   # lstm_hidden_dim
FLAT_KEYS = ['handcards_num', 'gui_num', 'played_gui_num',
             'played_A_num', 'is_free_play', 'is_lose']
FLAT_DIM = len(FLAT_KEYS)
D_CONCAT = 4 * FEAT + FLAT_DIM + LSTM_H     # 646 = dense_layers[0]
DENSE_HIDDEN = (256, 256)      # dense_layers[1:]
OUT_DIM = 1

BF16 = jnp.bfloat16
F32 = jnp.float32


def _round_up(n, m):
    return ((n + m - 1) // m) * m


# ---------------------------------------------------------------- fused kernel
def _lstm_attention_kernel(
    # batch-tiled data
    hand_ref, remain_ref, act_ref, flat_ref, desk_ref, hist_ref,
    # CardsFeatureExtraction weights (bf16) + biases (f32)
    w_hand_ref, b_hand_ref, w_act_ref, b_act_ref,
    # attention: q (scale folded), fused kv, out proj, segment matrices
    w_q_ref, b_q_ref, w_kv_ref, b_kv_ref, w_o_ref, b_o_ref, seg_ref, segT_ref,
    # LSTM (gate order i, f, g, o; b_gates = b_ih + b_hh pre-summed)
    w_ih_ref, w_hh_ref, b_gates_ref,
    # first dense layer split by feature source (concat folded into split matmuls)
    w0_attn_ref, w0_hand_ref, w0_remain_ref, w0_act_ref, w0_lstm_ref,
    w0_flat_ref, b0_ref,
    # remaining dense layers + final linear (as a (1, 256) row for a lane reduction)
    w1_ref, b1_ref, w_out_ref, b_out_ref,
    # output
    out_ref,
):
    tb = hand_ref.shape[0]

    def mm(x, w):
        # bf16 operands, f32 accumulation -> native single-pass MXU rate
        return jnp.dot(x, w, preferred_element_type=F32)

    def sigmoid(x):
        # one EUP push (tanh) instead of exp + reciprocal
        return 0.5 * jnp.tanh(0.5 * x) + 0.5

    w_act, b_act = w_act_ref[...], b_act_ref[...]

    # ---- hand / remain feature extraction: shared weight, stacked along M ----
    hr = jnp.concatenate([hand_ref[...], remain_ref[...]], axis=0)            # (2tb, 64) bf16
    hr_f = jnp.maximum(mm(hr, w_hand_ref[...]) + b_hand_ref[...], 0.0)        # (2tb, 128) f32
    hand_f, remain_f = hr_f[:tb], hr_f[tb:]

    # ---- action FE ----
    act_f = jnp.maximum(mm(act_ref[...], w_act) + b_act, 0.0)                 # (tb, 128) f32

    # ---- desk FE as one (S*tb, 64) matmul; (S, tb, 64) -> (S*tb, 64) is a free collapse ----
    desk_all = desk_ref[...].reshape(S_DESK * tb, A_FLAT)                     # bf16
    desk_f = jnp.maximum(mm(desk_all, w_act) + b_act, 0.0)                    # (S*tb, 128)
    # fused K||V projection, slice at the 128-lane boundary later
    kv = mm(desk_f.astype(BF16), w_kv_ref[...]) + b_kv_ref[...]               # (S*tb, 256)

    # ---- attention (query length 1), lane-full; 1/sqrt(DH) folded into w_q / b_q on host ----
    q = mm(act_f.astype(BF16), w_q_ref[...]) + b_q_ref[...]                   # (tb, 128)
    seg = seg_ref[...]                                                        # (128, 4)  0/1 bf16
    segT = segT_ref[...]                                                      # (4, 128)  0/1 bf16

    scores = []
    for s in range(S_DESK):                                                   # static unroll
        k_s = kv[s * tb:(s + 1) * tb, :FEAT]
        scores.append(mm((q * k_s).astype(BF16), seg))                        # (tb, 4) per-head
    m = scores[0]
    for sv in scores[1:]:
        m = jnp.maximum(m, sv)
    exps = [jnp.exp(sv - m) for sv in scores]
    denom = exps[0]
    for ev in exps[1:]:
        denom = denom + ev
    inv = pl.reciprocal(denom, approx=True)                                   # (tb, 4)
    ctx = jnp.zeros((tb, FEAT), F32)
    for s in range(S_DESK):
        p_full = mm((exps[s] * inv).astype(BF16), segT)                       # per-head lane bcast
        ctx = ctx + p_full * kv[s * tb:(s + 1) * tb, FEAT:]
    attn_out = mm(ctx.astype(BF16), w_o_ref[...]) + b_o_ref[...]              # one K=128 out proj

    # ---- LSTM: input projections hoisted out of the recurrence ----
    hist_all = hist_ref[...].reshape(S_HIST * tb, A_FLAT)                     # bf16
    hist_f = jnp.maximum(mm(hist_all, w_act) + b_act, 0.0)                    # (S*tb, 128)
    x_proj = mm(hist_f.astype(BF16), w_ih_ref[...]) + b_gates_ref[...]        # (S*tb, 512)
    w_hh = w_hh_ref[...]
    h_t = jnp.zeros((tb, LSTM_H), F32)
    c_t = jnp.zeros((tb, LSTM_H), F32)
    for t in range(S_HIST):                                                   # static unroll
        gates = x_proj[t * tb:(t + 1) * tb, :] + mm(h_t.astype(BF16), w_hh)   # (tb, 512)
        i_g = sigmoid(gates[:, 0:LSTM_H])
        f_g = sigmoid(gates[:, LSTM_H:2 * LSTM_H])
        g_g = jnp.tanh(gates[:, 2 * LSTM_H:3 * LSTM_H])
        o_g = sigmoid(gates[:, 3 * LSTM_H:4 * LSTM_H])
        c_t = f_g * c_t + i_g * g_g
        h_t = o_g * jnp.tanh(c_t)

    # ---- dense head; feature concat folded into split K=128 matmuls + rank-1 flat updates ----
    x = (mm(attn_out.astype(BF16), w0_attn_ref[...])
         + mm(hand_f.astype(BF16), w0_hand_ref[...])
         + mm(remain_f.astype(BF16), w0_remain_ref[...])
         + mm(act_f.astype(BF16), w0_act_ref[...])
         + mm(h_t.astype(BF16), w0_lstm_ref[...])
         + b0_ref[...])
    flat = flat_ref[...]                                                      # (tb, 6) f32
    w0_flat = w0_flat_ref[...]                                                # (6, 256) f32
    for j in range(FLAT_DIM):                                                 # VPU rank-1 updates
        x = x + flat[:, j:j + 1] * w0_flat[j:j + 1, :]
    x = jnp.maximum(x, 0.0)
    x = jnp.maximum(mm(x.astype(BF16), w1_ref[...]) + b1_ref[...], 0.0)
    # final (256 -> 1) layer as a lane reduction (no 1-lane MXU matmul)
    y = jnp.sum(x * w_out_ref[...], axis=-1, keepdims=True) + b_out_ref[...]
    out_ref[...] = y.astype(out_ref.dtype)


# ---------------------------------------------------------------- parameter prep (host side)
PARAM_ORDER = ('w_hand', 'b_hand', 'w_act', 'b_act',
               'w_q', 'b_q', 'w_kv', 'b_kv', 'w_o', 'b_o', 'seg', 'segT',
               'w_ih', 'w_hh', 'b_gates',
               'w0_attn', 'w0_hand', 'w0_remain', 'w0_act', 'w0_lstm', 'w0_flat', 'b0',
               'w1', 'b1', 'w_out', 'b_out')


def _prepare_params(params):
    scale = 1.0 / math.sqrt(float(DH))
    lane = jnp.arange(FEAT, dtype=jnp.int32)[:, None] // DH
    head = jnp.arange(HEADS, dtype=jnp.int32)[None, :]
    seg_bool = (lane == head)                                   # (128, 4) head-segment matrix
    pp = {
        'w_hand': params['w_hand'].astype(BF16), 'b_hand': params['b_hand'],
        'w_act': params['w_act'].astype(BF16), 'b_act': params['b_act'],
        # fold the attention score scale into the q projection
        'w_q': (params['w_q'] * scale).astype(BF16), 'b_q': params['b_q'] * scale,
        # fuse K and V projections into one (128, 256) weight
        'w_kv': jnp.concatenate([params['w_k'], params['w_v']], axis=1).astype(BF16),
        'b_kv': jnp.concatenate([params['b_k'], params['b_v']], axis=1),
        'w_o': params['w_o'].astype(BF16), 'b_o': params['b_o'],
        'seg': seg_bool.astype(BF16), 'segT': seg_bool.T.astype(BF16),
        'w_ih': params['w_ih'].astype(BF16), 'w_hh': params['w_hh'].astype(BF16),
        'b_gates': params['b_ih'] + params['b_hh'],             # pre-summed gate bias
        'w0_attn': params['w0_attn'].astype(BF16),
        'w0_hand': params['w0_hand'].astype(BF16),
        'w0_remain': params['w0_remain'].astype(BF16),
        'w0_act': params['w0_act'].astype(BF16),
        'w0_lstm': params['w0_lstm'].astype(BF16),
        'w0_flat': params['w0_flat'],                           # f32, used on the VPU
        'b0': params['b0'],
        'w1': params['w1'].astype(BF16), 'b1': params['b1'],
        'w_out': params['w_out'], 'b_out': params['b_out'],
    }
    return [pp[k] for k in PARAM_ORDER]


# ---------------------------------------------------------------- wrapper
def lstm_attention_net_forward(inputs, action, params, *, batch_tile=512):
    B = action.shape[0]
    hand = inputs['handcards'].reshape(B, H_FLAT).astype(BF16)
    remain = inputs['remain_cards'].reshape(B, H_FLAT).astype(BF16)
    act = action.reshape(B, A_FLAT).astype(BF16)
    # (S, B, 64) layout -> clean leading-axis per-step data inside the kernel
    desk = jnp.transpose(inputs['desk_cards'].reshape(B, S_DESK, A_FLAT), (1, 0, 2)).astype(BF16)
    hist = jnp.transpose(inputs['history_actions'].reshape(B, S_HIST, A_FLAT), (1, 0, 2)).astype(BF16)
    flat = jnp.concatenate([inputs[k].reshape(B, -1).astype(F32) for k in FLAT_KEYS], axis=-1)

    # Batch tiling: big tiles (default 512) amortize per-step overhead on v5e/v6e; if the
    # whole batch fits in one step, split into >= 2 steps so v7x's 2 TensorCores both work.
    tb = max(8, min(batch_tile, _round_up(B, 8)))
    tb = _round_up(tb, 8)
    Bp = _round_up(B, tb)
    if Bp // tb < 2 and Bp >= 16:
        tb = _round_up((Bp + 1) // 2, 8)
        Bp = _round_up(B, tb)

    def pad_b(z, axis):
        if Bp == B:
            return z
        pad = [(0, 0)] * z.ndim
        pad[axis] = (0, Bp - B)
        return jnp.pad(z, pad)

    hand, remain, act, flat = (pad_b(z, 0) for z in (hand, remain, act, flat))
    desk, hist = pad_b(desk, 1), pad_b(hist, 1)
    data = [hand, remain, act, flat, desk, hist]

    param_list = _prepare_params(params)

    data_specs = [
        pl.BlockSpec((tb, H_FLAT), lambda i: (i, 0)),
        pl.BlockSpec((tb, H_FLAT), lambda i: (i, 0)),
        pl.BlockSpec((tb, A_FLAT), lambda i: (i, 0)),
        pl.BlockSpec((tb, FLAT_DIM), lambda i: (i, 0)),
        pl.BlockSpec((S_DESK, tb, A_FLAT), lambda i: (0, i, 0)),
        pl.BlockSpec((S_HIST, tb, A_FLAT), lambda i: (0, i, 0)),
    ]
    param_specs = [pl.BlockSpec(p.shape, lambda i, nd=p.ndim: (0,) * nd) for p in param_list]
    out_spec = pl.BlockSpec((tb, OUT_DIM), lambda i: (i, 0))

    # Advisory cost estimate.
    mac_per_row = (
        2 * H_FLAT * FEAT                            # hand + remain FE
        + (1 + S_DESK + S_HIST) * A_FLAT * FEAT      # act + desk + hist FE
        + S_DESK * FEAT * 2 * FEAT                   # fused K/V projection
        + 2 * FEAT * FEAT                            # q proj + attention out proj
        + 2 * S_DESK * FEAT * HEADS                  # score seg-sum + weight broadcast
        + 2 * S_HIST * FEAT * 4 * LSTM_H             # x @ w_ih + h @ w_hh
        + (4 * FEAT + LSTM_H + FLAT_DIM) * DENSE_HIDDEN[0]
        + DENSE_HIDDEN[0] * DENSE_HIDDEN[1]
        + DENSE_HIDDEN[1]
    )
    transcendentals = Bp * (S_DESK * HEADS + HEADS + S_HIST * 5 * LSTM_H)
    bytes_accessed = int(sum(z.size * z.dtype.itemsize for z in data)
                         + sum(p.size * p.dtype.itemsize for p in param_list)
                         + Bp * OUT_DIM * 4)
    cost = pl.CostEstimate(flops=int(2 * Bp * mac_per_row),
                           transcendentals=int(transcendentals),
                           bytes_accessed=bytes_accessed)

    out = pl.pallas_call(
        _lstm_attention_kernel,
        out_shape=jax.ShapeDtypeStruct((Bp, OUT_DIM), jnp.float32),
        grid_spec=pltpu.PrefetchScalarGridSpec(
            num_scalar_prefetch=0,
            grid=(Bp // tb,),
            in_specs=data_specs + param_specs,
            out_specs=out_spec,
        ),
        compiler_params=pltpu.CompilerParams(
            dimension_semantics=("parallel",),
            vmem_limit_bytes=48 << 20,     # safe on v7x (64 MiB physical), ample headroom elsewhere
        ),
        cost_estimate=cost,
    )(*data, *param_list)
    return out[:B]


# ---------------------------------------------------------------- parameters
def init_params(key):
    """Deterministic init mimicking torch defaults (U(-1/sqrt(fan_in), 1/sqrt(fan_in)))."""
    def linear(k, fan_in, fan_out):
        kw, kb = jax.random.split(k)
        bound = 1.0 / math.sqrt(fan_in)
        w = jax.random.uniform(kw, (fan_in, fan_out), F32, -bound, bound)
        b = jax.random.uniform(kb, (1, fan_out), F32, -bound, bound)
        return w, b

    ks = jax.random.split(key, 20)
    p = {}
    p['w_hand'], p['b_hand'] = linear(ks[0], H_FLAT, FEAT)
    p['w_act'], p['b_act'] = linear(ks[1], A_FLAT, FEAT)
    p['w_q'], p['b_q'] = linear(ks[2], FEAT, FEAT)
    p['w_k'], p['b_k'] = linear(ks[3], FEAT, FEAT)
    p['w_v'], p['b_v'] = linear(ks[4], FEAT, FEAT)
    p['w_o'], p['b_o'] = linear(ks[5], FEAT, FEAT)

    lb = 1.0 / math.sqrt(LSTM_H)
    p['w_ih'] = jax.random.uniform(ks[6], (FEAT, 4 * LSTM_H), F32, -lb, lb)
    p['b_ih'] = jax.random.uniform(ks[7], (1, 4 * LSTM_H), F32, -lb, lb)
    p['w_hh'] = jax.random.uniform(ks[8], (LSTM_H, 4 * LSTM_H), F32, -lb, lb)
    p['b_hh'] = jax.random.uniform(ks[9], (1, 4 * LSTM_H), F32, -lb, lb)

    # First dense layer stored split by source (concat order: attn, hand, remain, flat, act, lstm).
    b0 = 1.0 / math.sqrt(D_CONCAT)
    p['w0_attn'] = jax.random.uniform(ks[10], (FEAT, DENSE_HIDDEN[0]), F32, -b0, b0)
    p['w0_hand'] = jax.random.uniform(ks[11], (FEAT, DENSE_HIDDEN[0]), F32, -b0, b0)
    p['w0_remain'] = jax.random.uniform(ks[12], (FEAT, DENSE_HIDDEN[0]), F32, -b0, b0)
    p['w0_flat'] = jax.random.uniform(ks[13], (FLAT_DIM, DENSE_HIDDEN[0]), F32, -b0, b0)
    p['w0_act'] = jax.random.uniform(ks[14], (FEAT, DENSE_HIDDEN[0]), F32, -b0, b0)
    p['w0_lstm'] = jax.random.uniform(ks[15], (LSTM_H, DENSE_HIDDEN[0]), F32, -b0, b0)
    p['b0'] = jax.random.uniform(ks[16], (1, DENSE_HIDDEN[0]), F32, -b0, b0)

    p['w1'], p['b1'] = linear(ks[17], DENSE_HIDDEN[0], DENSE_HIDDEN[1])
    bo = 1.0 / math.sqrt(DENSE_HIDDEN[1])
    p['w_out'] = jax.random.uniform(ks[18], (1, DENSE_HIDDEN[1]), F32, -bo, bo)
    p['b_out'] = jax.random.uniform(ks[19], (1, 1), F32, -bo, bo)
    return p


# ---------------------------------------------------------------- pure-JAX reference (f32)
def reference_forward(inputs, action, params):
    B = action.shape[0]

    def fe(x, w, b):
        return jnp.maximum(x.reshape(x.shape[0], -1) @ w + b, 0.0)

    hand_f = fe(inputs['handcards'], params['w_hand'], params['b_hand'])
    remain_f = fe(inputs['remain_cards'], params['w_hand'], params['b_hand'])
    act_f = fe(action, params['w_act'], params['b_act'])

    desk = inputs['desk_cards']
    s_d = desk.shape[1]
    desk_f = fe(desk.reshape(B * s_d, -1), params['w_act'], params['b_act']).reshape(B, s_d, FEAT)

    flat = jnp.concatenate([inputs[k].reshape(B, -1) for k in FLAT_KEYS], axis=-1)

    q = act_f @ params['w_q'] + params['b_q']
    k = desk_f @ params['w_k'] + params['b_k']
    v = desk_f @ params['w_v'] + params['b_v']
    qh = q.reshape(B, HEADS, DH)
    kh = k.reshape(B, s_d, HEADS, DH)
    vh = v.reshape(B, s_d, HEADS, DH)
    scores = jnp.einsum('bhd,bshd->bhs', qh, kh) / math.sqrt(float(DH))
    w_attn = jax.nn.softmax(scores, axis=-1)
    ctx = jnp.einsum('bhs,bshd->bhd', w_attn, vh).reshape(B, FEAT)
    attn_out = ctx @ params['w_o'] + params['b_o']

    hist = inputs['history_actions']
    s_h = hist.shape[1]
    hist_f = fe(hist.reshape(B * s_h, -1), params['w_act'], params['b_act']).reshape(B, s_h, FEAT)
    h = jnp.zeros((B, LSTM_H), F32)
    c = jnp.zeros((B, LSTM_H), F32)
    for t in range(s_h):
        g = hist_f[:, t] @ params['w_ih'] + params['b_ih'] + h @ params['w_hh'] + params['b_hh']
        i_g = jax.nn.sigmoid(g[:, :LSTM_H])
        f_g = jax.nn.sigmoid(g[:, LSTM_H:2 * LSTM_H])
        g_g = jnp.tanh(g[:, 2 * LSTM_H:3 * LSTM_H])
        o_g = jax.nn.sigmoid(g[:, 3 * LSTM_H:])
        c = f_g * c + i_g * g_g
        h = o_g * jnp.tanh(c)

    feats = jnp.concatenate([attn_out, hand_f, remain_f, flat, act_f, h], axis=-1)
    w0 = jnp.concatenate([params['w0_attn'], params['w0_hand'], params['w0_remain'],
                          params['w0_flat'], params['w0_act'], params['w0_lstm']], axis=0)
    x = jnp.maximum(feats @ w0 + params['b0'], 0.0)
    x = jnp.maximum(x @ params['w1'] + params['b1'], 0.0)
    return x @ params['w_out'].T + params['b_out']


# ---------------------------------------------------------------- demo / check
if __name__ == "__main__":
    key = jax.random.PRNGKey(0)
    k_in, k_params = jax.random.split(key)
    ks = jax.random.split(k_in, 11)

    B = 8
    inputs = {
        'handcards': jax.random.uniform(ks[0], (B, *HAND_SHAPE), F32),
        'remain_cards': jax.random.uniform(ks[1], (B, *HAND_SHAPE), F32),
        'desk_cards': jax.random.uniform(ks[2], (B, S_DESK, *ACT_SHAPE), F32),
        'history_actions': jax.random.uniform(ks[3], (B, S_HIST, *ACT_SHAPE), F32),
        'handcards_num': jax.random.uniform(ks[4], (B, 1), F32),
        'gui_num': jax.random.uniform(ks[5], (B, 1), F32),
        'played_gui_num': jax.random.uniform(ks[6], (B, 1), F32),
        'played_A_num': jax.random.uniform(ks[7], (B, 1), F32),
        'is_free_play': jax.random.uniform(ks[8], (B, 1), F32),
        'is_lose': jax.random.uniform(ks[9], (B, 1), F32),
    }
    action = jax.random.uniform(ks[10], (B, *ACT_SHAPE), F32)
    params = init_params(k_params)

    out = lstm_attention_net_forward(inputs, action, params)
    out = jax.block_until_ready(out)

    ref = reference_forward(inputs, action, params)
    assert out.shape == (B, OUT_DIM)
    max_diff = float(jnp.max(jnp.abs(out - ref)))
    # bf16 matmul operands + approx reciprocal + tanh-form sigmoid vs the f32 reference
    assert bool(jnp.allclose(out, ref, atol=2e-2, rtol=2e-2)), (
        f"mismatch vs JAX reference, max abs diff = {max_diff}")

    print("KERNEL_OK")
</pallas_src>

<mosaic_0001>
module attributes {stable_mosaic.version = 11 : i64} {
  func.func @_lstm_attention_kernel(%arg0: i32, %arg1: memref<8x64xbf16, #tpu.memory_space<vmem>>, %arg2: memref<8x64xbf16, #tpu.memory_space<vmem>>, %arg3: memref<8x64xbf16, #tpu.memory_space<vmem>>, %arg4: memref<8x6xf32, #tpu.memory_space<vmem>>, %arg5: memref<8x8x64xbf16, #tpu.memory_space<vmem>>, %arg6: memref<8x8x64xbf16, #tpu.memory_space<vmem>>, %arg7: memref<64x128xbf16, #tpu.memory_space<vmem>>, %arg8: memref<1x128xf32, #tpu.memory_space<vmem>>, %arg9: memref<64x128xbf16, #tpu.memory_space<vmem>>, %arg10: memref<1x128xf32, #tpu.memory_space<vmem>>, %arg11: memref<128x128xbf16, #tpu.memory_space<vmem>>, %arg12: memref<1x128xf32, #tpu.memory_space<vmem>>, %arg13: memref<128x256xbf16, #tpu.memory_space<vmem>>, %arg14: memref<1x256xf32, #tpu.memory_space<vmem>>, %arg15: memref<128x128xbf16, #tpu.memory_space<vmem>>, %arg16: memref<1x128xf32, #tpu.memory_space<vmem>>, %arg17: memref<128x4xbf16, #tpu.memory_space<vmem>>, %arg18: memref<4x128xbf16, #tpu.memory_space<vmem>>, %arg19: memref<128x512xbf16, #tpu.memory_space<vmem>>, %arg20: memref<128x512xbf16, #tpu.memory_space<vmem>>, %arg21: memref<1x512xf32, #tpu.memory_space<vmem>>, %arg22: memref<128x256xbf16, #tpu.memory_space<vmem>>, %arg23: memref<128x256xbf16, #tpu.memory_space<vmem>>, %arg24: memref<128x256xbf16, #tpu.memory_space<vmem>>, %arg25: memref<128x256xbf16, #tpu.memory_space<vmem>>, %arg26: memref<128x256xbf16, #tpu.memory_space<vmem>>, %arg27: memref<6x256xf32, #tpu.memory_space<vmem>>, %arg28: memref<1x256xf32, #tpu.memory_space<vmem>>, %arg29: memref<256x256xbf16, #tpu.memory_space<vmem>>, %arg30: memref<1x256xf32, #tpu.memory_space<vmem>>, %arg31: memref<1x256xf32, #tpu.memory_space<vmem>>, %arg32: memref<1x1xf32, #tpu.memory_space<vmem>>, %arg33: memref<8x1xf32, #tpu.memory_space<vmem>>) attributes {dimension_semantics = [#tpu.dimension_semantics<parallel>], iteration_bounds = array<i64: 1>, scalar_prefetch = 0 : i64, scratch_operands = 0 : i64, tpu.core_type = #tpu.core_type<tc>, window_params = [{transform_indices = @transform_0, window_bounds = array<i64: 8, 64>}, {transform_indices = @transform_1, window_bounds = array<i64: 8, 64>}, {transform_indices = @transform_2, window_bounds = array<i64: 8, 64>}, {transform_indices = @transform_3, window_bounds = array<i64: 8, 6>}, {transform_indices = @transform_4, window_bounds = array<i64: 8, 8, 64>}, {transform_indices = @transform_5, window_bounds = array<i64: 8, 8, 64>}, {pipeline_mode = #tpu.pipeline_mode<synchronous>, transform_indices = @transform_6, window_bounds = array<i64: 64, 128>}, {pipeline_mode = #tpu.pipeline_mode<synchronous>, transform_indices = @transform_7, window_bounds = array<i64: 1, 128>}, {pipeline_mode = #tpu.pipeline_mode<synchronous>, transform_indices = @transform_8, window_bounds = array<i64: 64, 128>}, {pipeline_mode = #tpu.pipeline_mode<synchronous>, transform_indices = @transform_9, window_bounds = array<i64: 1, 128>}, {pipeline_mode = #tpu.pipeline_mode<synchronous>, transform_indices = @transform_10, window_bounds = array<i64: 128, 128>}, {pipeline_mode = #tpu.pipeline_mode<synchronous>, transform_indices = @transform_11, window_bounds = array<i64: 1, 128>}, {pipeline_mode = #tpu.pipeline_mode<synchronous>, transform_indices = @transform_12, window_bounds = array<i64: 128, 256>}, {pipeline_mode = #tpu.pipeline_mode<synchronous>, transform_indices = @transform_13, window_bounds = array<i64: 1, 256>}, {pipeline_mode = #tpu.pipeline_mode<synchronous>, transform_indices = @transform_14, window_bounds = array<i64: 128, 128>}, {pipeline_mode = #tpu.pipeline_mode<synchronous>, transform_indices = @transform_15, window_bounds = array<i64: 1, 128>}, {pipeline_mode = #tpu.pipeline_mode<synchronous>, transform_indices = @transform_16, window_bounds = array<i64: 128, 4>}, {pipeline_mode = #tpu.pipeline_mode<synchronous>, transform_indices = @transform_17, window_bounds = array<i64: 4, 128>}, {pipeline_mode = #tpu.pipeline_mode<synchronous>, transform_indices = @transform_18, window_bounds = array<i64: 128, 512>}, {pipeline_mode = #tpu.pipeline_mode<synchronous>, transform_indices = @transform_19, window_bounds = array<i64: 128, 512>}, {pipeline_mode = #tpu.pipeline_mode<synchronous>, transform_indices = @transform_20, window_bounds = array<i64: 1, 512>}, {pipeline_mode = #tpu.pipeline_mode<synchronous>, transform_indices = @transform_21, window_bounds = array<i64: 128, 256>}, {pipeline_mode = #tpu.pipeline_mode<synchronous>, transform_indices = @transform_22, window_bounds = array<i64: 128, 256>}, {pipeline_mode = #tpu.pipeline_mode<synchronous>, transform_indices = @transform_23, window_bounds = array<i64: 128, 256>}, {pipeline_mode = #tpu.pipeline_mode<synchronous>, transform_indices = @transform_24, window_bounds = array<i64: 128, 256>}, {pipeline_mode = #tpu.pipeline_mode<synchronous>, transform_indices = @transform_25, window_bounds = array<i64: 128, 256>}, {pipeline_mode = #tpu.pipeline_mode<synchronous>, transform_indices = @transform_26, window_bounds = array<i64: 6, 256>}, {pipeline_mode = #tpu.pipeline_mode<synchronous>, transform_indices = @transform_27, window_bounds = array<i64: 1, 256>}, {pipeline_mode = #tpu.pipeline_mode<synchronous>, transform_indices = @transform_28, window_bounds = array<i64: 256, 256>}, {pipeline_mode = #tpu.pipeline_mode<synchronous>, transform_indices = @transform_29, window_bounds = array<i64: 1, 256>}, {pipeline_mode = #tpu.pipeline_mode<synchronous>, transform_indices = @transform_30, window_bounds = array<i64: 1, 256>}, {pipeline_mode = #tpu.pipeline_mode<synchronous>, transform_indices = @transform_31, window_bounds = array<i64: 1, 1>}, {transform_indices = @transform_32, window_bounds = array<i64: 8, 1>}]} {
    %c0 = arith.constant 0 : index
    %c0_0 = arith.constant 0 : index
    %0 = vector.load %arg9[%c0, %c0_0] : memref<64x128xbf16, #tpu.memory_space<vmem>>, vector<64x128xbf16>
    %c0_1 = arith.constant 0 : index
    %c0_2 = arith.constant 0 : index
    %1 = vector.load %arg10[%c0_1, %c0_2] : memref<1x128xf32, #tpu.memory_space<vmem>>, vector<1x128xf32>
    %c0_3 = arith.constant 0 : index
    %c0_4 = arith.constant 0 : index
    %2 = vector.load %arg1[%c0_3, %c0_4] : memref<8x64xbf16, #tpu.memory_space<vmem>>, vector<8x64xbf16>
    %c0_5 = arith.constant 0 : index
    %c0_6 = arith.constant 0 : index
    %3 = vector.load %arg2[%c0_5, %c0_6] : memref<8x64xbf16, #tpu.memory_space<vmem>>, vector<8x64xbf16>
    %4 = tpu.concatenate %2, %3 in 0 : vector<8x64xbf16>, vector<8x64xbf16> -> vector<16x64xbf16>
    %c0_7 = arith.constant 0 : index
    %c0_8 = arith.constant 0 : index
    %5 = vector.load %arg7[%c0_7, %c0_8] : memref<64x128xbf16, #tpu.memory_space<vmem>>, vector<64x128xbf16>
    %cst = arith.constant dense<0.000000e+00> : vector<16x128xf32>
    %6 = tpu.matmul %4, %5, %cst {dimension_numbers = #tpu.dot_dimension_numbers<[1], [0], [0], [1], [0, 0, 1, 1], [], []>} : vector<16x64xbf16>, vector<64x128xbf16>, vector<16x128xf32> -> vector<16x128xf32>
    %c0_9 = arith.constant 0 : index
    %c0_10 = arith.constant 0 : index
    %7 = vector.load %arg8[%c0_9, %c0_10] : memref<1x128xf32, #tpu.memory_space<vmem>>, vector<1x128xf32>
    %8 = vector.broadcast %7 : vector<1x128xf32> to vector<16x128xf32>
    %9 = arith.addf %6, %8 : vector<16x128xf32>
    %cst_11 = arith.constant 0.000000e+00 : f32
    %10 = vector.broadcast %cst_11 : f32 to vector<16x128xf32>
    %11 = arith.maximumf %9, %10 : vector<16x128xf32>
    %12 = vector.extract_strided_slice %11 {offsets = [0, 0], sizes = [8, 128], strides = [1, 1]} : vector<16x128xf32> to vector<8x128xf32>
    %13 = vector.extract_strided_slice %11 {offsets = [8, 0], sizes = [8, 128], strides = [1, 1]} : vector<16x128xf32> to vector<8x128xf32>
    %c0_12 = arith.constant 0 : index
    %c0_13 = arith.constant 0 : index
    %14 = vector.load %arg3[%c0_12, %c0_13] : memref<8x64xbf16, #tpu.memory_space<vmem>>, vector<8x64xbf16>
    %cst_14 = arith.constant dense<0.000000e+00> : vector<8x128xf32>
    %15 = tpu.matmul %14, %0, %cst_14 {dimension_numbers = #tpu.dot_dimension_numbers<[1], [0], [0], [1], [0, 0, 1, 1], [], []>} : vector<8x64xbf16>, vector<64x128xbf16>, vector<8x128xf32> -> vector<8x128xf32>
    %16 = vector.broadcast %1 : vector<1x128xf32> to vector<8x128xf32>
    %17 = arith.addf %15, %16 : vector<8x128xf32>
    %cst_15 = arith.constant 0.000000e+00 : f32
    %18 = vector.broadcast %cst_15 : f32 to vector<8x128xf32>
    %19 = arith.maximumf %17, %18 : vector<8x128xf32>
    %c0_16 = arith.constant 0 : index
    %c0_17 = arith.constant 0 : index
    %c0_18 = arith.constant 0 : index
    %20 = vector.load %arg5[%c0_16, %c0_17, %c0_18] : memref<8x8x64xbf16, #tpu.memory_space<vmem>>, vector<8x8x64xbf16>
    %21 = vector.shape_cast %20 : vector<8x8x64xbf16> to vector<64x64xbf16>
    %cst_19 = arith.constant dense<0.000000e+00> : vector<64x128xf32>
    %22 = tpu.matmul %21, %0, %cst_19 {dimension_numbers = #tpu.dot_dimension_numbers<[1], [0], [0], [1], [0, 0, 1, 1], [], []>} : vector<64x64xbf16>, vector<64x128xbf16>, vector<64x128xf32> -> vector<64x128xf32>
    %23 = vector.broadcast %1 : vector<1x128xf32> to vector<64x128xf32>
    %24 = arith.addf %22, %23 : vector<64x128xf32>
    %cst_20 = arith.constant 0.000000e+00 : f32
    %25 = vector.broadcast %cst_20 : f32 to vector<64x128xf32>
    %26 = arith.maximumf %24, %25 : vector<64x128xf32>
    %27 = arith.truncf %26 : vector<64x128xf32> to vector<64x128xbf16>
    %c0_21 = arith.constant 0 : index
    %c0_22 = arith.constant 0 : index
    %28 = vector.load %arg13[%c0_21, %c0_22] : memref<128x256xbf16, #tpu.memory_space<vmem>>, vector<128x256xbf16>
    %cst_23 = arith.constant dense<0.000000e+00> : vector<64x256xf32>
    %29 = tpu.matmul %27, %28, %cst_23 {dimension_numbers = #tpu.dot_dimension_numbers<[1], [0], [0], [1], [0, 0, 1, 1], [], []>} : vector<64x128xbf16>, vector<128x256xbf16>, vector<64x256xf32> -> vector<64x256xf32>
    %c0_24 = arith.constant 0 : index
    %c0_25 = arith.constant 0 : index
    %30 = vector.load %arg14[%c0_24, %c0_25] : memref<1x256xf32, #tpu.memory_space<vmem>>, vector<1x256xf32>
    %31 = vector.broadcast %30 : vector<1x256xf32> to vector<64x256xf32>
    %32 = arith.addf %29, %31 : vector<64x256xf32>
    %33 = arith.truncf %19 : vector<8x128xf32> to vector<8x128xbf16>
    %c0_26 = arith.constant 0 : index
    %c0_27 = arith.constant 0 : index
    %34 = vector.load %arg11[%c0_26, %c0_27] : memref<128x128xbf16, #tpu.memory_space<vmem>>, vector<128x128xbf16>
    %cst_28 = arith.constant dense<0.000000e+00> : vector<8x128xf32>
    %35 = tpu.matmul %33, %34, %cst_28 {dimension_numbers = #tpu.dot_dimension_numbers<[1], [0], [0], [1], [0, 0, 1, 1], [], []>} : vector<8x128xbf16>, vector<128x128xbf16>, vector<8x128xf32> -> vector<8x128xf32>
    %c0_29 = arith.constant 0 : index
    %c0_30 = arith.constant 0 : index
    %36 = vector.load %arg12[%c0_29, %c0_30] : memref<1x128xf32, #tpu.memory_space<vmem>>, vector<1x128xf32>
    %37 = vector.broadcast %36 : vector<1x128xf32> to vector<8x128xf32>
    %38 = arith.addf %35, %37 : vector<8x128xf32>
    %c0_31 = arith.constant 0 : index
    %c0_32 = arith.constant 0 : index
    %39 = vector.load %arg17[%c0_31, %c0_32] : memref<128x4xbf16, #tpu.memory_space<vmem>>, vector<128x4xbf16>
    %c0_33 = arith.constant 0 : index
    %c0_34 = arith.constant 0 : index
    %40 = vector.load %arg18[%c0_33, %c0_34] : memref<4x128xbf16, #tpu.memory_space<vmem>>, vector<4x128xbf16>
    %41 = vector.extract_strided_slice %32 {offsets = [0, 0], sizes = [8, 128], strides = [1, 1]} : vector<64x256xf32> to vector<8x128xf32>
    %42 = arith.mulf %38, %41 : vector<8x128xf32>
    %43 = arith.truncf %42 : vector<8x128xf32> to vector<8x128xbf16>
    %cst_35 = arith.constant dense<0.000000e+00> : vector<8x4xf32>
    %44 = tpu.matmul %43, %39, %cst_35 {dimension_numbers = #tpu.dot_dimension_numbers<[1], [0], [0], [1], [0, 0, 1, 1], [], []>} : vector<8x128xbf16>, vector<128x4xbf16>, vector<8x4xf32> -> vector<8x4xf32>
    %45 = vector.extract_strided_slice %32 {offsets = [8, 0], sizes = [8, 128], strides = [1, 1]} : vector<64x256xf32> to vector<8x128xf32>
    %46 = arith.mulf %38, %45 : vector<8x128xf32>
    %47 = arith.truncf %46 : vector<8x128xf32> to vector<8x128xbf16>
    %cst_36 = arith.constant dense<0.000000e+00> : vector<8x4xf32>
    %48 = tpu.matmul %47, %39, %cst_36 {dimension_numbers = #tpu.dot_dimension_numbers<[1], [0], [0], [1], [0, 0, 1, 1], [], []>} : vector<8x128xbf16>, vector<128x4xbf16>, vector<8x4xf32> -> vector<8x4xf32>
    %49 = vector.extract_strided_slice %32 {offsets = [16, 0], sizes = [8, 128], strides = [1, 1]} : vector<64x256xf32> to vector<8x128xf32>
    %50 = arith.mulf %38, %49 : vector<8x128xf32>
    %51 = arith.truncf %50 : vector<8x128xf32> to vector<8x128xbf16>
    %cst_37 = arith.constant dense<0.000000e+00> : vector<8x4xf32>
    %52 = tpu.matmul %51, %39, %cst_37 {dimension_numbers = #tpu.dot_dimension_numbers<[1], [0], [0], [1], [0, 0, 1, 1], [], []>} : vector<8x128xbf16>, vector<128x4xbf16>, vector<8x4xf32> -> vector<8x4xf32>
    %53 = vector.extract_strided_slice %32 {offsets = [24, 0], sizes = [8, 128], strides = [1, 1]} : vector<64x256xf32> to vector<8x128xf32>
    %54 = arith.mulf %38, %53 : vector<8x128xf32>
    %55 = arith.truncf %54 : vector<8x128xf32> to vector<8x128xbf16>
    %cst_38 = arith.constant dense<0.000000e+00> : vector<8x4xf32>
    %56 = tpu.matmul %55, %39, %cst_38 {dimension_numbers = #tpu.dot_dimension_numbers<[1], [0], [0], [1], [0, 0, 1, 1], [], []>} : vector<8x128xbf16>, vector<128x4xbf16>, vector<8x4xf32> -> vector<8x4xf32>
    %57 = vector.extract_strided_slice %32 {offsets = [32, 0], sizes = [8, 128], strides = [1, 1]} : vector<64x256xf32> to vector<8x128xf32>
    %58 = arith.mulf %38, %57 : vector<8x128xf32>
    %59 = arith.truncf %58 : vector<8x128xf32> to vector<8x128xbf16>
    %cst_39 = arith.constant dense<0.000000e+00> : vector<8x4xf32>
    %60 = tpu.matmul %59, %39, %cst_39 {dimension_numbers = #tpu.dot_dimension_numbers<[1], [0], [0], [1], [0, 0, 1, 1], [], []>} : vector<8x128xbf16>, vector<128x4xbf16>, vector<8x4xf32> -> vector<8x4xf32>
    %61 = vector.extract_strided_slice %32 {offsets = [40, 0], sizes = [8, 128], strides = [1, 1]} : vector<64x256xf32> to vector<8x128xf32>
    %62 = arith.mulf %38, %61 : vector<8x128xf32>
    %63 = arith.truncf %62 : vector<8x128xf32> to vector<8x128xbf16>
    %cst_40 = arith.constant dense<0.000000e+00> : vector<8x4xf32>
    %64 = tpu.matmul %63, %39, %cst_40 {dimension_numbers = #tpu.dot_dimension_numbers<[1], [0], [0], [1], [0, 0, 1, 1], [], []>} : vector<8x128xbf16>, vector<128x4xbf16>, vector<8x4xf32> -> vector<8x4xf32>
    %65 = vector.extract_strided_slice %32 {offsets = [48, 0], sizes = [8, 128], strides = [1, 1]} : vector<64x256xf32> to vector<8x128xf32>
    %66 = arith.mulf %38, %65 : vector<8x128xf32>
    %67 = arith.truncf %66 : vector<8x128xf32> to vector<8x128xbf16>
    %cst_41 = arith.constant dense<0.000000e+00> : vector<8x4xf32>
    %68 = tpu.matmul %67, %39, %cst_41 {dimension_numbers = #tpu.dot_dimension_numbers<[1], [0], [0], [1], [0, 0, 1, 1], [], []>} : vector<8x128xbf16>, vector<128x4xbf16>, vector<8x4xf32> -> vector<8x4xf32>
    %69 = vector.extract_strided_slice %32 {offsets = [56, 0], sizes = [8, 128], strides = [1, 1]} : vector<64x256xf32> to vector<8x128xf32>
    %70 = arith.mulf %38, %69 : vector<8x128xf32>
    %71 = arith.truncf %70 : vector<8x128xf32> to vector<8x128xbf16>
    %cst_42 = arith.constant dense<0.000000e+00> : vector<8x4xf32>
    %72 = tpu.matmul %71, %39, %cst_42 {dimension_numbers = #tpu.dot_dimension_numbers<[1], [0], [0], [1], [0, 0, 1, 1], [], []>} : vector<8x128xbf16>, vector<128x4xbf16>, vector<8x4xf32> -> vector<8x4xf32>
    %73 = arith.maximumf %44, %48 : vector<8x4xf32>
    %74 = arith.maximumf %73, %52 : vector<8x4xf32>
    %75 = arith.maximumf %74, %56 : vector<8x4xf32>
    %76 = arith.maximumf %75, %60 : vector<8x4xf32>
    %77 = arith.maximumf %76, %64 : vector<8x4xf32>
    %78 = arith.maximumf %77, %68 : vector<8x4xf32>
    %79 = arith.maximumf %78, %72 : vector<8x4xf32>
    %80 = arith.subf %44, %79 : vector<8x4xf32>
    %81 = math.exp %80 : vector<8x4xf32>
    %82 = arith.subf %48, %79 : vector<8x4xf32>
    %83 = math.exp %82 : vector<8x4xf32>
    %84 = arith.subf %52, %79 : vector<8x4xf32>
    %85 = math.exp %84 : vector<8x4xf32>
    %86 = arith.subf %56, %79 : vector<8x4xf32>
    %87 = math.exp %86 : vector<8x4xf32>
    %88 = arith.subf %60, %79 : vector<8x4xf32>
    %89 = math.exp %88 : vector<8x4xf32>
    %90 = arith.subf %64, %79 : vector<8x4xf32>
    %91 = math.exp %90 : vector<8x4xf32>
    %92 = arith.subf %68, %79 : vector<8x4xf32>
    %93 = math.exp %92 : vector<8x4xf32>
    %94 = arith.subf %72, %79 : vector<8x4xf32>
    %95 = math.exp %94 : vector<8x4xf32>
    %96 = arith.addf %81, %83 : vector<8x4xf32>
    %97 = arith.addf %96, %85 : vector<8x4xf32>
    %98 = arith.addf %97, %87 : vector<8x4xf32>
    %99 = arith.addf %98, %89 : vector<8x4xf32>
    %100 = arith.addf %99, %91 : vector<8x4xf32>
    %101 = arith.addf %100, %93 : vector<8x4xf32>
    %102 = arith.addf %101, %95 : vector<8x4xf32>
    %103 = tpu.reciprocal %102 {approx = true} : vector<8x4xf32> -> vector<8x4xf32>
    %cst_43 = arith.constant 0.000000e+00 : f32
    %104 = vector.broadcast %cst_43 : f32 to vector<8x128xf32>
    %105 = arith.mulf %81, %103 : vector<8x4xf32>
    %106 = arith.truncf %105 : vector<8x4xf32> to vector<8x4xbf16>
    %cst_44 = arith.constant dense<0.000000e+00> : vector<8x128xf32>
    %107 = tpu.matmul %106, %40, %cst_44 {dimension_numbers = #tpu.dot_dimension_numbers<[1], [0], [0], [1], [0, 0, 1, 1], [], []>} : vector<8x4xbf16>, vector<4x128xbf16>, vector<8x128xf32> -> vector<8x128xf32>
    %108 = vector.extract_strided_slice %32 {offsets = [0, 128], sizes = [8, 128], strides = [1, 1]} : vector<64x256xf32> to vector<8x128xf32>
    %109 = arith.mulf %107, %108 : vector<8x128xf32>
    %110 = arith.addf %104, %109 : vector<8x128xf32>
    %111 = arith.mulf %83, %103 : vector<8x4xf32>
    %112 = arith.truncf %111 : vector<8x4xf32> to vector<8x4xbf16>
    %cst_45 = arith.constant dense<0.000000e+00> : vector<8x128xf32>
    %113 = tpu.matmul %112, %40, %cst_45 {dimension_numbers = #tpu.dot_dimension_numbers<[1], [0], [0], [1], [0, 0, 1, 1], [], []>} : vector<8x4xbf16>, vector<4x128xbf16>, vector<8x128xf32> -> vector<8x128xf32>
    %114 = vector.extract_strided_slice %32 {offsets = [8, 128], sizes = [8, 128], strides = [1, 1]} : vector<64x256xf32> to vector<8x128xf32>
    %115 = arith.mulf %113, %114 : vector<8x128xf32>
    %116 = arith.addf %110, %115 : vector<8x128xf32>
    %117 = arith.mulf %85, %103 : vector<8x4xf32>
    %118 = arith.truncf %117 : vector<8x4xf32> to vector<8x4xbf16>
    %cst_46 = arith.constant dense<0.000000e+00> : vector<8x128xf32>
    %119 = tpu.matmul %118, %40, %cst_46 {dimension_numbers = #tpu.dot_dimension_numbers<[1], [0], [0], [1], [0, 0, 1, 1], [], []>} : vector<8x4xbf16>, vector<4x128xbf16>, vector<8x128xf32> -> vector<8x128xf32>
    %120 = vector.extract_strided_slice %32 {offsets = [16, 128], sizes = [8, 128], strides = [1, 1]} : vector<64x256xf32> to vector<8x128xf32>
    %121 = arith.mulf %119, %120 : vector<8x128xf32>
    %122 = arith.addf %116, %121 : vector<8x128xf32>
    %123 = arith.mulf %87, %103 : vector<8x4xf32>
    %124 = arith.truncf %123 : vector<8x4xf32> to vector<8x4xbf16>
    %cst_47 = arith.constant dense<0.000000e+00> : vector<8x128xf32>
    %125 = tpu.matmul %124, %40, %cst_47 {dimension_numbers = #tpu.dot_dimension_numbers<[1], [0], [0], [1], [0, 0, 1, 1], [], []>} : vector<8x4xbf16>, vector<4x128xbf16>, vector<8x128xf32> -> vector<8x128xf32>
    %126 = vector.extract_strided_slice %32 {offsets = [24, 128], sizes = [8, 128], strides = [1, 1]} : vector<64x256xf32> to vector<8x128xf32>
    %127 = arith.mulf %125, %126 : vector<8x128xf32>
    %128 = arith.addf %122, %127 : vector<8x128xf32>
    %129 = arith.mulf %89, %103 : vector<8x4xf32>
    %130 = arith.truncf %129 : vector<8x4xf32> to vector<8x4xbf16>
    %cst_48 = arith.constant dense<0.000000e+00> : vector<8x128xf32>
    %131 = tpu.matmul %130, %40, %cst_48 {dimension_numbers = #tpu.dot_dimension_numbers<[1], [0], [0], [1], [0, 0, 1, 1], [], []>} : vector<8x4xbf16>, vector<4x128xbf16>, vector<8x128xf32> -> vector<8x128xf32>
    %132 = vector.extract_strided_slice %32 {offsets = [32, 128], sizes = [8, 128], strides = [1, 1]} : vector<64x256xf32> to vector<8x128xf32>
    %133 = arith.mulf %131, %132 : vector<8x128xf32>
    %134 = arith.addf %128, %133 : vector<8x128xf32>
    %135 = arith.mulf %91, %103 : vector<8x4xf32>
    %136 = arith.truncf %135 : vector<8x4xf32> to vector<8x4xbf16>
    %cst_49 = arith.constant dense<0.000000e+00> : vector<8x128xf32>
    %137 = tpu.matmul %136, %40, %cst_49 {dimension_numbers = #tpu.dot_dimension_numbers<[1], [0], [0], [1], [0, 0, 1, 1], [], []>} : vector<8x4xbf16>, vector<4x128xbf16>, vector<8x128xf32> -> vector<8x128xf32>
    %138 = vector.extract_strided_slice %32 {offsets = [40, 128], sizes = [8, 128], strides = [1, 1]} : vector<64x256xf32> to vector<8x128xf32>
    %139 = arith.mulf %137, %138 : vector<8x128xf32>
    %140 = arith.addf %134, %139 : vector<8x128xf32>
    %141 = arith.mulf %93, %103 : vector<8x4xf32>
    %142 = arith.truncf %141 : vector<8x4xf32> to vector<8x4xbf16>
    %cst_50 = arith.constant dense<0.000000e+00> : vector<8x128xf32>
    %143 = tpu.matmul %142, %40, %cst_50 {dimension_numbers = #tpu.dot_dimension_numbers<[1], [0], [0], [1], [0, 0, 1, 1], [], []>} : vector<8x4xbf16>, vector<4x128xbf16>, vector<8x128xf32> -> vector<8x128xf32>
    %144 = vector.extract_strided_slice %32 {offsets = [48, 128], sizes = [8, 128], strides = [1, 1]} : vector<64x256xf32> to vector<8x128xf32>
    %145 = arith.mulf %143, %144 : vector<8x128xf32>
    %146 = arith.addf %140, %145 : vector<8x128xf32>
    %147 = arith.mulf %95, %103 : vector<8x4xf32>
    %148 = arith.truncf %147 : vector<8x4xf32> to vector<8x4xbf16>
    %cst_51 = arith.constant dense<0.000000e+00> : vector<8x128xf32>
    %149 = tpu.matmul %148, %40, %cst_51 {dimension_numbers = #tpu.dot_dimension_numbers<[1], [0], [0], [1], [0, 0, 1, 1], [], []>} : vector<8x4xbf16>, vector<4x128xbf16>, vector<8x128xf32> -> vector<8x128xf32>
    %150 = vector.extract_strided_slice %32 {offsets = [56, 128], sizes = [8, 128], strides = [1, 1]} : vector<64x256xf32> to vector<8x128xf32>
    %151 = arith.mulf %149, %150 : vector<8x128xf32>
    %152 = arith.addf %146, %151 : vector<8x128xf32>
    %153 = arith.truncf %152 : vector<8x128xf32> to vector<8x128xbf16>
    %c0_52 = arith.constant 0 : index
    %c0_53 = arith.constant 0 : index
    %154 = vector.load %arg15[%c0_52, %c0_53] : memref<128x128xbf16, #tpu.memory_space<vmem>>, vector<128x128xbf16>
    %cst_54 = arith.constant dense<0.000000e+00> : vector<8x128xf32>
    %155 = tpu.matmul %153, %154, %cst_54 {dimension_numbers = #tpu.dot_dimension_numbers<[1], [0], [0], [1], [0, 0, 1, 1], [], []>} : vector<8x128xbf16>, vector<128x128xbf16>, vector<8x128xf32> -> vector<8x128xf32>
    %c0_55 = arith.constant 0 : index
    %c0_56 = arith.constant 0 : index
    %156 = vector.load %arg16[%c0_55, %c0_56] : memref<1x128xf32, #tpu.memory_space<vmem>>, vector<1x128xf32>
    %157 = vector.broadcast %156 : vector<1x128xf32> to vector<8x128xf32>
    %158 = arith.addf %155, %157 : vector<8x128xf32>
    %c0_57 = arith.constant 0 : index
    %c0_58 = arith.constant 0 : index
    %c0_59 = arith.constant 0 : index
    %159 = vector.load %arg6[%c0_57, %c0_58, %c0_59] : memref<8x8x64xbf16, #tpu.memory_space<vmem>>, vector<8x8x64xbf16>
    %160 = vector.shape_cast %159 : vector<8x8x64xbf16> to vector<64x64xbf16>
    %cst_60 = arith.constant dense<0.000000e+00> : vector<64x128xf32>
    %161 = tpu.matmul %160, %0, %cst_60 {dimension_numbers = #tpu.dot_dimension_numbers<[1], [0], [0], [1], [0, 0, 1, 1], [], []>} : vector<64x64xbf16>, vector<64x128xbf16>, vector<64x128xf32> -> vector<64x128xf32>
    %162 = vector.broadcast %1 : vector<1x128xf32> to vector<64x128xf32>
    %163 = arith.addf %161, %162 : vector<64x128xf32>
    %cst_61 = arith.constant 0.000000e+00 : f32
    %164 = vector.broadcast %cst_61 : f32 to vector<64x128xf32>
    %165 = arith.maximumf %163, %164 : vector<64x128xf32>
    %166 = arith.truncf %165 : vector<64x128xf32> to vector<64x128xbf16>
    %c0_62 = arith.constant 0 : index
    %c0_63 = arith.constant 0 : index
    %167 = vector.load %arg19[%c0_62, %c0_63] : memref<128x512xbf16, #tpu.memory_space<vmem>>, vector<128x512xbf16>
    %cst_64 = arith.constant dense<0.000000e+00> : vector<64x512xf32>
    %168 = tpu.matmul %166, %167, %cst_64 {dimension_numbers = #tpu.dot_dimension_numbers<[1], [0], [0], [1], [0, 0, 1, 1], [], []>} : vector<64x128xbf16>, vector<128x512xbf16>, vector<64x512xf32> -> vector<64x512xf32>
    %c0_65 = arith.constant 0 : index
    %c0_66 = arith.constant 0 : index
    %169 = vector.load %arg21[%c0_65, %c0_66] : memref<1x512xf32, #tpu.memory_space<vmem>>, vector<1x512xf32>
    %170 = vector.broadcast %169 : vector<1x512xf32> to vector<64x512xf32>
    %171 = arith.addf %168, %170 : vector<64x512xf32>
    %c0_67 = arith.constant 0 : index
    %c0_68 = arith.constant 0 : index
    %172 = vector.load %arg20[%c0_67, %c0_68] : memref<128x512xbf16, #tpu.memory_space<vmem>>, vector<128x512xbf16>
    %cst_69 = arith.constant 0.000000e+00 : f32
    %173 = vector.broadcast %cst_69 : f32 to vector<8x128xf32>
    %cst_70 = arith.constant 0.000000e+00 : f32
    %174 = vector.broadcast %cst_70 : f32 to vector<8x128xf32>
    %175 = vector.extract_strided_slice %171 {offsets = [0, 0], sizes = [8, 512], strides = [1, 1]} : vector<64x512xf32> to vector<8x512xf32>
    %176 = arith.truncf %173 : vector<8x128xf32> to vector<8x128xbf16>
    %cst_71 = arith.constant dense<0.000000e+00> : vector<8x512xf32>
    %177 = tpu.matmul %176, %172, %cst_71 {dimension_numbers = #tpu.dot_dimension_numbers<[1], [0], [0], [1], [0, 0, 1, 1], [], []>} : vector<8x128xbf16>, vector<128x512xbf16>, vector<8x512xf32> -> vector<8x512xf32>
    %178 = arith.addf %175, %177 : vector<8x512xf32>
    %179 = vector.extract_strided_slice %178 {offsets = [0, 0], sizes = [8, 128], strides = [1, 1]} : vector<8x512xf32> to vector<8x128xf32>
    %cst_72 = arith.constant 5.000000e-01 : f32
    %180 = vector.broadcast %cst_72 : f32 to vector<8x128xf32>
    %181 = arith.mulf %180, %179 : vector<8x128xf32>
    %182 = math.tanh %181 : vector<8x128xf32>
    %cst_73 = arith.constant 5.000000e-01 : f32
    %183 = vector.broadcast %cst_73 : f32 to vector<8x128xf32>
    %184 = arith.mulf %183, %182 : vector<8x128xf32>
    %cst_74 = arith.constant 5.000000e-01 : f32
    %185 = vector.broadcast %cst_74 : f32 to vector<8x128xf32>
    %186 = arith.addf %184, %185 : vector<8x128xf32>
    %187 = vector.extract_strided_slice %178 {offsets = [0, 128], sizes = [8, 128], strides = [1, 1]} : vector<8x512xf32> to vector<8x128xf32>
    %cst_75 = arith.constant 5.000000e-01 : f32
    %188 = vector.broadcast %cst_75 : f32 to vector<8x128xf32>
    %189 = arith.mulf %188, %187 : vector<8x128xf32>
    %190 = math.tanh %189 : vector<8x128xf32>
    %cst_76 = arith.constant 5.000000e-01 : f32
    %191 = vector.broadcast %cst_76 : f32 to vector<8x128xf32>
    %192 = arith.mulf %191, %190 : vector<8x128xf32>
    %cst_77 = arith.constant 5.000000e-01 : f32
    %193 = vector.broadcast %cst_77 : f32 to vector<8x128xf32>
    %194 = arith.addf %192, %193 : vector<8x128xf32>
    %195 = vector.extract_strided_slice %178 {offsets = [0, 256], sizes = [8, 128], strides = [1, 1]} : vector<8x512xf32> to vector<8x128xf32>
    %196 = math.tanh %195 : vector<8x128xf32>
    %197 = vector.extract_strided_slice %178 {offsets = [0, 384], sizes = [8, 128], strides = [1, 1]} : vector<8x512xf32> to vector<8x128xf32>
    %cst_78 = arith.constant 5.000000e-01 : f32
    %198 = vector.broadcast %cst_78 : f32 to vector<8x128xf32>
    %199 = arith.mulf %198, %197 : vector<8x128xf32>
    %200 = math.tanh %199 : vector<8x128xf32>
    %cst_79 = arith.constant 5.000000e-01 : f32
    %201 = vector.broadcast %cst_79 : f32 to vector<8x128xf32>
    %202 = arith.mulf %201, %200 : vector<8x128xf32>
    %cst_80 = arith.constant 5.000000e-01 : f32
    %203 = vector.broadcast %cst_80 : f32 to vector<8x128xf32>
    %204 = arith.addf %202, %203 : vector<8x128xf32>
    %205 = arith.mulf %194, %174 : vector<8x128xf32>
    %206 = arith.mulf %186, %196 : vector<8x128xf32>
    %207 = arith.addf %205, %206 : vector<8x128xf32>
    %208 = math.tanh %207 : vector<8x128xf32>
    %209 = arith.mulf %204, %208 : vector<8x128xf32>
    %210 = vector.extract_strided_slice %171 {offsets = [8, 0], sizes = [8, 512], strides = [1, 1]} : vector<64x512xf32> to vector<8x512xf32>
    %211 = arith.truncf %209 : vector<8x128xf32> to vector<8x128xbf16>
    %cst_81 = arith.constant dense<0.000000e+00> : vector<8x512xf32>
    %212 = tpu.matmul %211, %172, %cst_81 {dimension_numbers = #tpu.dot_dimension_numbers<[1], [0], [0], [1], [0, 0, 1, 1], [], []>} : vector<8x128xbf16>, vector<128x512xbf16>, vector<8x512xf32> -> vector<8x512xf32>
    %213 = arith.addf %210, %212 : vector<8x512xf32>
    %214 = vector.extract_strided_slice %213 {offsets = [0, 0], sizes = [8, 128], strides = [1, 1]} : vector<8x512xf32> to vector<8x128xf32>
    %cst_82 = arith.constant 5.000000e-01 : f32
    %215 = vector.broadcast %cst_82 : f32 to vector<8x128xf32>
    %216 = arith.mulf %215, %214 : vector<8x128xf32>
    %217 = math.tanh %216 : vector<8x128xf32>
    %cst_83 = arith.constant 5.000000e-01 : f32
    %218 = vector.broadcast %cst_83 : f32 to vector<8x128xf32>
    %219 = arith.mulf %218, %217 : vector<8x128xf32>
    %cst_84 = arith.constant 5.000000e-01 : f32
    %220 = vector.broadcast %cst_84 : f32 to vector<8x128xf32>
    %221 = arith.addf %219, %220 : vector<8x128xf32>
    %222 = vector.extract_strided_slice %213 {offsets = [0, 128], sizes = [8, 128], strides = [1, 1]} : vector<8x512xf32> to vector<8x128xf32>
    %cst_85 = arith.constant 5.000000e-01 : f32
    %223 = vector.broadcast %cst_85 : f32 to vector<8x128xf32>
    %224 = arith.mulf %223, %222 : vector<8x128xf32>
    %225 = math.tanh %224 : vector<8x128xf32>
    %cst_86 = arith.constant 5.000000e-01 : f32
    %226 = vector.broadcast %cst_86 : f32 to vector<8x128xf32>
    %227 = arith.mulf %226, %225 : vector<8x128xf32>
    %cst_87 = arith.constant 5.000000e-01 : f32
    %228 = vector.broadcast %cst_87 : f32 to vector<8x128xf32>
    %229 = arith.addf %227, %228 : vector<8x128xf32>
    %230 = vector.extract_strided_slice %213 {offsets = [0, 256], sizes = [8, 128], strides = [1, 1]} : vector<8x512xf32> to vector<8x128xf32>
    %231 = math.tanh %230 : vector<8x128xf32>
    %232 = vector.extract_strided_slice %213 {offsets = [0, 384], sizes = [8, 128], strides = [1, 1]} : vector<8x512xf32> to vector<8x128xf32>
    %cst_88 = arith.constant 5.000000e-01 : f32
    %233 = vector.broadcast %cst_88 : f32 to vector<8x128xf32>
    %234 = arith.mulf %233, %232 : vector<8x128xf32>
    %235 = math.tanh %234 : vector<8x128xf32>
    %cst_89 = arith.constant 5.000000e-01 : f32
    %236 = vector.broadcast %cst_89 : f32 to vector<8x128xf32>
    %237 = arith.mulf %236, %235 : vector<8x128xf32>
    %cst_90 = arith.constant 5.000000e-01 : f32
    %238 = vector.broadcast %cst_90 : f32 to vector<8x128xf32>
    %239 = arith.addf %237, %238 : vector<8x128xf32>
    %240 = arith.mulf %229, %207 : vector<8x128xf32>
    %241 = arith.mulf %221, %231 : vector<8x128xf32>
    %242 = arith.addf %240, %241 : vector<8x128xf32>
    %243 = math.tanh %242 : vector<8x128xf32>
    %244 = arith.mulf %239, %243 : vector<8x128xf32>
    %245 = vector.extract_strided_slice %171 {offsets = [16, 0], sizes = [8, 512], strides = [1, 1]} : vector<64x512xf32> to vector<8x512xf32>
    %246 = arith.truncf %244 : vector<8x128xf32> to vector<8x128xbf16>
    %cst_91 = arith.constant dense<0.000000e+00> : vector<8x512xf32>
    %247 = tpu.matmul %246, %172, %cst_91 {dimension_numbers = #tpu.dot_dimension_numbers<[1], [0], [0], [1], [0, 0, 1, 1], [], []>} : vector<8x128xbf16>, vector<128x512xbf16>, vector<8x512xf32> -> vector<8x512xf32>
    %248 = arith.addf %245, %247 : vector<8x512xf32>
    %249 = vector.extract_strided_slice %248 {offsets = [0, 0], sizes = [8, 128], strides = [1, 1]} : vector<8x512xf32> to vector<8x128xf32>
    %cst_92 = arith.constant 5.000000e-01 : f32
    %250 = vector.broadcast %cst_92 : f32 to vector<8x128xf32>
    %251 = arith.mulf %250, %249 : vector<8x128xf32>
    %252 = math.tanh %251 : vector<8x128xf32>
    %cst_93 = arith.constant 5.000000e-01 : f32
    %253 = vector.broadcast %cst_93 : f32 to vector<8x128xf32>
    %254 = arith.mulf %253, %252 : vector<8x128xf32>
    %cst_94 = arith.constant 5.000000e-01 : f32
    %255 = vector.broadcast %cst_94 : f32 to vector<8x128xf32>
    %256 = arith.addf %254, %255 : vector<8x128xf32>
    %257 = vector.extract_strided_slice %248 {offsets = [0, 128], sizes = [8, 128], strides = [1, 1]} : vector<8x512xf32> to vector<8x128xf32>
    %cst_95 = arith.constant 5.000000e-01 : f32
    %258 = vector.broadcast %cst_95 : f32 to vector<8x128xf32>
    %259 = arith.mulf %258, %257 : vector<8x128xf32>
    %260 = math.tanh %259 : vector<8x128xf32>
    %cst_96 = arith.constant 5.000000e-01 : f32
    %261 = vector.broadcast %cst_96 : f32 to vector<8x128xf32>
    %262 = arith.mulf %261, %260 : vector<8x128xf32>
    %cst_97 = arith.constant 5.000000e-01 : f32
    %263 = vector.broadcast %cst_97 : f32 to vector<8x128xf32>
    %264 = arith.addf %262, %263 : vector<8x128xf32>
    %265 = vector.extract_strided_slice %248 {offsets = [0, 256], sizes = [8, 128], strides = [1, 1]} : vector<8x512xf32> to vector<8x128xf32>
    %266 = math.tanh %265 : vector<8x128xf32>
    %267 = vector.extract_strided_slice %248 {offsets = [0, 384], sizes = [8, 128], strides = [1, 1]} : vector<8x512xf32> to vector<8x128xf32>
    %cst_98 = arith.constant 5.000000e-01 : f32
    %268 = vector.broadcast %cst_98 : f32 to vector<8x128xf32>
    %269 = arith.mulf %268, %267 : vector<8x128xf32>
    %270 = math.tanh %269 : vector<8x128xf32>
    %cst_99 = arith.constant 5.000000e-01 : f32
    %271 = vector.broadcast %cst_99 : f32 to vector<8x128xf32>
    %272 = arith.mulf %271, %270 : vector<8x128xf32>
    %cst_100 = arith.constant 5.000000e-01 : f32
    %273 = vector.broadcast %cst_100 : f32 to vector<8x128xf32>
    %274 = arith.addf %272, %273 : vector<8x128xf32>
    %275 = arith.mulf %264, %242 : vector<8x128xf32>
    %276 = arith.mulf %256, %266 : vector<8x128xf32>
    %277 = arith.addf %275, %276 : vector<8x128xf32>
    %278 = math.tanh %277 : vector<8x128xf32>
    %279 = arith.mulf %274, %278 : vector<8x128xf32>
    %280 = vector.extract_strided_slice %171 {offsets = [24, 0], sizes = [8, 512], strides = [1, 1]} : vector<64x512xf32> to vector<8x512xf32>
    %281 = arith.truncf %279 : vector<8x128xf32> to vector<8x128xbf16>
    %cst_101 = arith.constant dense<0.000000e+00> : vector<8x512xf32>
    %282 = tpu.matmul %281, %172, %cst_101 {dimension_numbers = #tpu.dot_dimension_numbers<[1], [0], [0], [1], [0, 0, 1, 1], [], []>} : vector<8x128xbf16>, vector<128x512xbf16>, vector<8x512xf32> -> vector<8x512xf32>
    %283 = arith.addf %280, %282 : vector<8x512xf32>
    %284 = vector.extract_strided_slice %283 {offsets = [0, 0], sizes = [8, 128], strides = [1, 1]} : vector<8x512xf32> to vector<8x128xf32>
    %cst_102 = arith.constant 5.000000e-01 : f32
    %285 = vector.broadcast %cst_102 : f32 to vector<8x128xf32>
    %286 = arith.mulf %285, %284 : vector<8x128xf32>
    %287 = math.tanh %286 : vector<8x128xf32>
    %cst_103 = arith.constant 5.000000e-01 : f32
    %288 = vector.broadcast %cst_103 : f32 to vector<8x128xf32>
    %289 = arith.mulf %288, %287 : vector<8x128xf32>
    %cst_104 = arith.constant 5.000000e-01 : f32
    %290 = vector.broadcast %cst_104 : f32 to vector<8x128xf32>
    %291 = arith.addf %289, %290 : vector<8x128xf32>
    %292 = vector.extract_strided_slice %283 {offsets = [0, 128], sizes = [8, 128], strides = [1, 1]} : vector<8x512xf32> to vector<8x128xf32>
    %cst_105 = arith.constant 5.000000e-01 : f32
    %293 = vector.broadcast %cst_105 : f32 to vector<8x128xf32>
    %294 = arith.mulf %293, %292 : vector<8x128xf32>
    %295 = math.tanh %294 : vector<8x128xf32>
    %cst_106 = arith.constant 5.000000e-01 : f32
    %296 = vector.broadcast %cst_106 : f32 to vector<8x128xf32>
    %297 = arith.mulf %296, %295 : vector<8x128xf32>
    %cst_107 = arith.constant 5.000000e-01 : f32
    %298 = vector.broadcast %cst_107 : f32 to vector<8x128xf32>
    %299 = arith.addf %297, %298 : vector<8x128xf32>
    %300 = vector.extract_strided_slice %283 {offsets = [0, 256], sizes = [8, 128], strides = [1, 1]} : vector<8x512xf32> to vector<8x128xf32>
    %301 = math.tanh %300 : vector<8x128xf32>
    %302 = vector.extract_strided_slice %283 {offsets = [0, 384], sizes = [8, 128], strides = [1, 1]} : vector<8x512xf32> to vector<8x128xf32>
    %cst_108 = arith.constant 5.000000e-01 : f32
    %303 = vector.broadcast %cst_108 : f32 to vector<8x128xf32>
    %304 = arith.mulf %303, %302 : vector<8x128xf32>
    %305 = math.tanh %304 : vector<8x128xf32>
    %cst_109 = arith.constant 5.000000e-01 : f32
    %306 = vector.broadcast %cst_109 : f32 to vector<8x128xf32>
    %307 = arith.mulf %306, %305 : vector<8x128xf32>
    %cst_110 = arith.constant 5.000000e-01 : f32
    %308 = vector.broadcast %cst_110 : f32 to vector<8x128xf32>
    %309 = arith.addf %307, %308 : vector<8x128xf32>
    %310 = arith.mulf %299, %277 : vector<8x128xf32>
    %311 = arith.mulf %291, %301 : vector<8x128xf32>
    %312 = arith.addf %310, %311 : vector<8x128xf32>
    %313 = math.tanh %312 : vector<8x128xf32>
    %314 = arith.mulf %309, %313 : vector<8x128xf32>
    %315 = vector.extract_strided_slice %171 {offsets = [32, 0], sizes = [8, 512], strides = [1, 1]} : vector<64x512xf32> to vector<8x512xf32>
    %316 = arith.truncf %314 : vector<8x128xf32> to vector<8x128xbf16>
    %cst_111 = arith.constant dense<0.000000e+00> : vector<8x512xf32>
    %317 = tpu.matmul %316, %172, %cst_111 {dimension_numbers = #tpu.dot_dimension_numbers<[1], [0], [0], [1], [0, 0, 1, 1], [], []>} : vector<8x128xbf16>, vector<128x512xbf16>, vector<8x512xf32> -> vector<8x512xf32>
    %318 = arith.addf %315, %317 : vector<8x512xf32>
    %319 = vector.extract_strided_slice %318 {offsets = [0, 0], sizes = [8, 128], strides = [1, 1]} : vector<8x512xf32> to vector<8x128xf32>
    %cst_112 = arith.constant 5.000000e-01 : f32
    %320 = vector.broadcast %cst_112 : f32 to vector<8x128xf32>
    %321 = arith.mulf %320, %319 : vector<8x128xf32>
    %322 = math.tanh %321 : vector<8x128xf32>
    %cst_113 = arith.constant 5.000000e-01 : f32
    %323 = vector.broadcast %cst_113 : f32 to vector<8x128xf32>
    %324 = arith.mulf %323, %322 : vector<8x128xf32>
    %cst_114 = arith.constant 5.000000e-01 : f32
    %325 = vector.broadcast %cst_114 : f32 to vector<8x128xf32>
    %326 = arith.addf %324, %325 : vector<8x128xf32>
    %327 = vector.extract_strided_slice %318 {offsets = [0, 128], sizes = [8, 128], strides = [1, 1]} : vector<8x512xf32> to vector<8x128xf32>
    %cst_115 = arith.constant 5.000000e-01 : f32
    %328 = vector.broadcast %cst_115 : f32 to vector<8x128xf32>
    %329 = arith.mulf %328, %327 : vector<8x128xf32>
    %330 = math.tanh %329 : vector<8x128xf32>
    %cst_116 = arith.constant 5.000000e-01 : f32
    %331 = vector.broadcast %cst_116 : f32 to vector<8x128xf32>
    %332 = arith.mulf %331, %330 : vector<8x128xf32>
    %cst_117 = arith.constant 5.000000e-01 : f32
    %333 = vector.broadcast %cst_117 : f32 to vector<8x128xf32>
    %334 = arith.addf %332, %333 : vector<8x128xf32>
    %335 = vector.extract_strided_slice %318 {offsets = [0, 256], sizes = [8, 128], strides = [1, 1]} : vector<8x512xf32> to vector<8x128xf32>
    %336 = math.tanh %335 : vector<8x128xf32>
    %337 = vector.extract_strided_slice %318 {offsets = [0, 384], sizes = [8, 128], strides = [1, 1]} : vector<8x512xf32> to vector<8x128xf32>
    %cst_118 = arith.constant 5.000000e-01 : f32
    %338 = vector.broadcast %cst_118 : f32 to vector<8x128xf32>
    %339 = arith.mulf %338, %337 : vector<8x128xf32>
    %340 = math.tanh %339 : vector<8x128xf32>
    %cst_119 = arith.constant 5.000000e-01 : f32
    %341 = vector.broadcast %cst_119 : f32 to vector<8x128xf32>
    %342 = arith.mulf %341, %340 : vector<8x128xf32>
    %cst_120 = arith.constant 5.000000e-01 : f32
    %343 = vector.broadcast %cst_120 : f32 to vector<8x128xf32>
    %344 = arith.addf %342, %343 : vector<8x128xf32>
    %345 = arith.mulf %334, %312 : vector<8x128xf32>
    %346 = arith.mulf %326, %336 : vector<8x128xf32>
    %347 = arith.addf %345, %346 : vector<8x128xf32>
    %348 = math.tanh %347 : vector<8x128xf32>
    %349 = arith.mulf %344, %348 : vector<8x128xf32>
    %350 = vector.extract_strided_slice %171 {offsets = [40, 0], sizes = [8, 512], strides = [1, 1]} : vector<64x512xf32> to vector<8x512xf32>
    %351 = arith.truncf %349 : vector<8x128xf32> to vector<8x128xbf16>
    %cst_121 = arith.constant dense<0.000000e+00> : vector<8x512xf32>
    %352 = tpu.matmul %351, %172, %cst_121 {dimension_numbers = #tpu.dot_dimension_numbers<[1], [0], [0], [1], [0, 0, 1, 1], [], []>} : vector<8x128xbf16>, vector<128x512xbf16>, vector<8x512xf32> -> vector<8x512xf32>
    %353 = arith.addf %350, %352 : vector<8x512xf32>
    %354 = vector.extract_strided_slice %353 {offsets = [0, 0], sizes = [8, 128], strides = [1, 1]} : vector<8x512xf32> to vector<8x128xf32>
    %cst_122 = arith.constant 5.000000e-01 : f32
    %355 = vector.broadcast %cst_122 : f32 to vector<8x128xf32>
    %356 = arith.mulf %355, %354 : vector<8x128xf32>
    %357 = math.tanh %356 : vector<8x128xf32>
    %cst_123 = arith.constant 5.000000e-01 : f32
    %358 = vector.broadcast %cst_123 : f32 to vector<8x128xf32>
    %359 = arith.mulf %358, %357 : vector<8x128xf32>
    %cst_124 = arith.constant 5.000000e-01 : f32
    %360 = vector.broadcast %cst_124 : f32 to vector<8x128xf32>
    %361 = arith.addf %359, %360 : vector<8x128xf32>
    %362 = vector.extract_strided_slice %353 {offsets = [0, 128], sizes = [8, 128], strides = [1, 1]} : vector<8x512xf32> to vector<8x128xf32>
    %cst_125 = arith.constant 5.000000e-01 : f32
    %363 = vector.broadcast %cst_125 : f32 to vector<8x128xf32>
    %364 = arith.mulf %363, %362 : vector<8x128xf32>
    %365 = math.tanh %364 : vector<8x128xf32>
    %cst_126 = arith.constant 5.000000e-01 : f32
    %366 = vector.broadcast %cst_126 : f32 to vector<8x128xf32>
    %367 = arith.mulf %366, %365 : vector<8x128xf32>
    %cst_127 = arith.constant 5.000000e-01 : f32
    %368 = vector.broadcast %cst_127 : f32 to vector<8x128xf32>
    %369 = arith.addf %367, %368 : vector<8x128xf32>
    %370 = vector.extract_strided_slice %353 {offsets = [0, 256], sizes = [8, 128], strides = [1, 1]} : vector<8x512xf32> to vector<8x128xf32>
    %371 = math.tanh %370 : vector<8x128xf32>
    %372 = vector.extract_strided_slice %353 {offsets = [0, 384], sizes = [8, 128], strides = [1, 1]} : vector<8x512xf32> to vector<8x128xf32>
    %cst_128 = arith.constant 5.000000e-01 : f32
    %373 = vector.broadcast %cst_128 : f32 to vector<8x128xf32>
    %374 = arith.mulf %373, %372 : vector<8x128xf32>
    %375 = math.tanh %374 : vector<8x128xf32>
    %cst_129 = arith.constant 5.000000e-01 : f32
    %376 = vector.broadcast %cst_129 : f32 to vector<8x128xf32>
    %377 = arith.mulf %376, %375 : vector<8x128xf32>
    %cst_130 = arith.constant 5.000000e-01 : f32
    %378 = vector.broadcast %cst_130 : f32 to vector<8x128xf32>
    %379 = arith.addf %377, %378 : vector<8x128xf32>
    %380 = arith.mulf %369, %347 : vector<8x128xf32>
    %381 = arith.mulf %361, %371 : vector<8x128xf32>
    %382 = arith.addf %380, %381 : vector<8x128xf32>
    %383 = math.tanh %382 : vector<8x128xf32>
    %384 = arith.mulf %379, %383 : vector<8x128xf32>
    %385 = vector.extract_strided_slice %171 {offsets = [48, 0], sizes = [8, 512], strides = [1, 1]} : vector<64x512xf32> to vector<8x512xf32>
    %386 = arith.truncf %384 : vector<8x128xf32> to vector<8x128xbf16>
    %cst_131 = arith.constant dense<0.000000e+00> : vector<8x512xf32>
    %387 = tpu.matmul %386, %172, %cst_131 {dimension_numbers = #tpu.dot_dimension_numbers<[1], [0], [0], [1], [0, 0, 1, 1], [], []>} : vector<8x128xbf16>, vector<128x512xbf16>, vector<8x512xf32> -> vector<8x512xf32>
    %388 = arith.addf %385, %387 : vector<8x512xf32>
    %389 = vector.extract_strided_slice %388 {offsets = [0, 0], sizes = [8, 128], strides = [1, 1]} : vector<8x512xf32> to vector<8x128xf32>
    %cst_132 = arith.constant 5.000000e-01 : f32
    %390 = vector.broadcast %cst_132 : f32 to vector<8x128xf32>
    %391 = arith.mulf %390, %389 : vector<8x128xf32>
    %392 = math.tanh %391 : vector<8x128xf32>
    %cst_133 = arith.constant 5.000000e-01 : f32
    %393 = vector.broadcast %cst_133 : f32 to vector<8x128xf32>
    %394 = arith.mulf %393, %392 : vector<8x128xf32>
    %cst_134 = arith.constant 5.000000e-01 : f32
    %395 = vector.broadcast %cst_134 : f32 to vector<8x128xf32>
    %396 = arith.addf %394, %395 : vector<8x128xf32>
    %397 = vector.extract_strided_slice %388 {offsets = [0, 128], sizes = [8, 128], strides = [1, 1]} : vector<8x512xf32> to vector<8x128xf32>
    %cst_135 = arith.constant 5.000000e-01 : f32
    %398 = vector.broadcast %cst_135 : f32 to vector<8x128xf32>
    %399 = arith.mulf %398, %397 : vector<8x128xf32>
    %400 = math.tanh %399 : vector<8x128xf32>
    %cst_136 = arith.constant 5.000000e-01 : f32
    %401 = vector.broadcast %cst_136 : f32 to vector<8x128xf32>
    %402 = arith.mulf %401, %400 : vector<8x128xf32>
    %cst_137 = arith.constant 5.000000e-01 : f32
    %403 = vector.broadcast %cst_137 : f32 to vector<8x128xf32>
    %404 = arith.addf %402, %403 : vector<8x128xf32>
    %405 = vector.extract_strided_slice %388 {offsets = [0, 256], sizes = [8, 128], strides = [1, 1]} : vector<8x512xf32> to vector<8x128xf32>
    %406 = math.tanh %405 : vector<8x128xf32>
    %407 = vector.extract_strided_slice %388 {offsets = [0, 384], sizes = [8, 128], strides = [1, 1]} : vector<8x512xf32> to vector<8x128xf32>
    %cst_138 = arith.constant 5.000000e-01 : f32
    %408 = vector.broadcast %cst_138 : f32 to vector<8x128xf32>
    %409 = arith.mulf %408, %407 : vector<8x128xf32>
    %410 = math.tanh %409 : vector<8x128xf32>
    %cst_139 = arith.constant 5.000000e-01 : f32
    %411 = vector.broadcast %cst_139 : f32 to vector<8x128xf32>
    %412 = arith.mulf %411, %410 : vector<8x128xf32>
    %cst_140 = arith.constant 5.000000e-01 : f32
    %413 = vector.broadcast %cst_140 : f32 to vector<8x128xf32>
    %414 = arith.addf %412, %413 : vector<8x128xf32>
    %415 = arith.mulf %404, %382 : vector<8x128xf32>
    %416 = arith.mulf %396, %406 : vector<8x128xf32>
    %417 = arith.addf %415, %416 : vector<8x128xf32>
    %418 = math.tanh %417 : vector<8x128xf32>
    %419 = arith.mulf %414, %418 : vector<8x128xf32>
    %420 = vector.extract_strided_slice %171 {offsets = [56, 0], sizes = [8, 512], strides = [1, 1]} : vector<64x512xf32> to vector<8x512xf32>
    %421 = arith.truncf %419 : vector<8x128xf32> to vector<8x128xbf16>
    %cst_141 = arith.constant dense<0.000000e+00> : vector<8x512xf32>
    %422 = tpu.matmul %421, %172, %cst_141 {dimension_numbers = #tpu.dot_dimension_numbers<[1], [0], [0], [1], [0, 0, 1, 1], [], []>} : vector<8x128xbf16>, vector<128x512xbf16>, vector<8x512xf32> -> vector<8x512xf32>
    %423 = arith.addf %420, %422 : vector<8x512xf32>
    %424 = vector.extract_strided_slice %423 {offsets = [0, 0], sizes = [8, 128], strides = [1, 1]} : vector<8x512xf32> to vector<8x128xf32>
    %cst_142 = arith.constant 5.000000e-01 : f32
    %425 = vector.broadcast %cst_142 : f32 to vector<8x128xf32>
    %426 = arith.mulf %425, %424 : vector<8x128xf32>
    %427 = math.tanh %426 : vector<8x128xf32>
    %cst_143 = arith.constant 5.000000e-01 : f32
    %428 = vector.broadcast %cst_143 : f32 to vector<8x128xf32>
    %429 = arith.mulf %428, %427 : vector<8x128xf32>
    %cst_144 = arith.constant 5.000000e-01 : f32
    %430 = vector.broadcast %cst_144 : f32 to vector<8x128xf32>
    %431 = arith.addf %429, %430 : vector<8x128xf32>
    %432 = vector.extract_strided_slice %423 {offsets = [0, 128], sizes = [8, 128], strides = [1, 1]} : vector<8x512xf32> to vector<8x128xf32>
    %cst_145 = arith.constant 5.000000e-01 : f32
    %433 = vector.broadcast %cst_145 : f32 to vector<8x128xf32>
    %434 = arith.mulf %433, %432 : vector<8x128xf32>
    %435 = math.tanh %434 : vector<8x128xf32>
    %cst_146 = arith.constant 5.000000e-01 : f32
    %436 = vector.broadcast %cst_146 : f32 to vector<8x128xf32>
    %437 = arith.mulf %436, %435 : vector<8x128xf32>
    %cst_147 = arith.constant 5.000000e-01 : f32
    %438 = vector.broadcast %cst_147 : f32 to vector<8x128xf32>
    %439 = arith.addf %437, %438 : vector<8x128xf32>
    %440 = vector.extract_strided_slice %423 {offsets = [0, 256], sizes = [8, 128], strides = [1, 1]} : vector<8x512xf32> to vector<8x128xf32>
    %441 = math.tanh %440 : vector<8x128xf32>
    %442 = vector.extract_strided_slice %423 {offsets = [0, 384], sizes = [8, 128], strides = [1, 1]} : vector<8x512xf32> to vector<8x128xf32>
    %cst_148 = arith.constant 5.000000e-01 : f32
    %443 = vector.broadcast %cst_148 : f32 to vector<8x128xf32>
    %444 = arith.mulf %443, %442 : vector<8x128xf32>
    %445 = math.tanh %444 : vector<8x128xf32>
    %cst_149 = arith.constant 5.000000e-01 : f32
    %446 = vector.broadcast %cst_149 : f32 to vector<8x128xf32>
    %447 = arith.mulf %446, %445 : vector<8x128xf32>
    %cst_150 = arith.constant 5.000000e-01 : f32
    %448 = vector.broadcast %cst_150 : f32 to vector<8x128xf32>
    %449 = arith.addf %447, %448 : vector<8x128xf32>
    %450 = arith.mulf %439, %417 : vector<8x128xf32>
    %451 = arith.mulf %431, %441 : vector<8x128xf32>
    %452 = arith.addf %450, %451 : vector<8x128xf32>
    %453 = math.tanh %452 : vector<8x128xf32>
    %454 = arith.mulf %449, %453 : vector<8x128xf32>
    %455 = arith.truncf %158 : vector<8x128xf32> to vector<8x128xbf16>
    %c0_151 = arith.constant 0 : index
    %c0_152 = arith.constant 0 : index
    %456 = vector.load %arg22[%c0_151, %c0_152] : memref<128x256xbf16, #tpu.memory_space<vmem>>, vector<128x256xbf16>
    %cst_153 = arith.constant dense<0.000000e+00> : vector<8x256xf32>
    %457 = tpu.matmul %455, %456, %cst_153 {dimension_numbers = #tpu.dot_dimension_numbers<[1], [0], [0], [1], [0, 0, 1, 1], [], []>} : vector<8x128xbf16>, vector<128x256xbf16>, vector<8x256xf32> -> vector<8x256xf32>
    %458 = arith.truncf %12 : vector<8x128xf32> to vector<8x128xbf16>
    %c0_154 = arith.constant 0 : index
    %c0_155 = arith.constant 0 : index
    %459 = vector.load %arg23[%c0_154, %c0_155] : memref<128x256xbf16, #tpu.memory_space<vmem>>, vector<128x256xbf16>
    %cst_156 = arith.constant dense<0.000000e+00> : vector<8x256xf32>
    %460 = tpu.matmul %458, %459, %cst_156 {dimension_numbers = #tpu.dot_dimension_numbers<[1], [0], [0], [1], [0, 0, 1, 1], [], []>} : vector<8x128xbf16>, vector<128x256xbf16>, vector<8x256xf32> -> vector<8x256xf32>
    %461 = arith.addf %457, %460 : vector<8x256xf32>
    %462 = arith.truncf %13 : vector<8x128xf32> to vector<8x128xbf16>
    %c0_157 = arith.constant 0 : index
    %c0_158 = arith.constant 0 : index
    %463 = vector.load %arg24[%c0_157, %c0_158] : memref<128x256xbf16, #tpu.memory_space<vmem>>, vector<128x256xbf16>
    %cst_159 = arith.constant dense<0.000000e+00> : vector<8x256xf32>
    %464 = tpu.matmul %462, %463, %cst_159 {dimension_numbers = #tpu.dot_dimension_numbers<[1], [0], [0], [1], [0, 0, 1, 1], [], []>} : vector<8x128xbf16>, vector<128x256xbf16>, vector<8x256xf32> -> vector<8x256xf32>
    %465 = arith.addf %461, %464 : vector<8x256xf32>
    %466 = arith.truncf %19 : vector<8x128xf32> to vector<8x128xbf16>
    %c0_160 = arith.constant 0 : index
    %c0_161 = arith.constant 0 : index
    %467 = vector.load %arg25[%c0_160, %c0_161] : memref<128x256xbf16, #tpu.memory_space<vmem>>, vector<128x256xbf16>
    %cst_162 = arith.constant dense<0.000000e+00> : vector<8x256xf32>
    %468 = tpu.matmul %466, %467, %cst_162 {dimension_numbers = #tpu.dot_dimension_numbers<[1], [0], [0], [1], [0, 0, 1, 1], [], []>} : vector<8x128xbf16>, vector<128x256xbf16>, vector<8x256xf32> -> vector<8x256xf32>
    %469 = arith.addf %465, %468 : vector<8x256xf32>
    %470 = arith.truncf %454 : vector<8x128xf32> to vector<8x128xbf16>
    %c0_163 = arith.constant 0 : index
    %c0_164 = arith.constant 0 : index
    %471 = vector.load %arg26[%c0_163, %c0_164] : memref<128x256xbf16, #tpu.memory_space<vmem>>, vector<128x256xbf16>
    %cst_165 = arith.constant dense<0.000000e+00> : vector<8x256xf32>
    %472 = tpu.matmul %470, %471, %cst_165 {dimension_numbers = #tpu.dot_dimension_numbers<[1], [0], [0], [1], [0, 0, 1, 1], [], []>} : vector<8x128xbf16>, vector<128x256xbf16>, vector<8x256xf32> -> vector<8x256xf32>
    %473 = arith.addf %469, %472 : vector<8x256xf32>
    %c0_166 = arith.constant 0 : index
    %c0_167 = arith.constant 0 : index
    %474 = vector.load %arg28[%c0_166, %c0_167] : memref<1x256xf32, #tpu.memory_space<vmem>>, vector<1x256xf32>
    %475 = vector.broadcast %474 : vector<1x256xf32> to vector<8x256xf32>
    %476 = arith.addf %473, %475 : vector<8x256xf32>
    %c0_168 = arith.constant 0 : index
    %c0_169 = arith.constant 0 : index
    %477 = vector.load %arg4[%c0_168, %c0_169] : memref<8x6xf32, #tpu.memory_space<vmem>>, vector<8x6xf32>
    %c0_170 = arith.constant 0 : index
    %c0_171 = arith.constant 0 : index
    %478 = vector.load %arg27[%c0_170, %c0_171] : memref<6x256xf32, #tpu.memory_space<vmem>>, vector<6x256xf32>
    %479 = vector.extract_strided_slice %477 {offsets = [0, 0], sizes = [8, 1], strides = [1, 1]} : vector<8x6xf32> to vector<8x1xf32>
    %480 = vector.extract_strided_slice %478 {offsets = [0, 0], sizes = [1, 256], strides = [1, 1]} : vector<6x256xf32> to vector<1x256xf32>
    %481 = vector.broadcast %479 : vector<8x1xf32> to vector<8x256xf32>
    %482 = vector.broadcast %480 : vector<1x256xf32> to vector<8x256xf32>
    %483 = arith.mulf %481, %482 : vector<8x256xf32>
    %484 = arith.addf %476, %483 : vector<8x256xf32>
    %485 = vector.extract_strided_slice %477 {offsets = [0, 1], sizes = [8, 1], strides = [1, 1]} : vector<8x6xf32> to vector<8x1xf32>
    %486 = vector.extract_strided_slice %478 {offsets = [1, 0], sizes = [1, 256], strides = [1, 1]} : vector<6x256xf32> to vector<1x256xf32>
    %487 = vector.broadcast %485 : vector<8x1xf32> to vector<8x256xf32>
    %488 = vector.broadcast %486 : vector<1x256xf32> to vector<8x256xf32>
    %489 = arith.mulf %487, %488 : vector<8x256xf32>
    %490 = arith.addf %484, %489 : vector<8x256xf32>
    %491 = vector.extract_strided_slice %477 {offsets = [0, 2], sizes = [8, 1], strides = [1, 1]} : vector<8x6xf32> to vector<8x1xf32>
    %492 = vector.extract_strided_slice %478 {offsets = [2, 0], sizes = [1, 256], strides = [1, 1]} : vector<6x256xf32> to vector<1x256xf32>
    %493 = vector.broadcast %491 : vector<8x1xf32> to vector<8x256xf32>
    %494 = vector.broadcast %492 : vector<1x256xf32> to vector<8x256xf32>
    %495 = arith.mulf %493, %494 : vector<8x256xf32>
    %496 = arith.addf %490, %495 : vector<8x256xf32>
    %497 = vector.extract_strided_slice %477 {offsets = [0, 3], sizes = [8, 1], strides = [1, 1]} : vector<8x6xf32> to vector<8x1xf32>
    %498 = vector.extract_strided_slice %478 {offsets = [3, 0], sizes = [1, 256], strides = [1, 1]} : vector<6x256xf32> to vector<1x256xf32>
    %499 = vector.broadcast %497 : vector<8x1xf32> to vector<8x256xf32>
    %500 = vector.broadcast %498 : vector<1x256xf32> to vector<8x256xf32>
    %501 = arith.mulf %499, %500 : vector<8x256xf32>
    %502 = arith.addf %496, %501 : vector<8x256xf32>
    %503 = vector.extract_strided_slice %477 {offsets = [0, 4], sizes = [8, 1], strides = [1, 1]} : vector<8x6xf32> to vector<8x1xf32>
    %504 = vector.extract_strided_slice %478 {offsets = [4, 0], sizes = [1, 256], strides = [1, 1]} : vector<6x256xf32> to vector<1x256xf32>
    %505 = vector.broadcast %503 : vector<8x1xf32> to vector<8x256xf32>
    %506 = vector.broadcast %504 : vector<1x256xf32> to vector<8x256xf32>
    %507 = arith.mulf %505, %506 : vector<8x256xf32>
    %508 = arith.addf %502, %507 : vector<8x256xf32>
    %509 = vector.extract_strided_slice %477 {offsets = [0, 5], sizes = [8, 1], strides = [1, 1]} : vector<8x6xf32> to vector<8x1xf32>
    %510 = vector.extract_strided_slice %478 {offsets = [5, 0], sizes = [1, 256], strides = [1, 1]} : vector<6x256xf32> to vector<1x256xf32>
    %511 = vector.broadcast %509 : vector<8x1xf32> to vector<8x256xf32>
    %512 = vector.broadcast %510 : vector<1x256xf32> to vector<8x256xf32>
    %513 = arith.mulf %511, %512 : vector<8x256xf32>
    %514 = arith.addf %508, %513 : vector<8x256xf32>
    %cst_172 = arith.constant 0.000000e+00 : f32
    %515 = vector.broadcast %cst_172 : f32 to vector<8x256xf32>
    %516 = arith.maximumf %514, %515 : vector<8x256xf32>
    %517 = arith.truncf %516 : vector<8x256xf32> to vector<8x256xbf16>
    %c0_173 = arith.constant 0 : index
    %c0_174 = arith.constant 0 : index
    %518 = vector.load %arg29[%c0_173, %c0_174] : memref<256x256xbf16, #tpu.memory_space<vmem>>, vector<256x256xbf16>
    %cst_175 = arith.constant dense<0.000000e+00> : vector<8x256xf32>
    %519 = tpu.matmul %517, %518, %cst_175 {dimension_numbers = #tpu.dot_dimension_numbers<[1], [0], [0], [1], [0, 0, 1, 1], [], []>} : vector<8x256xbf16>, vector<256x256xbf16>, vector<8x256xf32> -> vector<8x256xf32>
    %c0_176 = arith.constant 0 : index
    %c0_177 = arith.constant 0 : index
    %520 = vector.load %arg30[%c0_176, %c0_177] : memref<1x256xf32, #tpu.memory_space<vmem>>, vector<1x256xf32>
    %521 = vector.broadcast %520 : vector<1x256xf32> to vector<8x256xf32>
    %522 = arith.addf %519, %521 : vector<8x256xf32>
    %cst_178 = arith.constant 0.000000e+00 : f32
    %523 = vector.broadcast %cst_178 : f32 to vector<8x256xf32>
    %524 = arith.maximumf %522, %523 : vector<8x256xf32>
    %c0_179 = arith.constant 0 : index
    %c0_180 = arith.constant 0 : index
    %525 = vector.load %arg31[%c0_179, %c0_180] : memref<1x256xf32, #tpu.memory_space<vmem>>, vector<1x256xf32>
    %526 = vector.broadcast %525 : vector<1x256xf32> to vector<8x256xf32>
    %527 = arith.mulf %524, %526 : vector<8x256xf32>
    %cst_181 = arith.constant dense<0.000000e+00> : vector<8xf32>
    %528 = vector.multi_reduction <add>, %527, %cst_181 [1] : vector<8x256xf32> to vector<8xf32>
    %529 = vector.shape_cast %528 : vector<8xf32> to vector<8x1xf32>
    %c0_182 = arith.constant 0 : index
    %c0_183 = arith.constant 0 : index
    %530 = vector.load %arg32[%c0_182, %c0_183] : memref<1x1xf32, #tpu.memory_space<vmem>>, vector<1x1xf32>
    %531 = vector.broadcast %530 : vector<1x1xf32> to vector<8x1xf32>
    %532 = arith.addf %529, %531 : vector<8x1xf32>
    %c0_184 = arith.constant 0 : index
    %c0_185 = arith.constant 0 : index
    %533 = vector.load %arg33[%c0_184, %c0_185] : memref<8x1xf32, #tpu.memory_space<vmem>>, vector<8x1xf32>
    tpu.vector_store %arg33[%c0_184, %c0_185], %532 {strides = array<i32>} : memref<8x1xf32, #tpu.memory_space<vmem>>, vector<8x1xf32>,
    return
  }
  func.func @transform_0(%arg0: i32) -> (i32, i32) {
    %c0_i32 = arith.constant 0 : i32
    %c0_i32_0 = arith.constant 0 : i32
    return %arg0, %c0_i32 : i32, i32
  }
  func.func @transform_1(%arg0: i32) -> (i32, i32) {
    %c0_i32 = arith.constant 0 : i32
    %c0_i32_0 = arith.constant 0 : i32
    return %arg0, %c0_i32 : i32, i32
  }
  func.func @transform_2(%arg0: i32) -> (i32, i32) {
    %c0_i32 = arith.constant 0 : i32
    %c0_i32_0 = arith.constant 0 : i32
    return %arg0, %c0_i32 : i32, i32
  }
  func.func @transform_3(%arg0: i32) -> (i32, i32) {
    %c0_i32 = arith.constant 0 : i32
    %c0_i32_0 = arith.constant 0 : i32
    return %arg0, %c0_i32 : i32, i32
  }
  func.func @transform_4(%arg0: i32) -> (i32, i32, i32) {
    %c0_i32 = arith.constant 0 : i32
    %c0_i32_0 = arith.constant 0 : i32
    %c0_i32_1 = arith.constant 0 : i32
    return %c0_i32, %arg0, %c0_i32_0 : i32, i32, i32
  }
  func.func @transform_5(%arg0: i32) -> (i32, i32, i32) {
    %c0_i32 = arith.constant 0 : i32
    %c0_i32_0 = arith.constant 0 : i32
    %c0_i32_1 = arith.constant 0 : i32
    return %c0_i32, %arg0, %c0_i32_0 : i32, i32, i32
  }
  func.func @transform_6(%arg0: i32) -> (i32, i32) {
    %c0_i32 = arith.constant 0 : i32
    %c0_i32_0 = arith.constant 0 : i32
    %c0_i32_1 = arith.constant 0 : i32
    return %c0_i32, %c0_i32_0 : i32, i32
  }
  func.func @transform_7(%arg0: i32) -> (i32, i32) {
    %c0_i32 = arith.constant 0 : i32
    %c0_i32_0 = arith.constant 0 : i32
    %c0_i32_1 = arith.constant 0 : i32
    return %c0_i32, %c0_i32_0 : i32, i32
  }
  func.func @transform_8(%arg0: i32) -> (i32, i32) {
    %c0_i32 = arith.constant 0 : i32
    %c0_i32_0 = arith.constant 0 : i32
    %c0_i32_1 = arith.constant 0 : i32
    return %c0_i32, %c0_i32_0 : i32, i32
  }
  func.func @transform_9(%arg0: i32) -> (i32, i32) {
    %c0_i32 = arith.constant 0 : i32
    %c0_i32_0 = arith.constant 0 : i32
    %c0_i32_1 = arith.constant 0 : i32
    return %c0_i32, %c0_i32_0 : i32, i32
  }
  func.func @transform_10(%arg0: i32) -> (i32, i32) {
    %c0_i32 = arith.constant 0 : i32
    %c0_i32_0 = arith.constant 0 : i32
    %c0_i32_1 = arith.constant 0 : i32
    return %c0_i32, %c0_i32_0 : i32, i32
  }
  func.func @transform_11(%arg0: i32) -> (i32, i32) {
    %c0_i32 = arith.constant 0 : i32
    %c0_i32_0 = arith.constant 0 : i32
    %c0_i32_1 = arith.constant 0 : i32
    return %c0_i32, %c0_i32_0 : i32, i32
  }
  func.func @transform_12(%arg0: i32) -> (i32, i32) {
    %c0_i32 = arith.constant 0 : i32
    %c0_i32_0 = arith.constant 0 : i32
    %c0_i32_1 = arith.constant 0 : i32
    return %c0_i32, %c0_i32_0 : i32, i32
  }
  func.func @transform_13(%arg0: i32) -> (i32, i32) {
    %c0_i32 = arith.constant 0 : i32
    %c0_i32_0 = arith.constant 0 : i32
    %c0_i32_1 = arith.constant 0 : i32
    return %c0_i32, %c0_i32_0 : i32, i32
  }
  func.func @transform_14(%arg0: i32) -> (i32, i32) {
    %c0_i32 = arith.constant 0 : i32
    %c0_i32_0 = arith.constant 0 : i32
    %c0_i32_1 = arith.constant 0 : i32
    return %c0_i32, %c0_i32_0 : i32, i32
  }
  func.func @transform_15(%arg0: i32) -> (i32, i32) {
    %c0_i32 = arith.constant 0 : i32
    %c0_i32_0 = arith.constant 0 : i32
    %c0_i32_1 = arith.constant 0 : i32
    return %c0_i32, %c0_i32_0 : i32, i32
  }
  func.func @transform_16(%arg0: i32) -> (i32, i32) {
    %c0_i32 = arith.constant 0 : i32
    %c0_i32_0 = arith.constant 0 : i32
    %c0_i32_1 = arith.constant 0 : i32
    return %c0_i32, %c0_i32_0 : i32, i32
  }
  func.func @transform_17(%arg0: i32) -> (i32, i32) {
    %c0_i32 = arith.constant 0 : i32
    %c0_i32_0 = arith.constant 0 : i32
    %c0_i32_1 = arith.constant 0 : i32
    return %c0_i32, %c0_i32_0 : i32, i32
  }
  func.func @transform_18(%arg0: i32) -> (i32, i32) {
    %c0_i32 = arith.constant 0 : i32
    %c0_i32_0 = arith.constant 0 : i32
    %c0_i32_1 = arith.constant 0 : i32
    return %c0_i32, %c0_i32_0 : i32, i32
  }
  func.func @transform_19(%arg0: i32) -> (i32, i32) {
    %c0_i32 = arith.constant 0 : i32
    %c0_i32_0 = arith.constant 0 : i32
    %c0_i32_1 = arith.constant 0 : i32
    return %c0_i32, %c0_i32_0 : i32, i32
  }
  func.func @transform_20(%arg0: i32) -> (i32, i32) {
    %c0_i32 = arith.constant 0 : i32
    %c0_i32_0 = arith.constant 0 : i32
    %c0_i32_1 = arith.constant 0 : i32
    return %c0_i32, %c0_i32_0 : i32, i32
  }
  func.func @transform_21(%arg0: i32) -> (i32, i32) {
    %c0_i32 = arith.constant 0 : i32
    %c0_i32_0 = arith.constant 0 : i32
    %c0_i32_1 = arith.constant 0 : i32
    return %c0_i32, %c0_i32_0 : i32, i32
  }
  func.func @transform_22(%arg0: i32) -> (i32, i32) {
    %c0_i32 = arith.constant 0 : i32
    %c0_i32_0 = arith.constant 0 : i32
    %c0_i32_1 = arith.constant 0 : i32
    return %c0_i32, %c0_i32_0 : i32, i32
  }
  func.func @transform_23(%arg0: i32) -> (i32, i32) {
    %c0_i32 = arith.constant 0 : i32
    %c0_i32_0 = arith.constant 0 : i32
    %c0_i32_1 = arith.constant 0 : i32
    return %c0_i32, %c0_i32_0 : i32, i32
  }
  func.func @transform_24(%arg0: i32) -> (i32, i32) {
    %c0_i32 = arith.constant 0 : i32
    %c0_i32_0 = arith.constant 0 : i32
    %c0_i32_1 = arith.constant 0 : i32
    return %c0_i32, %c0_i32_0 : i32, i32
  }
  func.func @transform_25(%arg0: i32) -> (i32, i32) {
    %c0_i32 = arith.constant 0 : i32
    %c0_i32_0 = arith.constant 0 : i32
    %c0_i32_1 = arith.constant 0 : i32
    return %c0_i32, %c0_i32_0 : i32, i32
  }
  func.func @transform_26(%arg0: i32) -> (i32, i32) {
    %c0_i32 = arith.constant 0 : i32
    %c0_i32_0 = arith.constant 0 : i32
    %c0_i32_1 = arith.constant 0 : i32
    return %c0_i32, %c0_i32_0 : i32, i32
  }
  func.func @transform_27(%arg0: i32) -> (i32, i32) {
    %c0_i32 = arith.constant 0 : i32
    %c0_i32_0 = arith.constant 0 : i32
    %c0_i32_1 = arith.constant 0 : i32
    return %c0_i32, %c0_i32_0 : i32, i32
  }
  func.func @transform_28(%arg0: i32) -> (i32, i32) {
    %c0_i32 = arith.constant 0 : i32
    %c0_i32_0 = arith.constant 0 : i32
    %c0_i32_1 = arith.constant 0 : i32
    return %c0_i32, %c0_i32_0 : i32, i32
  }
  func.func @transform_29(%arg0: i32) -> (i32, i32) {
    %c0_i32 = arith.constant 0 : i32
    %c0_i32_0 = arith.constant 0 : i32
    %c0_i32_1 = arith.constant 0 : i32
    return %c0_i32, %c0_i32_0 : i32, i32
  }
  func.func @transform_30(%arg0: i32) -> (i32, i32) {
    %c0_i32 = arith.constant 0 : i32
    %c0_i32_0 = arith.constant 0 : i32
    %c0_i32_1 = arith.constant 0 : i32
    return %c0_i32, %c0_i32_0 : i32, i32
  }
  func.func @transform_31(%arg0: i32) -> (i32, i32) {
    %c0_i32 = arith.constant 0 : i32
    %c0_i32_0 = arith.constant 0 : i32
    %c0_i32_1 = arith.constant 0 : i32
    return %c0_i32, %c0_i32_0 : i32, i32
  }
  func.func @transform_32(%arg0: i32) -> (i32, i32) {
    %c0_i32 = arith.constant 0 : i32
    %c0_i32_0 = arith.constant 0 : i32
    return %arg0, %c0_i32 : i32, i32
  }
}

</mosaic_0001>

<llo_original>
// kernel: tpu_custom_call.1
$region0: #{tpu_custom_call.1}
  #allocation0 [shape = 'u32[]', space=smem, size = 0x4, offset = 0x4, fixed_abs, tag = 'smem constant byte address 0x4 - core index']
  #allocation1 [shape = 'u32[144,128]{1,0:T(1,128)}', space=vmem, size = 0x12000, scoped, tag = 'internal scratch']
  #allocation2 [shape = 'f32[1,1]{1,0:T(1,128)S(1)}', space=vmem, size = 0x200, scoped, tag = 'scoped memory for tpu_custom_call.1']
  %s0 = inlined_call_operand.smem [shape: u32[33], index: -1, kind: input, shape index: {}]
  %s1 = sld [smem:[%s0]]
  %s2 = scalar_lea.smem %s0, 1
  %s3 = sld [smem:[%s2]]
  %s4 = scalar_lea.smem %s0, 2
  %s5 = sld [smem:[%s4]]
  %s6 = scalar_lea.smem %s0, 3
  %s7 = sld [smem:[%s6]]
  %s8 = scalar_lea.smem %s0, 4
  %s9 = sld [smem:[%s8]]
  %s10 = scalar_lea.smem %s0, 5
  %s11 = sld [smem:[%s10]]
  %s12 = scalar_lea.smem %s0, 6
  %s13 = sld [smem:[%s12]]
  %s14 = scalar_lea.smem %s0, 7
  %s15 = sld [smem:[%s14]]
  %s16 = scalar_lea.smem %s0, 8
  %s17 = sld [smem:[%s16]]
  %s18 = scalar_lea.smem %s0, 9
  %s19 = sld [smem:[%s18]]
  %s20 = scalar_lea.smem %s0, 10
  %s21 = sld [smem:[%s20]]
  %s22 = scalar_lea.smem %s0, 11
  %s23 = sld [smem:[%s22]]
  %s24 = scalar_lea.smem %s0, 12
  %s25 = sld [smem:[%s24]]
  %s26 = scalar_lea.smem %s0, 13
  %s27 = sld [smem:[%s26]]
  %s28 = scalar_lea.smem %s0, 14
  %s29 = sld [smem:[%s28]]
  %s30 = scalar_lea.smem %s0, 15
  %s31 = sld [smem:[%s30]]
  %s32 = scalar_lea.smem %s0, 16
  %s33 = sld [smem:[%s32]]
  %s34 = scalar_lea.smem %s0, 17
  %s35 = sld [smem:[%s34]]
  %s36 = scalar_lea.smem %s0, 18
  %s37 = sld [smem:[%s36]]
  %s38 = scalar_lea.smem %s0, 19
  %s39 = sld [smem:[%s38]]
  %s40 = scalar_lea.smem %s0, 20
  %s41 = sld [smem:[%s40]]
  %s42 = scalar_lea.smem %s0, 21
  %s43 = sld [smem:[%s42]]
  %s44 = scalar_lea.smem %s0, 22
  %s45 = sld [smem:[%s44]]
  %s46 = scalar_lea.smem %s0, 23
  %s47 = sld [smem:[%s46]]
  %s48 = scalar_lea.smem %s0, 24
  %s49 = sld [smem:[%s48]]
  %s50 = scalar_lea.smem %s0, 25
  %s51 = sld [smem:[%s50]]
  %s52 = scalar_lea.smem %s0, 26
  %s53 = sld [smem:[%s52]]
  %s54 = scalar_lea.smem %s0, 27
  %s55 = sld [smem:[%s54]]
  %s56 = scalar_lea.smem %s0, 28
  %s57 = sld [smem:[%s56]]
  %s58 = scalar_lea.smem %s0, 29
  %s59 = sld [smem:[%s58]]
  %s60 = scalar_lea.smem %s0, 30
  %s61 = sld [smem:[%s60]]
  %s62 = scalar_lea.smem %s0, 31
  %s63 = sld [smem:[%s62]]
  %s64 = scalar_lea.smem %s0, 32
  %s65 = sld [smem:[%s64]]
  %s66 = sld [smem:[#allocation0]]
  $region230: #{tpu_custom_call.1} parent=0
    _
  %s68 = ssub.s32 1, %s66
  %s69 = scalar_select 0, %s68, %s66
  %v70 = vstv %s63
  %71 = vst [vmem:[#allocation2] sm:$0x1] %v70
  $region1: #{tpu_custom_call.1} parent=0
    #allocation3 [shape = 'u8[2048]{0}', space=vmem, size = 0x800, scoped, tag = 'input window, operand 1, single buffered']
    #allocation4 [shape = 's32[1]{0}', space=sflag, size = 0x4, scoped, tag = 'scoped memory for tpu_custom_call.1']
    #allocation5 [shape = 'u8[2048]{0}', space=vmem, size = 0x800, scoped, tag = 'input window, operand 2, single buffered']
    #allocation6 [shape = 's32[1]{0}', space=sflag, size = 0x4, scoped, tag = 'scoped memory for tpu_custom_call.1']
    #allocation7 [shape = 'u8[4096]{0}', space=vmem, size = 0x1000, scoped, tag = 'input window, operand 3, single buffered']
    #allocation8 [shape = 'u8[16384]{0}', space=vmem, size = 0x4000, scoped, tag = 'input window, operand 4, single buffered']
    #allocation9 [shape = 's32[1]{0}', space=sflag, size = 0x4, scoped, tag = 'scoped memory for tpu_custom_call.1']
    #allocation10 [shape = 'u8[16384]{0}', space=vmem, size = 0x4000, scoped, tag = 'input window, operand 5, single buffered']
    #allocation11 [shape = 'u8[16384]{0}', space=vmem, size = 0x4000, scoped, tag = 'input window, operand 6, single buffered']
    #allocation12 [shape = 's32[1]{0}', space=sflag, size = 0x4, scoped, tag = 'scoped memory for tpu_custom_call.1']
    #allocation13 [shape = 'u8[16384]{0}', space=vmem, size = 0x4000, scoped, tag = 'input window, operand 8, single buffered']
    #allocation14 [shape = 'u8[512]{0}', space=vmem, size = 0x400, scoped, tag = 'input window, operand 9, single buffered']
    #allocation15 [shape = 's32[1]{0}', space=sflag, size = 0x4, scoped, tag = 'scoped memory for tpu_custom_call.1']
    #allocation16 [shape = 'u8[32768]{0}', space=vmem, size = 0x8000, scoped, tag = 'input window, operand 10, single buffered']
    #allocation17 [shape = 'u8[512]{0}', space=vmem, size = 0x400, scoped, tag = 'input window, operand 11, single buffered']
    #allocation18 [shape = 's32[1]{0}', space=sflag, size = 0x4, scoped, tag = 'scoped memory for tpu_custom_call.1']
    #allocation19 [shape = 'u8[65536]{0}', space=vmem, size = 0x10000, scoped, tag = 'input window, operand 12, single buffered']
    #allocation20 [shape = 'u8[1024]{0}', space=vmem, size = 0x400, scoped, tag = 'input window, operand 13, single buffered']
    #allocation21 [shape = 's32[1]{0}', space=sflag, size = 0x4, scoped, tag = 'scoped memory for tpu_custom_call.1']
    #allocation22 [shape = 'u8[32768]{0}', space=vmem, size = 0x8000, scoped, tag = 'input window, operand 14, single buffered']
    #allocation23 [shape = 'u8[512]{0}', space=vmem, size = 0x400, scoped, tag = 'input window, operand 15, single buffered']
    #allocation24 [shape = 's32[1]{0}', space=sflag, size = 0x4, scoped, tag = 'scoped memory for tpu_custom_call.1']
    #allocation25 [shape = 'u8[1024]{0}', space=vmem, size = 0x400, scoped, tag = 'input window, operand 17, single buffered']
    #allocation26 [shape = 'u8[131072]{0}', space=vmem, size = 0x20000, scoped, tag = 'input window, operand 18, single buffered']
    #allocation27 [shape = 's32[1]{0}', space=sflag, size = 0x4, scoped, tag = 'scoped memory for tpu_custom_call.1']
    #allocation28 [shape = 'u8[131072]{0}', space=vmem, size = 0x20000, scoped, tag = 'input window, operand 19, single buffered']
    #allocation29 [shape = 'u8[2048]{0}', space=vmem, size = 0x800, scoped, tag = 'input window, operand 20, single buffered']
    #allocation30 [shape = 's32[1]{0}', space=sflag, size = 0x4, scoped, tag = 'scoped memory for tpu_custom_call.1']
    #allocation31 [shape = 'u8[65536]{0}', space=vmem, size = 0x10000, scoped, tag = 'input window, operand 22, single buffered']
    #allocation32 [shape = 'u8[65536]{0}', space=vmem, size = 0x10000, scoped, tag = 'input window, operand 23, single buffered']
    #allocation33 [shape = 's32[1]{0}', space=sflag, size = 0x4, scoped, tag = 'scoped memory for tpu_custom_call.1']
    #allocation34 [shape = 'u8[65536]{0}', space=vmem, size = 0x10000, scoped, tag = 'input window, operand 24, single buffered']
    #allocation35 [shape = 'u8[65536]{0}', space=vmem, size = 0x10000, scoped, tag = 'input window, operand 25, single buffered']
    #allocation36 [shape = 's32[1]{0}', space=sflag, size = 0x4, scoped, tag = 'scoped memory for tpu_custom_call.1']
    #allocation37 [shape = 'u8[131072]{0}', space=vmem, size = 0x20000, scoped, tag = 'input window, operand 28, single buffered']
    %72 = vsyncpa [#allocation4], 0
    %73 = vsyncpa [#allocation6], 0
    %74 = vsyncpa [#allocation9], 0
    %75 = vsyncpa [#allocation12], 0
    %76 = vsyncpa [#allocation15], 0
    %77 = vsyncpa [#allocation18], 0
    %78 = vsyncpa [#allocation21], 0
    %79 = vsyncpa [#allocation24], 0
    %80 = vsyncpa [#allocation27], 0
    %81 = vsyncpa [#allocation30], 0
    %82 = vsyncpa [#allocation33], 0
    %83 = vsyncpa [#allocation36], 0
    // Predicated region
    $region2: #{tpu_custom_call.1} parent=1 // pred_check
      _
    $region3: #{tpu_custom_call.1} parent=1 // pred_check_branch
      %85 = sbr.rel (0) target = $region5
    $region4: #{tpu_custom_call.1} parent=1 // pred_region
      _
    $region5: #{tpu_custom_call.1} parent=1 // pred_fallthru
      _
    // Predicated region
    $region6: #{tpu_custom_call.1} parent=1 // pred_check
      _
    $region7: #{tpu_custom_call.1} parent=1 // pred_check_branch
      %87 = sbr.rel (0) target = $region9
    $region8: #{tpu_custom_call.1} parent=1 // pred_region
      %s89 = ssub.s32 64, 64
      %90 = vsyncadd [#allocation4], %s89
      %s92 = sshll.u32 [#allocation3], 4
      %s93 = int_to_ptr.vmem [resolvable:$true] %s92
      %95 = dma.hbm_to_vmem [thread:$0]  %s3, 64, %s93, [#allocation4]
    $region9: #{tpu_custom_call.1} parent=1 // pred_fallthru
      _
    // Predicated region
    $region10: #{tpu_custom_call.1} parent=1 // pred_check
      _
    $region11: #{tpu_custom_call.1} parent=1 // pred_check_branch
      %97 = sbr.rel (0) target = $region13
    $region12: #{tpu_custom_call.1} parent=1 // pred_region
      %s99 = ssub.s32 64, 64
      %100 = vsyncadd [#allocation6], %s99
      %s102 = sshll.u32 [#allocation5], 4
      %s103 = int_to_ptr.vmem [resolvable:$true] %s102
      %105 = dma.hbm_to_vmem [thread:$0]  %s5, 64, %s103, [#allocation6]
    $region13: #{tpu_custom_call.1} parent=1 // pred_fallthru
      _
    // Predicated region
    $region14: #{tpu_custom_call.1} parent=1 // pred_check
      _
    $region15: #{tpu_custom_call.1} parent=1 // pred_check_branch
      %107 = sbr.rel (0) target = $region17
    $region16: #{tpu_custom_call.1} parent=1 // pred_region
      %s109 = ssub.s32 128, 128
      %110 = vsyncadd [#allocation6], %s109
      %s112 = sshll.u32 [#allocation7], 4
      %s113 = int_to_ptr.vmem [resolvable:$true] %s112
      %115 = dma.hbm_to_vmem [thread:$0]  %s7, 128, %s113, [#allocation6]
    $region17: #{tpu_custom_call.1} parent=1 // pred_fallthru
      _
    // Predicated region
    $region18: #{tpu_custom_call.1} parent=1 // pred_check
      _
    $region19: #{tpu_custom_call.1} parent=1 // pred_check_branch
      %117 = sbr.rel (0) target = $region21
    $region20: #{tpu_custom_call.1} parent=1 // pred_region
      %s119 = ssub.s32 512, 512
      %120 = vsyncadd [#allocation9], %s119
      %s121 = sshll.u32 [#allocation8], 4
      %s122 = int_to_ptr.vmem [resolvable:$true] %s121
      %127 = dma.hbm_to_vmem [thread:$0]  %s9, 512, %s122, [#allocation9], 64, 64, 4
    $region21: #{tpu_custom_call.1} parent=1 // pred_fallthru
      _
    // Predicated region
    $region22: #{tpu_custom_call.1} parent=1 // pred_check
      _
    $region23: #{tpu_custom_call.1} parent=1 // pred_check_branch
      %129 = sbr.rel (0) target = $region25
    $region24: #{tpu_custom_call.1} parent=1 // pred_region
      %s131 = ssub.s32 512, 512
      %132 = vsyncadd [#allocation9], %s131
      %s133 = sshll.u32 [#allocation10], 4
      %s134 = int_to_ptr.vmem [resolvable:$true] %s133
      %139 = dma.hbm_to_vmem [thread:$0]  %s11, 512, %s134, [#allocation9], 64, 64, 4
    $region25: #{tpu_custom_call.1} parent=1 // pred_fallthru
      _
    // Predicated region
    $region26: #{tpu_custom_call.1} parent=1 // pred_check
      _
    $region27: #{tpu_custom_call.1} parent=1 // pred_check_branch
      %141 = sbr.rel (0) target = $region29
    $region28: #{tpu_custom_call.1} parent=1 // pred_region
      %s143 = ssub.s32 512, 512
      %144 = vsyncadd [#allocation12], %s143
      %s145 = sshll.u32 [#allocation11], 4
      %s146 = int_to_ptr.vmem [resolvable:$true] %s145
      %151 = dma.hbm_to_vmem [thread:$0]  %s13, 512, %s146, [#allocation12], 64, 64, 4
    $region29: #{tpu_custom_call.1} parent=1 // pred_fallthru
      _
    // Predicated region
    $region30: #{tpu_custom_call.1} parent=1 // pred_check
      _
    $region31: #{tpu_custom_call.1} parent=1 // pred_check_branch
      %153 = sbr.rel (0) target = $region33
    $region32: #{tpu_custom_call.1} parent=1 // pred_region
      _
    $region33: #{tpu_custom_call.1} parent=1 // pred_fallthru
      _
    // Predicated region
    $region34: #{tpu_custom_call.1} parent=1 // pred_check
      _
    $region35: #{tpu_custom_call.1} parent=1 // pred_check_branch
      %155 = sbr.rel (0) target = $region37
    $region36: #{tpu_custom_call.1} parent=1 // pred_region
      %s157 = ssub.s32 512, 512
      %158 = vsyncadd [#allocation12], %s157
      %s159 = sshll.u32 [#allocation13], 4
      %s160 = int_to_ptr.vmem [resolvable:$true] %s159
      %165 = dma.hbm_to_vmem [thread:$0]  %s17, 512, %s160, [#allocation12], 64, 64, 4
    $region37: #{tpu_custom_call.1} parent=1 // pred_fallthru
      _
    // Predicated region
    $region38: #{tpu_custom_call.1} parent=1 // pred_check
      _
    $region39: #{tpu_custom_call.1} parent=1 // pred_check_branch
      %167 = sbr.rel (0) target = $region41
    $region40: #{tpu_custom_call.1} parent=1 // pred_region
      %s169 = ssub.s32 16, 16
      %170 = vsyncadd [#allocation15], %s169
      %s172 = sshll.u32 [#allocation14], 4
      %s173 = int_to_ptr.vmem [resolvable:$true] %s172
      %175 = dma.hbm_to_vmem [thread:$0]  %s19, 16, %s173, [#allocation15]
    $region41: #{tpu_custom_call.1} parent=1 // pred_fallthru
      _
    // Predicated region
    $region42: #{tpu_custom_call.1} parent=1 // pred_check
      _
    $region43: #{tpu_custom_call.1} parent=1 // pred_check_branch
      %177 = sbr.rel (0) target = $region45
    $region44: #{tpu_custom_call.1} parent=1 // pred_region
      %s179 = ssub.s32 1024, 1024
      %180 = vsyncadd [#allocation15], %s179
      %s181 = sshll.u32 [#allocation16], 4
      %s182 = int_to_ptr.vmem [resolvable:$true] %s181
      %187 = dma.hbm_to_vmem [thread:$0]  %s21, 1024, %s182, [#allocation15], 64, 64, 4
    $region45: #{tpu_custom_call.1} parent=1 // pred_fallthru
      _
    // Predicated region
    $region46: #{tpu_custom_call.1} parent=1 // pred_check
      _
    $region47: #{tpu_custom_call.1} parent=1 // pred_check_branch
      %189 = sbr.rel (0) target = $region49
    $region48: #{tpu_custom_call.1} parent=1 // pred_region
      %s191 = ssub.s32 16, 16
      %192 = vsyncadd [#allocation18], %s191
      %s194 = sshll.u32 [#allocation17], 4
      %s195 = int_to_ptr.vmem [resolvable:$true] %s194
      %197 = dma.hbm_to_vmem [thread:$0]  %s23, 16, %s195, [#allocation18]
    $region49: #{tpu_custom_call.1} parent=1 // pred_fallthru
      _
    // Predicated region
    $region50: #{tpu_custom_call.1} parent=1 // pred_check
      _
    $region51: #{tpu_custom_call.1} parent=1 // pred_check_branch
      %199 = sbr.rel (0) target = $region53
    $region52: #{tpu_custom_call.1} parent=1 // pred_region
      %s201 = ssub.s32 2048, 2048
      %202 = vsyncadd [#allocation18], %s201
      %s203 = sshll.u32 [#allocation19], 4
      %s204 = int_to_ptr.vmem [resolvable:$true] %s203
      %209 = dma.hbm_to_vmem [thread:$0]  %s25, 2048, %s204, [#allocation18], 128, 128, 8
    $region53: #{tpu_custom_call.1} parent=1 // pred_fallthru
      _
    // Predicated region
    $region54: #{tpu_custom_call.1} parent=1 // pred_check
      _
    $region55: #{tpu_custom_call.1} parent=1 // pred_check_branch
      %211 = sbr.rel (0) target = $region57
    $region56: #{tpu_custom_call.1} parent=1 // pred_region
      %s213 = ssub.s32 32, 32
      %214 = vsyncadd [#allocation21], %s213
      %s216 = sshll.u32 [#allocation20], 4
      %s217 = int_to_ptr.vmem [resolvable:$true] %s216
      %219 = dma.hbm_to_vmem [thread:$0]  %s27, 32, %s217, [#allocation21]
    $region57: #{tpu_custom_call.1} parent=1 // pred_fallthru
      _
    // Predicated region
    $region58: #{tpu_custom_call.1} parent=1 // pred_check
      _
    $region59: #{tpu_custom_call.1} parent=1 // pred_check_branch
      %221 = sbr.rel (0) target = $region61
    $region60: #{tpu_custom_call.1} parent=1 // pred_region
      %s223 = ssub.s32 1024, 1024
      %224 = vsyncadd [#allocation21], %s223
      %s225 = sshll.u32 [#allocation22], 4
      %s226 = int_to_ptr.vmem [resolvable:$true] %s225
      %231 = dma.hbm_to_vmem [thread:$0]  %s29, 1024, %s226, [#allocation21], 64, 64, 4
    $region61: #{tpu_custom_call.1} parent=1 // pred_fallthru
      _
    // Predicated region
    $region62: #{tpu_custom_call.1} parent=1 // pred_check
      _
    $region63: #{tpu_custom_call.1} parent=1 // pred_check_branch
      %233 = sbr.rel (0) target = $region65
    $region64: #{tpu_custom_call.1} parent=1 // pred_region
      %s235 = ssub.s32 16, 16
      %236 = vsyncadd [#allocation24], %s235
      %s238 = sshll.u32 [#allocation23], 4
      %s239 = int_to_ptr.vmem [resolvable:$true] %s238
      %241 = dma.hbm_to_vmem [thread:$0]  %s31, 16, %s239, [#allocation24]
    $region65: #{tpu_custom_call.1} parent=1 // pred_fallthru
      _
    // Predicated region
    $region66: #{tpu_custom_call.1} parent=1 // pred_check
      _
    $region67: #{tpu_custom_call.1} parent=1 // pred_check_branch
      %243 = sbr.rel (0) target = $region69
    $region68: #{tpu_custom_call.1} parent=1 // pred_region
      _
    $region69: #{tpu_custom_call.1} parent=1 // pred_fallthru
      _
    // Predicated region
    $region70: #{tpu_custom_call.1} parent=1 // pred_check
      _
    $region71: #{tpu_custom_call.1} parent=1 // pred_check_branch
      %245 = sbr.rel (0) target = $region73
    $region72: #{tpu_custom_call.1} parent=1 // pred_region
      %s247 = ssub.s32 32, 32
      %248 = vsyncadd [#allocation24], %s247
      %s250 = sshll.u32 [#allocation25], 4
      %s251 = int_to_ptr.vmem [resolvable:$true] %s250
      %253 = dma.hbm_to_vmem [thread:$0]  %s35, 32, %s251, [#allocation24]
    $region73: #{tpu_custom_call.1} parent=1 // pred_fallthru
      _
    // Predicated region
    $region74: #{tpu_custom_call.1} parent=1 // pred_check
      _
    $region75: #{tpu_custom_call.1} parent=1 // pred_check_branch
      %255 = sbr.rel (0) target = $region77
    $region76: #{tpu_custom_call.1} parent=1 // pred_region
      %s257 = ssub.s32 4096, 4096
      %258 = vsyncadd [#allocation27], %s257
      %s259 = sshll.u32 [#allocation26], 4
      %s260 = int_to_ptr.vmem [resolvable:$true] %s259
      %265 = dma.hbm_to_vmem [thread:$0]  %s37, 4096, %s260, [#allocation27], 256, 256, 16
    $region77: #{tpu_custom_call.1} parent=1 // pred_fallthru
      _
    // Predicated region
    $region78: #{tpu_custom_call.1} parent=1 // pred_check
      _
    $region79: #{tpu_custom_call.1} parent=1 // pred_check_branch
      %267 = sbr.rel (0) target = $region81
    $region80: #{tpu_custom_call.1} parent=1 // pred_region
      %s269 = ssub.s32 4096, 4096
      %270 = vsyncadd [#allocation27], %s269
      %s271 = sshll.u32 [#allocation28], 4
      %s272 = int_to_ptr.vmem [resolvable:$true] %s271
      %277 = dma.hbm_to_vmem [thread:$0]  %s39, 4096, %s272, [#allocation27], 256, 256, 16
    $region81: #{tpu_custom_call.1} parent=1 // pred_fallthru
      _
    // Predicated region
    $region82: #{tpu_custom_call.1} parent=1 // pred_check
      _
    $region83: #{tpu_custom_call.1} parent=1 // pred_check_branch
      %279 = sbr.rel (0) target = $region85
    $region84: #{tpu_custom_call.1} parent=1 // pred_region
      %s281 = ssub.s32 64, 64
      %282 = vsyncadd [#allocation30], %s281
      %s284 = sshll.u32 [#allocation29], 4
      %s285 = int_to_ptr.vmem [resolvable:$true] %s284
      %287 = dma.hbm_to_vmem [thread:$0]  %s41, 64, %s285, [#allocation30]
    $region85: #{tpu_custom_call.1} parent=1 // pred_fallthru
      _
    // Predicated region
    $region86: #{tpu_custom_call.1} parent=1 // pred_check
      _
    $region87: #{tpu_custom_call.1} parent=1 // pred_check_branch
      %289 = sbr.rel (0) target = $region89
    $region88: #{tpu_custom_call.1} parent=1 // pred_region
      _
    $region89: #{tpu_custom_call.1} parent=1 // pred_fallthru
      _
    // Predicated region
    $region90: #{tpu_custom_call.1} parent=1 // pred_check
      _
    $region91: #{tpu_custom_call.1} parent=1 // pred_check_branch
      %291 = sbr.rel (0) target = $region93
    $region92: #{tpu_custom_call.1} parent=1 // pred_region
      %s293 = ssub.s32 2048, 2048
      %294 = vsyncadd [#allocation30], %s293
      %s295 = sshll.u32 [#allocation31], 4
      %s296 = int_to_ptr.vmem [resolvable:$true] %s295
      %301 = dma.hbm_to_vmem [thread:$0]  %s45, 2048, %s296, [#allocation30], 128, 128, 8
    $region93: #{tpu_custom_call.1} parent=1 // pred_fallthru
      _
    // Predicated region
    $region94: #{tpu_custom_call.1} parent=1 // pred_check
      _
    $region95: #{tpu_custom_call.1} parent=1 // pred_check_branch
      %303 = sbr.rel (0) target = $region97
    $region96: #{tpu_custom_call.1} parent=1 // pred_region
      %s305 = ssub.s32 2048, 2048
      %306 = vsyncadd [#allocation33], %s305
      %s307 = sshll.u32 [#allocation32], 4
      %s308 = int_to_ptr.vmem [resolvable:$true] %s307
      %313 = dma.hbm_to_vmem [thread:$0]  %s47, 2048, %s308, [#allocation33], 128, 128, 8
    $region97: #{tpu_custom_call.1} parent=1 // pred_fallthru
      _
    // Predicated region
    $region98: #{tpu_custom_call.1} parent=1 // pred_check
      _
    $region99: #{tpu_custom_call.1} parent=1 // pred_check_branch
      %315 = sbr.rel (0) target = $region101
    $region100: #{tpu_custom_call.1} parent=1 // pred_region
      %s317 = ssub.s32 2048, 2048
      %318 = vsyncadd [#allocation33], %s317
      %s319 = sshll.u32 [#allocation34], 4
      %s320 = int_to_ptr.vmem [resolvable:$true] %s319
      %325 = dma.hbm_to_vmem [thread:$0]  %s49, 2048, %s320, [#allocation33], 128, 128, 8
    $region101: #{tpu_custom_call.1} parent=1 // pred_fallthru
      _
    // Predicated region
    $region102: #{tpu_custom_call.1} parent=1 // pred_check
      _
    $region103: #{tpu_custom_call.1} parent=1 // pred_check_branch
      %327 = sbr.rel (0) target = $region105
    $region104: #{tpu_custom_call.1} parent=1 // pred_region
      %s329 = ssub.s32 2048, 2048
      %330 = vsyncadd [#allocation36], %s329
      %s331 = sshll.u32 [#allocation35], 4
      %s332 = int_to_ptr.vmem [resolvable:$true] %s331
      %337 = dma.hbm_to_vmem [thread:$0]  %s51, 2048, %s332, [#allocation36], 128, 128, 8
    $region105: #{tpu_custom_call.1} parent=1 // pred_fallthru
      _
    // Predicated region
    $region106: #{tpu_custom_call.1} parent=1 // pred_check
      _
    $region107: #{tpu_custom_call.1} parent=1 // pred_check_branch
      %339 = sbr.rel (0) target = $region109
    $region108: #{tpu_custom_call.1} parent=1 // pred_region
      _
    $region109: #{tpu_custom_call.1} parent=1 // pred_fallthru
      _
    // Predicated region
    $region110: #{tpu_custom_call.1} parent=1 // pred_check
      _
    $region111: #{tpu_custom_call.1} parent=1 // pred_check_branch
      %341 = sbr.rel (0) target = $region113
    $region112: #{tpu_custom_call.1} parent=1 // pred_region
      _
    $region113: #{tpu_custom_call.1} parent=1 // pred_fallthru
      _
    // Predicated region
    $region114: #{tpu_custom_call.1} parent=1 // pred_check
      _
    $region115: #{tpu_custom_call.1} parent=1 // pred_check_branch
      %343 = sbr.rel (0) target = $region117
    $region116: #{tpu_custom_call.1} parent=1 // pred_region
      %s345 = ssub.s32 4096, 4096
      %346 = vsyncadd [#allocation36], %s345
      %s347 = sshll.u32 [#allocation37], 4
      %s348 = int_to_ptr.vmem [resolvable:$true] %s347
      %353 = dma.hbm_to_vmem [thread:$0]  %s57, 4096, %s348, [#allocation36], 128, 128, 8
    $region117: #{tpu_custom_call.1} parent=1 // pred_fallthru
      _
    // Predicated region
    $region118: #{tpu_custom_call.1} parent=1 // pred_check
      _
    $region119: #{tpu_custom_call.1} parent=1 // pred_check_branch
      %355 = sbr.rel (0) target = $region121
    $region120: #{tpu_custom_call.1} parent=1 // pred_region
      _
    $region121: #{tpu_custom_call.1} parent=1 // pred_fallthru
      _
    // Predicated region
    $region122: #{tpu_custom_call.1} parent=1 // pred_check
      _
    $region123: #{tpu_custom_call.1} parent=1 // pred_check_branch
      %357 = sbr.rel (0) target = $region125
    $region124: #{tpu_custom_call.1} parent=1 // pred_region
      _
    $region125: #{tpu_custom_call.1} parent=1 // pred_fallthru
      _
    // Predicated region
    $region126: #{tpu_custom_call.1} parent=1 // pred_check
      _
    $region127: #{tpu_custom_call.1} parent=1 // pred_check_branch
      %359 = sbr.rel (0) target = $region129
    $region128: #{tpu_custom_call.1} parent=1 // pred_region
      _
    $region129: #{tpu_custom_call.1} parent=1 // pred_fallthru
      _
    // Predicated region
    $region130: #{tpu_custom_call.1} parent=1 // pred_check
      _
    $region131: #{tpu_custom_call.1} parent=1 // pred_check_branch
      %361 = sbr.rel (0) target = $region133
    $region132: #{tpu_custom_call.1} parent=1 // pred_region
      %362 = dma.done [#allocation4], 64
    $region133: #{tpu_custom_call.1} parent=1 // pred_fallthru
      _
    // Predicated region
    $region134: #{tpu_custom_call.1} parent=1 // pred_check
      _
    $region135: #{tpu_custom_call.1} parent=1 // pred_check_branch
      %364 = sbr.rel (0) target = $region137
    $region136: #{tpu_custom_call.1} parent=1 // pred_region
      %365 = dma.done [#allocation6], 64
    $region137: #{tpu_custom_call.1} parent=1 // pred_fallthru
      _
    // Predicated region
    $region138: #{tpu_custom_call.1} parent=1 // pred_check
      _
    $region139: #{tpu_custom_call.1} parent=1 // pred_check_branch
      %367 = sbr.rel (0) target = $region141
    $region140: #{tpu_custom_call.1} parent=1 // pred_region
      %368 = dma.done [#allocation6], 128
    $region141: #{tpu_custom_call.1} parent=1 // pred_fallthru
      _
    // Predicated region
    $region142: #{tpu_custom_call.1} parent=1 // pred_check
      _
    $region143: #{tpu_custom_call.1} parent=1 // pred_check_branch
      %370 = sbr.rel (0) target = $region145
    $region144: #{tpu_custom_call.1} parent=1 // pred_region
      %371 = dma.done [#allocation9], 512
    $region145: #{tpu_custom_call.1} parent=1 // pred_fallthru
      _
    // Predicated region
    $region146: #{tpu_custom_call.1} parent=1 // pred_check
      _
    $region147: #{tpu_custom_call.1} parent=1 // pred_check_branch
      %373 = sbr.rel (0) target = $region149
    $region148: #{tpu_custom_call.1} parent=1 // pred_region
      %374 = dma.done [#allocation9], 512
    $region149: #{tpu_custom_call.1} parent=1 // pred_fallthru
      _
    // Predicated region
    $region150: #{tpu_custom_call.1} parent=1 // pred_check
      _
    $region151: #{tpu_custom_call.1} parent=1 // pred_check_branch
      %376 = sbr.rel (0) target = $region153
    $region152: #{tpu_custom_call.1} parent=1 // pred_region
      %377 = dma.done [#allocation12], 512
    $region153: #{tpu_custom_call.1} parent=1 // pred_fallthru
      _
    // Predicated region
    $region154: #{tpu_custom_call.1} parent=1 // pred_check
      _
    $region155: #{tpu_custom_call.1} parent=1 // pred_check_branch
      %379 = sbr.rel (0) target = $region157
    $region156: #{tpu_custom_call.1} parent=1 // pred_region
      %380 = dma.done [#allocation12], 512
    $region157: #{tpu_custom_call.1} parent=1 // pred_fallthru
      _
    // Predicated region
    $region158: #{tpu_custom_call.1} parent=1 // pred_check
      _
    $region159: #{tpu_custom_call.1} parent=1 // pred_check_branch
      %382 = sbr.rel (0) target = $region161
    $region160: #{tpu_custom_call.1} parent=1 // pred_region
      %383 = dma.done [#allocation15], 16
    $region161: #{tpu_custom_call.1} parent=1 // pred_fallthru
      _
    // Predicated region
    $region162: #{tpu_custom_call.1} parent=1 // pred_check
      _
    $region163: #{tpu_custom_call.1} parent=1 // pred_check_branch
      %385 = sbr.rel (0) target = $region165
    $region164: #{tpu_custom_call.1} parent=1 // pred_region
      %386 = dma.done [#allocation15], 1024
    $region165: #{tpu_custom_call.1} parent=1 // pred_fallthru
      _
    // Predicated region
    $region166: #{tpu_custom_call.1} parent=1 // pred_check
      _
    $region167: #{tpu_custom_call.1} parent=1 // pred_check_branch
      %388 = sbr.rel (0) target = $region169
    $region168: #{tpu_custom_call.1} parent=1 // pred_region
      %389 = dma.done [#allocation18], 16
    $region169: #{tpu_custom_call.1} parent=1 // pred_fallthru
      _
    // Predicated region
    $region170: #{tpu_custom_call.1} parent=1 // pred_check
      _
    $region171: #{tpu_custom_call.1} parent=1 // pred_check_branch
      %391 = sbr.rel (0) target = $region173
    $region172: #{tpu_custom_call.1} parent=1 // pred_region
      %392 = dma.done [#allocation18], 2048
    $region173: #{tpu_custom_call.1} parent=1 // pred_fallthru
      _
    // Predicated region
    $region174: #{tpu_custom_call.1} parent=1 // pred_check
      _
    $region175: #{tpu_custom_call.1} parent=1 // pred_check_branch
      %394 = sbr.rel (0) target = $region177
    $region176: #{tpu_custom_call.1} parent=1 // pred_region
      %395 = dma.done [#allocation21], 32
    $region177: #{tpu_custom_call.1} parent=1 // pred_fallthru
      _
    // Predicated region
    $region178: #{tpu_custom_call.1} parent=1 // pred_check
      _
    $region179: #{tpu_custom_call.1} parent=1 // pred_check_branch
      %397 = sbr.rel (0) target = $region181
    $region180: #{tpu_custom_call.1} parent=1 // pred_region
      %398 = dma.done [#allocation21], 1024
    $region181: #{tpu_custom_call.1} parent=1 // pred_fallthru
      _
    // Predicated region
    $region182: #{tpu_custom_call.1} parent=1 // pred_check
      _
    $region183: #{tpu_custom_call.1} parent=1 // pred_check_branch
      %400 = sbr.rel (0) target = $region185
    $region184: #{tpu_custom_call.1} parent=1 // pred_region
      %401 = dma.done [#allocation24], 16
    $region185: #{tpu_custom_call.1} parent=1 // pred_fallthru
      _
    // Predicated region
    $region186: #{tpu_custom_call.1} parent=1 // pred_check
      _
    $region187: #{tpu_custom_call.1} parent=1 // pred_check_branch
      %403 = sbr.rel (0) target = $region189
    $region188: #{tpu_custom_call.1} parent=1 // pred_region
      %404 = dma.done [#allocation24], 32
    $region189: #{tpu_custom_call.1} parent=1 // pred_fallthru
      _
    // Predicated region
    $region190: #{tpu_custom_call.1} parent=1 // pred_check
      _
    $region191: #{tpu_custom_call.1} parent=1 // pred_check_branch
      %406 = sbr.rel (0) target = $region193
    $region192: #{tpu_custom_call.1} parent=1 // pred_region
      %407 = dma.done [#allocation27], 4096
    $region193: #{tpu_custom_call.1} parent=1 // pred_fallthru
      _
    // Predicated region
    $region194: #{tpu_custom_call.1} parent=1 // pred_check
      _
    $region195: #{tpu_custom_call.1} parent=1 // pred_check_branch
      %409 = sbr.rel (0) target = $region197
    $region196: #{tpu_custom_call.1} parent=1 // pred_region
      %410 = dma.done [#allocation27], 4096
    $region197: #{tpu_custom_call.1} parent=1 // pred_fallthru
      _
    // Predicated region
    $region198: #{tpu_custom_call.1} parent=1 // pred_check
      _
    $region199: #{tpu_custom_call.1} parent=1 // pred_check_branch
      %412 = sbr.rel (0) target = $region201
    $region200: #{tpu_custom_call.1} parent=1 // pred_region
      %413 = dma.done [#allocation30], 64
    $region201: #{tpu_custom_call.1} parent=1 // pred_fallthru
      _
    // Predicated region
    $region202: #{tpu_custom_call.1} parent=1 // pred_check
      _
    $region203: #{tpu_custom_call.1} parent=1 // pred_check_branch
      %415 = sbr.rel (0) target = $region205
    $region204: #{tpu_custom_call.1} parent=1 // pred_region
      %416 = dma.done [#allocation30], 2048
    $region205: #{tpu_custom_call.1} parent=1 // pred_fallthru
      _
    // Predicated region
    $region206: #{tpu_custom_call.1} parent=1 // pred_check
      _
    $region207: #{tpu_custom_call.1} parent=1 // pred_check_branch
      %418 = sbr.rel (0) target = $region209
    $region208: #{tpu_custom_call.1} parent=1 // pred_region
      %419 = dma.done [#allocation33], 2048
    $region209: #{tpu_custom_call.1} parent=1 // pred_fallthru
      _
    // Predicated region
    $region210: #{tpu_custom_call.1} parent=1 // pred_check
      _
    $region211: #{tpu_custom_call.1} parent=1 // pred_check_branch
      %421 = sbr.rel (0) target = $region213
    $region212: #{tpu_custom_call.1} parent=1 // pred_region
      %422 = dma.done [#allocation33], 2048
    $region213: #{tpu_custom_call.1} parent=1 // pred_fallthru
      _
    // Predicated region
    $region214: #{tpu_custom_call.1} parent=1 // pred_check
      _
    $region215: #{tpu_custom_call.1} parent=1 // pred_check_branch
      %424 = sbr.rel (0) target = $region217
    $region216: #{tpu_custom_call.1} parent=1 // pred_region
      %425 = dma.done [#allocation36], 2048
    $region217: #{tpu_custom_call.1} parent=1 // pred_fallthru
      _
    // Predicated region
    $region218: #{tpu_custom_call.1} parent=1 // pred_check
      _
    $region219: #{tpu_custom_call.1} parent=1 // pred_check_branch
      %427 = sbr.rel (0) target = $region221
    $region220: #{tpu_custom_call.1} parent=1 // pred_region
      %428 = dma.done [#allocation36], 4096
    $region221: #{tpu_custom_call.1} parent=1 // pred_fallthru
      _
    %v430 = vld [vmem:[#allocation13] sm:$0xf]
    %v431 = vld [vmem:[#allocation13 + $0x4] sm:$0xf]
    %v432 = vld [vmem:[#allocation13 + $0x8] sm:$0xf]
    %v433 = vld [vmem:[#allocation13 + $0xc] sm:$0xf]
    %v434 = vld [vmem:[#allocation13 + $0x10] sm:$0xf]
    %v435 = vld [vmem:[#allocation13 + $0x14] sm:$0xf]
    %v436 = vld [vmem:[#allocation13 + $0x18] sm:$0xf]
    %v437 = vld [vmem:[#allocation13 + $0x1c] sm:$0xf]
    %v438 = vld [vmem:[#allocation14] sm:$0x1]
    %v439 = vld [vmem:[%s1] sm:$0xf]
    %v440 = vld [vmem:[#allocation3] sm:$0xf]
    %v442 = vunpack.c.l.b16 %v440
    %v443 = vpack.c.b16 %v442, %v442
    %vm444 = vcmask 1043456
    %v447 = vsel %vm444, %v439, %v443
    %v448 = vld [vmem:[#allocation11] sm:$0xf]
    %v449 = vld [vmem:[#allocation11 + $0x4] sm:$0xf]
    %v450 = vld [vmem:[#allocation11 + $0x8] sm:$0xf]
    %v451 = vld [vmem:[#allocation11 + $0xc] sm:$0xf]
    %v452 = vld [vmem:[#allocation11 + $0x10] sm:$0xf]
    %v453 = vld [vmem:[#allocation11 + $0x14] sm:$0xf]
    %v454 = vld [vmem:[#allocation11 + $0x18] sm:$0xf]
    %v455 = vld [vmem:[#allocation11 + $0x1c] sm:$0xf]
    %v456 = vld [vmem:[%s15] sm:$0x1]
    %v458 = vlaneseq
    %v459 = vshrl.u32 %v458, 7
    %v460 = vsub.s32 0, %v459
    %v461 = vrot.slane %v456, %v460
    %v471 = vunpack.c.l.b16 %v448
    %v472 = vunpack.c.l.b16 %v449
    %v473 = vunpack.c.l.b16 %v450
    %v474 = vunpack.c.l.b16 %v451
    %v475 = vunpack.c.l.b16 %v452
    %v476 = vunpack.c.l.b16 %v453
    %v477 = vunpack.c.l.b16 %v454
    %v478 = vunpack.c.l.b16 %v455
    %v479 = vpack.c.b16 %v472, %v471
    %v480 = vpack.c.b16 %v474, %v473
    %v481 = vpack.c.b16 %v476, %v475
    %v482 = vpack.c.b16 %v478, %v477
    %vm487 = vcmask 523264
    %v488 = vsel %vm487, %v447, 0
    %490 = vmatprep.subr.bf16.mxu0 0
    %491 = vmatpush1.bf16.msra.mxu0 %v479
    %492 = vmatprep.subr.bf16.mxu0 0
    %493 = vmatpush1.bf16.msra.mxu0 %v480
    %494 = vmatprep.subr.bf16.mxu0 0
    %495 = vmatpush1.bf16.msra.mxu0 %v481
    %496 = vmatprep.subr.bf16.mxu0 0
    %497 = vmatpush1.bf16.msra.mxu0 %v482
    %498 = vmatprep.subr.bf16.mxu0 0
    %499 = vmatpush1.bf16.msra.mxu0 0
    %500 = vmatprep.subr.bf16.mxu0 0
    %501 = vmatpush1.bf16.msra.mxu0 0
    %502 = vmatprep.subr.bf16.mxu0 0
    %503 = vmatpush1.bf16.msra.mxu0 0
    %504 = vmatprep.subr.bf16.mxu0 0
    %505 = vmatpush1.bf16.msra.mxu0 0
    %506 = vmatprep.subr.bf16.mxu0 0
    %507 = vmatpush1.bf16.msra.mxu0 0
    %508 = vmatprep.subr.bf16.mxu0 0
    %509 = vmatpush1.bf16.msra.mxu0 0
    %510 = vmatprep.subr.bf16.mxu0 0
    %511 = vmatpush1.bf16.msra.mxu0 0
    %512 = vmatprep.subr.bf16.mxu0 0
    %513 = vmatpush1.bf16.msra.mxu0 0
    %514 = vmatprep.subr.bf16.mxu0 0
    %515 = vmatpush1.bf16.msra.mxu0 0
    %516 = vmatprep.subr.bf16.mxu0 0
    %517 = vmatpush1.bf16.msra.mxu0 0
    %518 = vmatprep.subr.bf16.mxu0 0
    %519 = vmatpush1.bf16.msra.mxu0 0
    %520 = vmatprep.subr.bf16.mxu0 0
    %521 = vmatpush1.bf16.msra.mxu0 0
    %522 = vmatprep.mubr.bf16.mxu0 0
    %523 = vmatmul.mubr.bf16.gmra.mrb[0].mxu0 %v488
    %v524 = vpop.f32.mrb[0].mxu0
    %v525 = vadd.f32 %v461, %v524
    %v526 = vpop.f32.mrb[0].mxu0
    %v527 = vpop.f32.mrb[0].mxu0
    %v528 = vadd.f32 %v461, %v527
    %v529 = vpop.f32.mrb[0].mxu0
    %530 = vdwg.mxu0
    %v531 = vmax.f32 %v525, 0.0
    %v532 = vmax.f32 %v528, 0.0
    %v533 = vld [vmem:[#allocation5] sm:$0xf]
    %v535 = vlaneseq
    %v536 = vshrl.u32 %v535, 7
    %v537 = vsub.s32 0, %v536
    %v538 = vrot.slane %v438, %v537
    %v548 = vunpack.c.l.b16 %v430
    %v549 = vunpack.c.l.b16 %v431
    %v550 = vunpack.c.l.b16 %v432
    %v551 = vunpack.c.l.b16 %v433
    %v552 = vunpack.c.l.b16 %v434
    %v553 = vunpack.c.l.b16 %v435
    %v554 = vunpack.c.l.b16 %v436
    %v555 = vunpack.c.l.b16 %v437
    %v556 = vpack.c.b16 %v549, %v548
    %v557 = vpack.c.b16 %v551, %v550
    %v558 = vpack.c.b16 %v553, %v552
    %v559 = vpack.c.b16 %v555, %v554
    %v565 = vsel %vm487, %v533, 0
    %567 = vmatprep.subr.bf16.mxu0 0
    %568 = vmatpush1.bf16.msra.mxu0 %v556
    %569 = vmatprep.subr.bf16.mxu0 0
    %570 = vmatpush1.bf16.msra.mxu0 %v557
    %571 = vmatprep.subr.bf16.mxu0 0
    %572 = vmatpush1.bf16.msra.mxu0 %v558
    %573 = vmatprep.subr.bf16.mxu0 0
    %574 = vmatpush1.bf16.msra.mxu0 %v559
    %575 = vmatprep.subr.bf16.mxu0 0
    %576 = vmatpush1.bf16.msra.mxu0 0
    %577 = vmatprep.subr.bf16.mxu0 0
    %578 = vmatpush1.bf16.msra.mxu0 0
    %579 = vmatprep.subr.bf16.mxu0 0
    %580 = vmatpush1.bf16.msra.mxu0 0
    %581 = vmatprep.subr.bf16.mxu0 0
    %582 = vmatpush1.bf16.msra.mxu0 0
    %583 = vmatprep.subr.bf16.mxu0 0
    %584 = vmatpush1.bf16.msra.mxu0 0
    %585 = vmatprep.subr.bf16.mxu0 0
    %586 = vmatpush1.bf16.msra.mxu0 0
    %587 = vmatprep.subr.bf16.mxu0 0
    %588 = vmatpush1.bf16.msra.mxu0 0
    %589 = vmatprep.subr.bf16.mxu0 0
    %590 = vmatpush1.bf16.msra.mxu0 0
    %591 = vmatprep.subr.bf16.mxu0 0
    %592 = vmatpush1.bf16.msra.mxu0 0
    %593 = vmatprep.subr.bf16.mxu0 0
    %594 = vmatpush1.bf16.msra.mxu0 0
    %595 = vmatprep.subr.bf16.mxu0 0
    %596 = vmatpush1.bf16.msra.mxu0 0
    %597 = vmatprep.subr.bf16.mxu0 0
    %598 = vmatpush1.bf16.msra.mxu0 0
    %599 = vmatprep.mubr.bf16.mxu0 0
    %600 = vmatmul.mubr.bf16.gmra.mrb[0].mxu0 %v565
    %v601 = vpop.f32.mrb[0].mxu0
    %v602 = vadd.f32 %v538, %v601
    %v603 = vpop.f32.mrb[0].mxu0
    %v604 = vpop.f32.mrb[0].mxu0
    %v605 = vpop.f32.mrb[0].mxu0
    %606 = vdwg.mxu0
    %v607 = vmax.f32 %v602, 0.0
    %v608 = vld [vmem:[#allocation8] sm:$0xf]
    %v609 = vld [vmem:[#allocation8 + $0x4] sm:$0xf]
    %v610 = vld [vmem:[#allocation8 + $0x8] sm:$0xf]
    %v611 = vld [vmem:[#allocation8 + $0xc] sm:$0xf]
    %v612 = vld [vmem:[#allocation8 + $0x10] sm:$0xf]
    %v613 = vld [vmem:[#allocation8 + $0x14] sm:$0xf]
    %v614 = vld [vmem:[#allocation8 + $0x18] sm:$0xf]
    %v615 = vld [vmem:[#allocation8 + $0x1c] sm:$0xf]
    %v624 = vunpack.c.l.b16 %v608
    %v625 = vunpack.c.l.b16 %v609
    %v626 = vunpack.c.l.b16 %v610
    %v627 = vunpack.c.l.b16 %v611
    %v628 = vunpack.c.l.b16 %v612
    %v629 = vunpack.c.l.b16 %v613
    %v630 = vunpack.c.l.b16 %v614
    %v631 = vunpack.c.l.b16 %v615
    %v632 = vpack.c.b16 %v625, %v624
    %v633 = vpack.c.b16 %v627, %v626
    %v634 = vpack.c.b16 %v629, %v628
    %v635 = vpack.c.b16 %v631, %v630
    %v637 = vsel %vm487, %v632, 0
    %v640 = vsel %vm487, %v633, 0
    %v643 = vsel %vm487, %v634, 0
    %v646 = vsel %vm487, %v635, 0
    %648 = vmatprep.subr.bf16.mxu0 0
    %649 = vmatpush1.bf16.msra.mxu0 %v556
    %650 = vmatprep.subr.bf16.mxu0 0
    %651 = vmatpush1.bf16.msra.mxu0 %v557
    %652 = vmatprep.subr.bf16.mxu0 0
    %653 = vmatpush1.bf16.msra.mxu0 %v558
    %654 = vmatprep.subr.bf16.mxu0 0
    %655 = vmatpush1.bf16.msra.mxu0 %v559
    %656 = vmatprep.subr.bf16.mxu0 0
    %657 = vmatpush1.bf16.msra.mxu0 0
    %658 = vmatprep.subr.bf16.mxu0 0
    %659 = vmatpush1.bf16.msra.mxu0 0
    %660 = vmatprep.subr.bf16.mxu0 0
    %661 = vmatpush1.bf16.msra.mxu0 0
    %662 = vmatprep.subr.bf16.mxu0 0
    %663 = vmatpush1.bf16.msra.mxu0 0
    %664 = vmatprep.subr.bf16.mxu0 0
    %665 = vmatpush1.bf16.msra.mxu0 0
    %666 = vmatprep.subr.bf16.mxu0 0
    %667 = vmatpush1.bf16.msra.mxu0 0
    %668 = vmatprep.subr.bf16.mxu0 0
    %669 = vmatpush1.bf16.msra.mxu0 0
    %670 = vmatprep.subr.bf16.mxu0 0
    %671 = vmatpush1.bf16.msra.mxu0 0
    %672 = vmatprep.subr.bf16.mxu0 0
    %673 = vmatpush1.bf16.msra.mxu0 0
    %674 = vmatprep.subr.bf16.mxu0 0
    %675 = vmatpush1.bf16.msra.mxu0 0
    %676 = vmatprep.subr.bf16.mxu0 0
    %677 = vmatpush1.bf16.msra.mxu0 0
    %678 = vmatprep.subr.bf16.mxu0 0
    %679 = vmatpush1.bf16.msra.mxu0 0
    %680 = vmatprep.mubr.bf16.mxu0 0
    %681 = vmatmul.mubr.bf16.gmra.mrb[0].mxu0 %v637
    %v682 = vpop.f32.mrb[0].mxu0
    %v683 = vadd.f32 %v538, %v682
    %v684 = vpop.f32.mrb[0].mxu0
    %v685 = vpop.f32.mrb[0].mxu0
    %v686 = vadd.f32 %v538, %v685
    %v687 = vpop.f32.mrb[0].mxu0
    %688 = vmatprep.mubr.bf16.mxu0 0
    %689 = vmatmul.mubr.bf16.gmra.mrb[0].mxu0 %v640
    %v690 = vpop.f32.mrb[0].mxu0
    %v691 = vadd.f32 %v538, %v690
    %v692 = vpop.f32.mrb[0].mxu0
    %v693 = vpop.f32.mrb[0].mxu0
    %v694 = vadd.f32 %v538, %v693
    %v695 = vpop.f32.mrb[0].mxu0
    %696 = vmatprep.mubr.bf16.mxu0 0
    %697 = vmatmul.mubr.bf16.gmra.mrb[0].mxu0 %v643
    %v698 = vpop.f32.mrb[0].mxu0
    %v699 = vadd.f32 %v538, %v698
    %v700 = vpop.f32.mrb[0].mxu0
    %v701 = vpop.f32.mrb[0].mxu0
    %v702 = vadd.f32 %v538, %v701
    %v703 = vpop.f32.mrb[0].mxu0
    %704 = vmatprep.mubr.bf16.mxu0 0
    %705 = vmatmul.mubr.bf16.gmra.mrb[0].mxu0 %v646
    %v706 = vpop.f32.mrb[0].mxu0
    %v707 = vadd.f32 %v538, %v706
    %v708 = vpop.f32.mrb[0].mxu0
    %v709 = vpop.f32.mrb[0].mxu0
    %v710 = vadd.f32 %v538, %v709
    %v711 = vpop.f32.mrb[0].mxu0
    %712 = vdwg.mxu0
    %v713 = vmax.f32 %v683, 0.0
    %v714 = vmax.f32 %v686, 0.0
    %v715 = vmax.f32 %v691, 0.0
    %v716 = vmax.f32 %v694, 0.0
    %v717 = vmax.f32 %v699, 0.0
    %v718 = vmax.f32 %v702, 0.0
    %v719 = vmax.f32 %v707, 0.0
    %v720 = vmax.f32 %v710, 0.0
    %v721 = vpack.c.bf16 %v714, %v713
    %v722 = vpack.c.bf16 %v716, %v715
    %v723 = vpack.c.bf16 %v718, %v717
    %v724 = vpack.c.bf16 %v720, %v719
    %v725 = vld [vmem:[#allocation19] sm:$0xff]
    %v726 = vld [vmem:[#allocation19 + $0x8] sm:$0xff]
    %v727 = vld [vmem:[#allocation19 + $0x10] sm:$0xff]
    %v728 = vld [vmem:[#allocation19 + $0x18] sm:$0xff]
    %v729 = vld [vmem:[#allocation19 + $0x20] sm:$0xff]
    %v730 = vld [vmem:[#allocation19 + $0x28] sm:$0xff]
    %v731 = vld [vmem:[#allocation19 + $0x30] sm:$0xff]
    %v732 = vld [vmem:[#allocation19 + $0x38] sm:$0xff]
    %v733 = vld [vmem:[#allocation19 + $0x40] sm:$0xff]
    %v734 = vld [vmem:[#allocation19 + $0x48] sm:$0xff]
    %v735 = vld [vmem:[#allocation19 + $0x50] sm:$0xff]
    %v736 = vld [vmem:[#allocation19 + $0x58] sm:$0xff]
    %v737 = vld [vmem:[#allocation19 + $0x60] sm:$0xff]
    %v738 = vld [vmem:[#allocation19 + $0x68] sm:$0xff]
    %v739 = vld [vmem:[#allocation19 + $0x70] sm:$0xff]
    %v740 = vld [vmem:[#allocation19 + $0x78] sm:$0xff]
    %v741 = vld [vmem:[#allocation20] sm:$0x3]
    %v743 = vlaneseq
    %v744 = vshrl.u32 %v743, 7
    %v745 = vsub.s32 0, %v744
    %v746 = vrot.slane %v741, %v745
    %v747 = vlaneseq
    %v748 = vshrl.u32 %v747, 7
    %v749 = vsub.s32 1, %v748
    %v750 = vrot.slane %v741, %v749
    %v769 = vunpack.c.l.b16 %v725
    %v770 = vunpack.c.h.b16 %v725
    %v771 = vunpack.c.l.b16 %v726
    %v772 = vunpack.c.h.b16 %v726
    %v773 = vunpack.c.l.b16 %v727
    %v774 = vunpack.c.h.b16 %v727
    %v775 = vunpack.c.l.b16 %v728
    %v776 = vunpack.c.h.b16 %v728
    %v777 = vunpack.c.l.b16 %v729
    %v778 = vunpack.c.h.b16 %v729
    %v779 = vunpack.c.l.b16 %v730
    %v780 = vunpack.c.h.b16 %v730
    %v781 = vunpack.c.l.b16 %v731
    %v782 = vunpack.c.h.b16 %v731
    %v783 = vunpack.c.l.b16 %v732
    %v784 = vunpack.c.h.b16 %v732
    %v785 = vunpack.c.l.b16 %v733
    %v786 = vunpack.c.h.b16 %v733
    %v787 = vunpack.c.l.b16 %v734
    %v788 = vunpack.c.h.b16 %v734
    %v789 = vunpack.c.l.b16 %v735
    %v790 = vunpack.c.h.b16 %v735
    %v791 = vunpack.c.l.b16 %v736
    %v792 = vunpack.c.h.b16 %v736
    %v793 = vunpack.c.l.b16 %v737
    %v794 = vunpack.c.h.b16 %v737
    %v795 = vunpack.c.l.b16 %v738
    %v796 = vunpack.c.h.b16 %v738
    %v797 = vunpack.c.l.b16 %v739
    %v798 = vunpack.c.h.b16 %v739
    %v799 = vunpack.c.l.b16 %v740
    %v800 = vunpack.c.h.b16 %v740
    %v801 = vpack.c.b16 %v771, %v769
    %v802 = vpack.c.b16 %v772, %v770
    %v803 = vpack.c.b16 %v775, %v773
    %v804 = vpack.c.b16 %v776, %v774
    %v805 = vpack.c.b16 %v779, %v777
    %v806 = vpack.c.b16 %v780, %v778
    %v807 = vpack.c.b16 %v783, %v781
    %v808 = vpack.c.b16 %v784, %v782
    %v809 = vpack.c.b16 %v787, %v785
    %v810 = vpack.c.b16 %v788, %v786
    %v811 = vpack.c.b16 %v791, %v789
    %v812 = vpack.c.b16 %v792, %v790
    %v813 = vpack.c.b16 %v795, %v793
    %v814 = vpack.c.b16 %v796, %v794
    %v815 = vpack.c.b16 %v799, %v797
    %v816 = vpack.c.b16 %v800, %v798
    %833 = vmatprep.subr.bf16.mxu0 %v802
    %834 = vmatpush1.bf16.msra.mxu0 %v801
    %835 = vmatprep.subr.bf16.mxu0 %v804
    %836 = vmatpush1.bf16.msra.mxu0 %v803
    %837 = vmatprep.subr.bf16.mxu0 %v806
    %838 = vmatpush1.bf16.msra.mxu0 %v805
    %839 = vmatprep.subr.bf16.mxu0 %v808
    %840 = vmatpush1.bf16.msra.mxu0 %v807
    %841 = vmatprep.subr.bf16.mxu0 %v810
    %842 = vmatpush1.bf16.msra.mxu0 %v809
    %843 = vmatprep.subr.bf16.mxu0 %v812
    %844 = vmatpush1.bf16.msra.mxu0 %v811
    %845 = vmatprep.subr.bf16.mxu0 %v814
    %846 = vmatpush1.bf16.msra.mxu0 %v813
    %847 = vmatprep.subr.bf16.mxu0 %v816
    %848 = vmatpush1.bf16.msra.mxu0 %v815
    %849 = vmatprep.subr.bf16.mxu0 0
    %850 = vmatpush1.bf16.msra.mxu0 0
    %851 = vmatprep.subr.bf16.mxu0 0
    %852 = vmatpush1.bf16.msra.mxu0 0
    %853 = vmatprep.subr.bf16.mxu0 0
    %854 = vmatpush1.bf16.msra.mxu0 0
    %855 = vmatprep.subr.bf16.mxu0 0
    %856 = vmatpush1.bf16.msra.mxu0 0
    %857 = vmatprep.subr.bf16.mxu0 0
    %858 = vmatpush1.bf16.msra.mxu0 0
    %859 = vmatprep.subr.bf16.mxu0 0
    %860 = vmatpush1.bf16.msra.mxu0 0
    %861 = vmatprep.subr.bf16.mxu0 0
    %862 = vmatpush1.bf16.msra.mxu0 0
    %863 = vmatprep.subr.bf16.mxu0 0
    %864 = vmatpush1.bf16.msra.mxu0 0
    %865 = vmatprep.mubr.bf16.mxu0 0
    %866 = vmatmul.mubr.bf16.gmra.mrb[0].mxu0 %v721
    %v867 = vpop.f32.mrb[0].mxu0
    %v868 = vadd.f32 %v746, %v867
    %v869 = vpop.f32.mrb[0].mxu0
    %v870 = vadd.f32 %v750, %v869
    %v871 = vpop.f32.mrb[0].mxu0
    %v872 = vadd.f32 %v746, %v871
    %v873 = vpop.f32.mrb[0].mxu0
    %v874 = vadd.f32 %v750, %v873
    %875 = vmatprep.mubr.bf16.mxu0 0
    %876 = vmatmul.mubr.bf16.gmra.mrb[0].mxu0 %v722
    %v877 = vpop.f32.mrb[0].mxu0
    %v878 = vadd.f32 %v746, %v877
    %v879 = vpop.f32.mrb[0].mxu0
    %v880 = vadd.f32 %v750, %v879
    %v881 = vpop.f32.mrb[0].mxu0
    %v882 = vadd.f32 %v746, %v881
    %v883 = vpop.f32.mrb[0].mxu0
    %v884 = vadd.f32 %v750, %v883
    %885 = vmatprep.mubr.bf16.mxu0 0
    %886 = vmatmul.mubr.bf16.gmra.mrb[0].mxu0 %v723
    %v887 = vpop.f32.mrb[0].mxu0
    %v888 = vadd.f32 %v746, %v887
    %v889 = vpop.f32.mrb[0].mxu0
    %v890 = vadd.f32 %v750, %v889
    %v891 = vpop.f32.mrb[0].mxu0
    %v892 = vadd.f32 %v746, %v891
    %v893 = vpop.f32.mrb[0].mxu0
    %v894 = vadd.f32 %v750, %v893
    %895 = vmatprep.mubr.bf16.mxu0 0
    %896 = vmatmul.mubr.bf16.gmra.mrb[0].mxu0 %v724
    %v897 = vpop.f32.mrb[0].mxu0
    %v898 = vadd.f32 %v746, %v897
    %v899 = vpop.f32.mrb[0].mxu0
    %v900 = vadd.f32 %v750, %v899
    %v901 = vpop.f32.mrb[0].mxu0
    %v902 = vadd.f32 %v746, %v901
    %v903 = vpop.f32.mrb[0].mxu0
    %v904 = vadd.f32 %v750, %v903
    %905 = vdwg.mxu0
    %v906 = vpack.c.bf16 %v607, %v607
    %v907 = vld [vmem:[#allocation16] sm:$0xf]
    %v908 = vld [vmem:[#allocation16 + $0x4] sm:$0xf]
    %v909 = vld [vmem:[#allocation16 + $0x8] sm:$0xf]
    %v910 = vld [vmem:[#allocation16 + $0xc] sm:$0xf]
    %v911 = vld [vmem:[#allocation16 + $0x10] sm:$0xf]
    %v912 = vld [vmem:[#allocation16 + $0x14] sm:$0xf]
    %v913 = vld [vmem:[#allocation16 + $0x18] sm:$0xf]
    %v914 = vld [vmem:[#allocation16 + $0x1c] sm:$0xf]
    %v915 = vld [vmem:[#allocation16 + $0x20] sm:$0xf]
    %v916 = vld [vmem:[#allocation16 + $0x24] sm:$0xf]
    %v917 = vld [vmem:[#allocation16 + $0x28] sm:$0xf]
    %v918 = vld [vmem:[#allocation16 + $0x2c] sm:$0xf]
    %v919 = vld [vmem:[#allocation16 + $0x30] sm:$0xf]
    %v920 = vld [vmem:[#allocation16 + $0x34] sm:$0xf]
    %v921 = vld [vmem:[#allocation16 + $0x38] sm:$0xf]
    %v922 = vld [vmem:[#allocation16 + $0x3c] sm:$0xf]
    %v923 = vld [vmem:[#allocation17] sm:$0x1]
    %v925 = vlaneseq
    %v926 = vshrl.u32 %v925, 7
    %v927 = vsub.s32 0, %v926
    %v928 = vrot.slane %v923, %v927
    %v946 = vunpack.c.l.b16 %v907
    %v947 = vunpack.c.l.b16 %v908
    %v948 = vunpack.c.l.b16 %v909
    %v949 = vunpack.c.l.b16 %v910
    %v950 = vunpack.c.l.b16 %v911
    %v951 = vunpack.c.l.b16 %v912
    %v952 = vunpack.c.l.b16 %v913
    %v953 = vunpack.c.l.b16 %v914
    %v954 = vunpack.c.l.b16 %v915
    %v955 = vunpack.c.l.b16 %v916
    %v956 = vunpack.c.l.b16 %v917
    %v957 = vunpack.c.l.b16 %v918
    %v958 = vunpack.c.l.b16 %v919
    %v959 = vunpack.c.l.b16 %v920
    %v960 = vunpack.c.l.b16 %v921
    %v961 = vunpack.c.l.b16 %v922
    %v962 = vpack.c.b16 %v947, %v946
    %v963 = vpack.c.b16 %v949, %v948
    %v964 = vpack.c.b16 %v951, %v950
    %v965 = vpack.c.b16 %v953, %v952
    %v966 = vpack.c.b16 %v955, %v954
    %v967 = vpack.c.b16 %v957, %v956
    %v968 = vpack.c.b16 %v959, %v958
    %v969 = vpack.c.b16 %v961, %v960
    %978 = vmatprep.subr.bf16.mxu0 0
    %979 = vmatpush1.bf16.msra.mxu0 %v962
    %980 = vmatprep.subr.bf16.mxu0 0
    %981 = vmatpush1.bf16.msra.mxu0 %v963
    %982 = vmatprep.subr.bf16.mxu0 0
    %983 = vmatpush1.bf16.msra.mxu0 %v964
    %984 = vmatprep.subr.bf16.mxu0 0
    %985 = vmatpush1.bf16.msra.mxu0 %v965
    %986 = vmatprep.subr.bf16.mxu0 0
    %987 = vmatpush1.bf16.msra.mxu0 %v966
    %988 = vmatprep.subr.bf16.mxu0 0
    %989 = vmatpush1.bf16.msra.mxu0 %v967
    %990 = vmatprep.subr.bf16.mxu0 0
    %991 = vmatpush1.bf16.msra.mxu0 %v968
    %992 = vmatprep.subr.bf16.mxu0 0
    %993 = vmatpush1.bf16.msra.mxu0 %v969
    %994 = vmatprep.subr.bf16.mxu0 0
    %995 = vmatpush1.bf16.msra.mxu0 0
    %996 = vmatprep.subr.bf16.mxu0 0
    %997 = vmatpush1.bf16.msra.mxu0 0
    %998 = vmatprep.subr.bf16.mxu0 0
    %999 = vmatpush1.bf16.msra.mxu0 0
    %1000 = vmatprep.subr.bf16.mxu0 0
    %1001 = vmatpush1.bf16.msra.mxu0 0
    %1002 = vmatprep.subr.bf16.mxu0 0
    %1003 = vmatpush1.bf16.msra.mxu0 0
    %1004 = vmatprep.subr.bf16.mxu0 0
    %1005 = vmatpush1.bf16.msra.mxu0 0
    %1006 = vmatprep.subr.bf16.mxu0 0
    %1007 = vmatpush1.bf16.msra.mxu0 0
    %1008 = vmatprep.subr.bf16.mxu0 0
    %1009 = vmatpush1.bf16.msra.mxu0 0
    %1010 = vmatprep.mubr.bf16.mxu0 0
    %1011 = vmatmul.mubr.bf16.gmra.mrb[0].mxu0 %v906
    %v1012 = vpop.f32.mrb[0].mxu0
    %v1013 = vadd.f32 %v928, %v1012
    %v1014 = vpop.f32.mrb[0].mxu0
    %v1015 = vpop.f32.mrb[0].mxu0
    %v1016 = vpop.f32.mrb[0].mxu0
    %1017 = vdwg.mxu0
    %v1018 = vld [vmem:[%s33] sm:$0xf]
    %v1019 = vld [vmem:[%s33 + $0x4] sm:$0xf]
    %v1020 = vld [vmem:[%s33 + $0x8] sm:$0xf]
    %v1021 = vld [vmem:[%s33 + $0xc] sm:$0xf]
    %v1022 = vld [vmem:[%s33 + $0x10] sm:$0xf]
    %v1023 = vld [vmem:[%s33 + $0x14] sm:$0xf]
    %v1024 = vld [vmem:[%s33 + $0x18] sm:$0xf]
    %v1025 = vld [vmem:[%s33 + $0x1c] sm:$0xf]
    %v1026 = vld [vmem:[%s33 + $0x20] sm:$0xf]
    %v1027 = vld [vmem:[%s33 + $0x24] sm:$0xf]
    %v1028 = vld [vmem:[%s33 + $0x28] sm:$0xf]
    %v1029 = vld [vmem:[%s33 + $0x2c] sm:$0xf]
    %v1030 = vld [vmem:[%s33 + $0x30] sm:$0xf]
    %v1031 = vld [vmem:[%s33 + $0x34] sm:$0xf]
    %v1032 = vld [vmem:[%s33 + $0x38] sm:$0xf]
    %v1033 = vld [vmem:[%s33 + $0x3c] sm:$0xf]
    %v1034 = vld [vmem:[#allocation25] sm:$0x3]
    %v1035 = vmul.f32 %v1013, %v868
    %v1036 = vpack.c.bf16 %v1035, %v1035
    %v1053 = vunpack.c.l.b16 %v1018
    %v1054 = vunpack.c.l.b16 %v1019
    %v1055 = vunpack.c.l.b16 %v1020
    %v1056 = vunpack.c.l.b16 %v1021
    %v1057 = vunpack.c.l.b16 %v1022
    %v1058 = vunpack.c.l.b16 %v1023
    %v1059 = vunpack.c.l.b16 %v1024
    %v1060 = vunpack.c.l.b16 %v1025
    %v1061 = vunpack.c.l.b16 %v1026
    %v1062 = vunpack.c.l.b16 %v1027
    %v1063 = vunpack.c.l.b16 %v1028
    %v1064 = vunpack.c.l.b16 %v1029
    %v1065 = vunpack.c.l.b16 %v1030
    %v1066 = vunpack.c.l.b16 %v1031
    %v1067 = vunpack.c.l.b16 %v1032
    %v1068 = vunpack.c.l.b16 %v1033
    %v1069 = vpack.c.b16 %v1054, %v1053
    %v1070 = vpack.c.b16 %v1056, %v1055
    %v1071 = vpack.c.b16 %v1058, %v1057
    %v1072 = vpack.c.b16 %v1060, %v1059
    %v1073 = vpack.c.b16 %v1062, %v1061
    %v1074 = vpack.c.b16 %v1064, %v1063
    %v1075 = vpack.c.b16 %v1066, %v1065
    %v1076 = vpack.c.b16 %v1068, %v1067
    %1085 = vmatprep.subr.bf16.mxu0 0
    %1086 = vmatpush1.bf16.msra.mxu0 %v1069
    %1087 = vmatprep.subr.bf16.mxu0 0
    %1088 = vmatpush1.bf16.msra.mxu0 %v1070
    %1089 = vmatprep.subr.bf16.mxu0 0
    %1090 = vmatpush1.bf16.msra.mxu0 %v1071
    %1091 = vmatprep.subr.bf16.mxu0 0
    %1092 = vmatpush1.bf16.msra.mxu0 %v1072
    %1093 = vmatprep.subr.bf16.mxu0 0
    %1094 = vmatpush1.bf16.msra.mxu0 %v1073
    %1095 = vmatprep.subr.bf16.mxu0 0
    %1096 = vmatpush1.bf16.msra.mxu0 %v1074
    %1097 = vmatprep.subr.bf16.mxu0 0
    %1098 = vmatpush1.bf16.msra.mxu0 %v1075
    %1099 = vmatprep.subr.bf16.mxu0 0
    %1100 = vmatpush1.bf16.msra.mxu0 %v1076
    %1101 = vmatprep.subr.bf16.mxu0 0
    %1102 = vmatpush1.bf16.msra.mxu0 0
    %1103 = vmatprep.subr.bf16.mxu0 0
    %1104 = vmatpush1.bf16.msra.mxu0 0
    %1105 = vmatprep.subr.bf16.mxu0 0
    %1106 = vmatpush1.bf16.msra.mxu0 0
    %1107 = vmatprep.subr.bf16.mxu0 0
    %1108 = vmatpush1.bf16.msra.mxu0 0
    %1109 = vmatprep.subr.bf16.mxu0 0
    %1110 = vmatpush1.bf16.msra.mxu0 0
    %1111 = vmatprep.subr.bf16.mxu0 0
    %1112 = vmatpush1.bf16.msra.mxu0 0
    %1113 = vmatprep.subr.bf16.mxu0 0
    %1114 = vmatpush1.bf16.msra.mxu0 0
    %1115 = vmatprep.subr.bf16.mxu0 0
    %1116 = vmatpush1.bf16.msra.mxu0 0
    %1117 = vmatprep.mubr.bf16.mxu0 0
    %1118 = vmatmul.mubr.bf16.gmra.mrb[0].mxu0 %v1036
    %v1119 = vpop.f32.mrb[0].mxu0
    %v1120 = vadd.f32 0.0, %v1119
    %v1121 = vpop.f32.mrb[0].mxu0
    %v1122 = vpop.f32.mrb[0].mxu0
    %v1123 = vpop.f32.mrb[0].mxu0
    %1124 = vdwg.mxu0
    %v1125 = vmul.f32 %v1013, %v872
    %v1126 = vpack.c.bf16 %v1125, %v1125
    %1127 = vmatprep.subr.bf16.mxu0 0
    %1128 = vmatpush1.bf16.msra.mxu0 %v1069
    %1129 = vmatprep.subr.bf16.mxu0 0
    %1130 = vmatpush1.bf16.msra.mxu0 %v1070
    %1131 = vmatprep.subr.bf16.mxu0 0
    %1132 = vmatpush1.bf16.msra.mxu0 %v1071
    %1133 = vmatprep.subr.bf16.mxu0 0
    %1134 = vmatpush1.bf16.msra.mxu0 %v1072
    %1135 = vmatprep.subr.bf16.mxu0 0
    %1136 = vmatpush1.bf16.msra.mxu0 %v1073
    %1137 = vmatprep.subr.bf16.mxu0 0
    %1138 = vmatpush1.bf16.msra.mxu0 %v1074
    %1139 = vmatprep.subr.bf16.mxu0 0
    %1140 = vmatpush1.bf16.msra.mxu0 %v1075
    %1141 = vmatprep.subr.bf16.mxu0 0
    %1142 = vmatpush1.bf16.msra.mxu0 %v1076
    %1143 = vmatprep.subr.bf16.mxu0 0
    %1144 = vmatpush1.bf16.msra.mxu0 0
    %1145 = vmatprep.subr.bf16.mxu0 0
    %1146 = vmatpush1.bf16.msra.mxu0 0
    %1147 = vmatprep.subr.bf16.mxu0 0
    %1148 = vmatpush1.bf16.msra.mxu0 0
    %1149 = vmatprep.subr.bf16.mxu0 0
    %1150 = vmatpush1.bf16.msra.mxu0 0
    %1151 = vmatprep.subr.bf16.mxu0 0
    %1152 = vmatpush1.bf16.msra.mxu0 0
    %1153 = vmatprep.subr.bf16.mxu0 0
    %1154 = vmatpush1.bf16.msra.mxu0 0
    %1155 = vmatprep.subr.bf16.mxu0 0
    %1156 = vmatpush1.bf16.msra.mxu0 0
    %1157 = vmatprep.subr.bf16.mxu0 0
    %1158 = vmatpush1.bf16.msra.mxu0 0
    %1159 = vmatprep.mubr.bf16.mxu0 0
    %1160 = vmatmul.mubr.bf16.gmra.mrb[0].mxu0 %v1126
    %v1161 = vpop.f32.mrb[0].mxu0
    %v1162 = vadd.f32 0.0, %v1161
    %v1163 = vpop.f32.mrb[0].mxu0
    %v1164 = vpop.f32.mrb[0].mxu0
    %v1165 = vpop.f32.mrb[0].mxu0
    %1166 = vdwg.mxu0
    %v1167 = vmul.f32 %v1013, %v878
    %v1168 = vpack.c.bf16 %v1167, %v1167
    %1169 = vmatprep.subr.bf16.mxu0 0
    %1170 = vmatpush1.bf16.msra.mxu0 %v1069
    %1171 = vmatprep.subr.bf16.mxu0 0
    %1172 = vmatpush1.bf16.msra.mxu0 %v1070
    %1173 = vmatprep.subr.bf16.mxu0 0
    %1174 = vmatpush1.bf16.msra.mxu0 %v1071
    %1175 = vmatprep.subr.bf16.mxu0 0
    %1176 = vmatpush1.bf16.msra.mxu0 %v1072
    %1177 = vmatprep.subr.bf16.mxu0 0
    %1178 = vmatpush1.bf16.msra.mxu0 %v1073
    %1179 = vmatprep.subr.bf16.mxu0 0
    %1180 = vmatpush1.bf16.msra.mxu0 %v1074
    %1181 = vmatprep.subr.bf16.mxu0 0
    %1182 = vmatpush1.bf16.msra.mxu0 %v1075
    %1183 = vmatprep.subr.bf16.mxu0 0
    %1184 = vmatpush1.bf16.msra.mxu0 %v1076
    %1185 = vmatprep.subr.bf16.mxu0 0
    %1186 = vmatpush1.bf16.msra.mxu0 0
    %1187 = vmatprep.subr.bf16.mxu0 0
    %1188 = vmatpush1.bf16.msra.mxu0 0
    %1189 = vmatprep.subr.bf16.mxu0 0
    %1190 = vmatpush1.bf16.msra.mxu0 0
    %1191 = vmatprep.subr.bf16.mxu0 0
    %1192 = vmatpush1.bf16.msra.mxu0 0
    %1193 = vmatprep.subr.bf16.mxu0 0
    %1194 = vmatpush1.bf16.msra.mxu0 0
    %1195 = vmatprep.subr.bf16.mxu0 0
    %1196 = vmatpush1.bf16.msra.mxu0 0
    %1197 = vmatprep.subr.bf16.mxu0 0
    %1198 = vmatpush1.bf16.msra.mxu0 0
    %1199 = vmatprep.subr.bf16.mxu0 0
    %1200 = vmatpush1.bf16.msra.mxu0 0
    %1201 = vmatprep.mubr.bf16.mxu0 0
    %1202 = vmatmul.mubr.bf16.gmra.mrb[0].mxu0 %v1168
    %v1203 = vpop.f32.mrb[0].mxu0
    %v1204 = vadd.f32 0.0, %v1203
    %v1205 = vpop.f32.mrb[0].mxu0
    %v1206 = vpop.f32.mrb[0].mxu0
    %v1207 = vpop.f32.mrb[0].mxu0
    %1208 = vdwg.mxu0
    %v1209 = vmul.f32 %v1013, %v882
    %v1210 = vpack.c.bf16 %v1209, %v1209
    %1211 = vmatprep.subr.bf16.mxu0 0
    %1212 = vmatpush1.bf16.msra.mxu0 %v1069
    %1213 = vmatprep.subr.bf16.mxu0 0
    %1214 = vmatpush1.bf16.msra.mxu0 %v1070
    %1215 = vmatprep.subr.bf16.mxu0 0
    %1216 = vmatpush1.bf16.msra.mxu0 %v1071
    %1217 = vmatprep.subr.bf16.mxu0 0
    %1218 = vmatpush1.bf16.msra.mxu0 %v1072
    %1219 = vmatprep.subr.bf16.mxu0 0
    %1220 = vmatpush1.bf16.msra.mxu0 %v1073
    %1221 = vmatprep.subr.bf16.mxu0 0
    %1222 = vmatpush1.bf16.msra.mxu0 %v1074
    %1223 = vmatprep.subr.bf16.mxu0 0
    %1224 = vmatpush1.bf16.msra.mxu0 %v1075
    %1225 = vmatprep.subr.bf16.mxu0 0
    %1226 = vmatpush1.bf16.msra.mxu0 %v1076
    %1227 = vmatprep.subr.bf16.mxu0 0
    %1228 = vmatpush1.bf16.msra.mxu0 0
    %1229 = vmatprep.subr.bf16.mxu0 0
    %1230 = vmatpush1.bf16.msra.mxu0 0
    %1231 = vmatprep.subr.bf16.mxu0 0
    %1232 = vmatpush1.bf16.msra.mxu0 0
    %1233 = vmatprep.subr.bf16.mxu0 0
    %1234 = vmatpush1.bf16.msra.mxu0 0
    %1235 = vmatprep.subr.bf16.mxu0 0
    %1236 = vmatpush1.bf16.msra.mxu0 0
    %1237 = vmatprep.subr.bf16.mxu0 0
    %1238 = vmatpush1.bf16.msra.mxu0 0
    %1239 = vmatprep.subr.bf16.mxu0 0
    %1240 = vmatpush1.bf16.msra.mxu0 0
    %1241 = vmatprep.subr.bf16.mxu0 0
    %1242 = vmatpush1.bf16.msra.mxu0 0
    %1243 = vmatprep.mubr.bf16.mxu0 0
    %1244 = vmatmul.mubr.bf16.gmra.mrb[0].mxu0 %v1210
    %v1245 = vpop.f32.mrb[0].mxu0
    %v1246 = vadd.f32 0.0, %v1245
    %v1247 = vpop.f32.mrb[0].mxu0
    %v1248 = vpop.f32.mrb[0].mxu0
    %v1249 = vpop.f32.mrb[0].mxu0
    %1250 = vdwg.mxu0
    %v1251 = vmul.f32 %v1013, %v888
    %v1252 = vpack.c.bf16 %v1251, %v1251
    %1253 = vmatprep.subr.bf16.mxu0 0
    %1254 = vmatpush1.bf16.msra.mxu0 %v1069
    %1255 = vmatprep.subr.bf16.mxu0 0
    %1256 = vmatpush1.bf16.msra.mxu0 %v1070
    %1257 = vmatprep.subr.bf16.mxu0 0
    %1258 = vmatpush1.bf16.msra.mxu0 %v1071
    %1259 = vmatprep.subr.bf16.mxu0 0
    %1260 = vmatpush1.bf16.msra.mxu0 %v1072
    %1261 = vmatprep.subr.bf16.mxu0 0
    %1262 = vmatpush1.bf16.msra.mxu0 %v1073
    %1263 = vmatprep.subr.bf16.mxu0 0
    %1264 = vmatpush1.bf16.msra.mxu0 %v1074
    %1265 = vmatprep.subr.bf16.mxu0 0
    %1266 = vmatpush1.bf16.msra.mxu0 %v1075
    %1267 = vmatprep.subr.bf16.mxu0 0
    %1268 = vmatpush1.bf16.msra.mxu0 %v1076
    %1269 = vmatprep.subr.bf16.mxu0 0
    %1270 = vmatpush1.bf16.msra.mxu0 0
    %1271 = vmatprep.subr.bf16.mxu0 0
    %1272 = vmatpush1.bf16.msra.mxu0 0
    %1273 = vmatprep.subr.bf16.mxu0 0
    %1274 = vmatpush1.bf16.msra.mxu0 0
    %1275 = vmatprep.subr.bf16.mxu0 0
    %1276 = vmatpush1.bf16.msra.mxu0 0
    %1277 = vmatprep.subr.bf16.mxu0 0
    %1278 = vmatpush1.bf16.msra.mxu0 0
    %1279 = vmatprep.subr.bf16.mxu0 0
    %1280 = vmatpush1.bf16.msra.mxu0 0
    %1281 = vmatprep.subr.bf16.mxu0 0
    %1282 = vmatpush1.bf16.msra.mxu0 0
    %1283 = vmatprep.subr.bf16.mxu0 0
    %1284 = vmatpush1.bf16.msra.mxu0 0
    %1285 = vmatprep.mubr.bf16.mxu0 0
    %1286 = vmatmul.mubr.bf16.gmra.mrb[0].mxu0 %v1252
    %v1287 = vpop.f32.mrb[0].mxu0
    %v1288 = vadd.f32 0.0, %v1287
    %v1289 = vpop.f32.mrb[0].mxu0
    %v1290 = vpop.f32.mrb[0].mxu0
    %v1291 = vpop.f32.mrb[0].mxu0
    %1292 = vdwg.mxu0
    %v1293 = vmul.f32 %v1013, %v892
    %v1294 = vpack.c.bf16 %v1293, %v1293
    %1295 = vmatprep.subr.bf16.mxu0 0
    %1296 = vmatpush1.bf16.msra.mxu0 %v1069
    %1297 = vmatprep.subr.bf16.mxu0 0
    %1298 = vmatpush1.bf16.msra.mxu0 %v1070
    %1299 = vmatprep.subr.bf16.mxu0 0
    %1300 = vmatpush1.bf16.msra.mxu0 %v1071
    %1301 = vmatprep.subr.bf16.mxu0 0
    %1302 = vmatpush1.bf16.msra.mxu0 %v1072
    %1303 = vmatprep.subr.bf16.mxu0 0
    %1304 = vmatpush1.bf16.msra.mxu0 %v1073
    %1305 = vmatprep.subr.bf16.mxu0 0
    %1306 = vmatpush1.bf16.msra.mxu0 %v1074
    %1307 = vmatprep.subr.bf16.mxu0 0
    %1308 = vmatpush1.bf16.msra.mxu0 %v1075
    %1309 = vmatprep.subr.bf16.mxu0 0
    %1310 = vmatpush1.bf16.msra.mxu0 %v1076
    %1311 = vmatprep.subr.bf16.mxu0 0
    %1312 = vmatpush1.bf16.msra.mxu0 0
    %1313 = vmatprep.subr.bf16.mxu0 0
    %1314 = vmatpush1.bf16.msra.mxu0 0
    %1315 = vmatprep.subr.bf16.mxu0 0
    %1316 = vmatpush1.bf16.msra.mxu0 0
    %1317 = vmatprep.subr.bf16.mxu0 0
    %1318 = vmatpush1.bf16.msra.mxu0 0
    %1319 = vmatprep.subr.bf16.mxu0 0
    %1320 = vmatpush1.bf16.msra.mxu0 0
    %1321 = vmatprep.subr.bf16.mxu0 0
    %1322 = vmatpush1.bf16.msra.mxu0 0
    %1323 = vmatprep.subr.bf16.mxu0 0
    %1324 = vmatpush1.bf16.msra.mxu0 0
    %1325 = vmatprep.subr.bf16.mxu0 0
    %1326 = vmatpush1.bf16.msra.mxu0 0
    %1327 = vmatprep.mubr.bf16.mxu0 0
    %1328 = vmatmul.mubr.bf16.gmra.mrb[0].mxu0 %v1294
    %v1329 = vpop.f32.mrb[0].mxu0
    %v1330 = vadd.f32 0.0, %v1329
    %v1331 = vpop.f32.mrb[0].mxu0
    %v1332 = vpop.f32.mrb[0].mxu0
    %v1333 = vpop.f32.mrb[0].mxu0
    %1334 = vdwg.mxu0
    %v1335 = vmul.f32 %v1013, %v898
    %v1336 = vpack.c.bf16 %v1335, %v1335
    %1337 = vmatprep.subr.bf16.mxu0 0
    %1338 = vmatpush1.bf16.msra.mxu0 %v1069
    %1339 = vmatprep.subr.bf16.mxu0 0
    %1340 = vmatpush1.bf16.msra.mxu0 %v1070
    %1341 = vmatprep.subr.bf16.mxu0 0
    %1342 = vmatpush1.bf16.msra.mxu0 %v1071
    %1343 = vmatprep.subr.bf16.mxu0 0
    %1344 = vmatpush1.bf16.msra.mxu0 %v1072
    %1345 = vmatprep.subr.bf16.mxu0 0
    %1346 = vmatpush1.bf16.msra.mxu0 %v1073
    %1347 = vmatprep.subr.bf16.mxu0 0
    %1348 = vmatpush1.bf16.msra.mxu0 %v1074
    %1349 = vmatprep.subr.bf16.mxu0 0
    %1350 = vmatpush1.bf16.msra.mxu0 %v1075
    %1351 = vmatprep.subr.bf16.mxu0 0
    %1352 = vmatpush1.bf16.msra.mxu0 %v1076
    %1353 = vmatprep.subr.bf16.mxu0 0
    %1354 = vmatpush1.bf16.msra.mxu0 0
    %1355 = vmatprep.subr.bf16.mxu0 0
    %1356 = vmatpush1.bf16.msra.mxu0 0
    %1357 = vmatprep.subr.bf16.mxu0 0
    %1358 = vmatpush1.bf16.msra.mxu0 0
    %1359 = vmatprep.subr.bf16.mxu0 0
    %1360 = vmatpush1.bf16.msra.mxu0 0
    %1361 = vmatprep.subr.bf16.mxu0 0
    %1362 = vmatpush1.bf16.msra.mxu0 0
    %1363 = vmatprep.subr.bf16.mxu0 0
    %1364 = vmatpush1.bf16.msra.mxu0 0
    %1365 = vmatprep.subr.bf16.mxu0 0
    %1366 = vmatpush1.bf16.msra.mxu0 0
    %1367 = vmatprep.subr.bf16.mxu0 0
    %1368 = vmatpush1.bf16.msra.mxu0 0
    %1369 = vmatprep.mubr.bf16.mxu0 0
    %1370 = vmatmul.mubr.bf16.gmra.mrb[0].mxu0 %v1336
    %v1371 = vpop.f32.mrb[0].mxu0
    %v1372 = vadd.f32 0.0, %v1371
    %v1373 = vpop.f32.mrb[0].mxu0
    %v1374 = vpop.f32.mrb[0].mxu0
    %v1375 = vpop.f32.mrb[0].mxu0
    %1376 = vdwg.mxu0
    %v1377 = vmul.f32 %v1013, %v902
    %v1378 = vpack.c.bf16 %v1377, %v1377
    %1379 = vmatprep.subr.bf16.mxu0 0
    %1380 = vmatpush1.bf16.msra.mxu0 %v1069
    %1381 = vmatprep.subr.bf16.mxu0 0
    %1382 = vmatpush1.bf16.msra.mxu0 %v1070
    %1383 = vmatprep.subr.bf16.mxu0 0
    %1384 = vmatpush1.bf16.msra.mxu0 %v1071
    %1385 = vmatprep.subr.bf16.mxu0 0
    %1386 = vmatpush1.bf16.msra.mxu0 %v1072
    %1387 = vmatprep.subr.bf16.mxu0 0
    %1388 = vmatpush1.bf16.msra.mxu0 %v1073
    %1389 = vmatprep.subr.bf16.mxu0 0
    %1390 = vmatpush1.bf16.msra.mxu0 %v1074
    %1391 = vmatprep.subr.bf16.mxu0 0
    %1392 = vmatpush1.bf16.msra.mxu0 %v1075
    %1393 = vmatprep.subr.bf16.mxu0 0
    %1394 = vmatpush1.bf16.msra.mxu0 %v1076
    %1395 = vmatprep.subr.bf16.mxu0 0
    %1396 = vmatpush1.bf16.msra.mxu0 0
    %1397 = vmatprep.subr.bf16.mxu0 0
    %1398 = vmatpush1.bf16.msra.mxu0 0
    %1399 = vmatprep.subr.bf16.mxu0 0
    %1400 = vmatpush1.bf16.msra.mxu0 0
    %1401 = vmatprep.subr.bf16.mxu0 0
    %1402 = vmatpush1.bf16.msra.mxu0 0
    %1403 = vmatprep.subr.bf16.mxu0 0
    %1404 = vmatpush1.bf16.msra.mxu0 0
    %1405 = vmatprep.subr.bf16.mxu0 0
    %1406 = vmatpush1.bf16.msra.mxu0 0
    %1407 = vmatprep.subr.bf16.mxu0 0
    %1408 = vmatpush1.bf16.msra.mxu0 0
    %1409 = vmatprep.subr.bf16.mxu0 0
    %1410 = vmatpush1.bf16.msra.mxu0 0
    %1411 = vmatprep.mubr.bf16.mxu0 0
    %1412 = vmatmul.mubr.bf16.gmra.mrb[0].mxu0 %v1378
    %v1413 = vpop.f32.mrb[0].mxu0
    %v1414 = vadd.f32 0.0, %v1413
    %v1415 = vpop.f32.mrb[0].mxu0
    %v1416 = vpop.f32.mrb[0].mxu0
    %v1417 = vpop.f32.mrb[0].mxu0
    %1418 = vdwg.mxu0
    %v1419 = vmax.f32 %v1120, %v1162
    %v1420 = vmax.f32 %v1419, %v1204
    %v1421 = vmax.f32 %v1420, %v1246
    %v1422 = vmax.f32 %v1421, %v1288
    %v1423 = vmax.f32 %v1422, %v1330
    %v1424 = vmax.f32 %v1423, %v1372
    %v1425 = vmax.f32 %v1424, %v1414
    %v1426 = vsub.f32 %v1120, %v1425
    %v1427 = vmul.f32 %v1426, 1.442695
    %v1428 = vpow.pop %v1427
    %v1429 = vsub.f32 %v1162, %v1425
    %v1430 = vmul.f32 %v1429, 1.442695
    %v1431 = vpow.pop %v1430
    %v1432 = vsub.f32 %v1204, %v1425
    %v1433 = vmul.f32 %v1432, 1.442695
    %v1434 = vpow.pop %v1433
    %v1435 = vsub.f32 %v1246, %v1425
    %v1436 = vmul.f32 %v1435, 1.442695
    %v1437 = vpow.pop %v1436
    %v1438 = vsub.f32 %v1288, %v1425
    %v1439 = vmul.f32 %v1438, 1.442695
    %v1440 = vpow.pop %v1439
    %v1441 = vsub.f32 %v1330, %v1425
    %v1442 = vmul.f32 %v1441, 1.442695
    %v1443 = vpow.pop %v1442
    %v1444 = vsub.f32 %v1372, %v1425
    %v1445 = vmul.f32 %v1444, 1.442695
    %v1446 = vpow.pop %v1445
    %v1447 = vsub.f32 %v1414, %v1425
    %v1448 = vmul.f32 %v1447, 1.442695
    %v1449 = vpow.pop %v1448
    %v1450 = vadd.f32 %v1428, %v1431
    %v1451 = vadd.f32 %v1450, %v1434
    %v1452 = vadd.f32 %v1451, %v1437
    %v1453 = vadd.f32 %v1452, %v1440
    %v1454 = vadd.f32 %v1453, %v1443
    %v1455 = vadd.f32 %v1454, %v1446
    %v1456 = vadd.f32 %v1455, %v1449
    %v1457 = vrcp.pop %v1456
    %v1458 = vmul.f32 %v1428, %v1457
    %v1459 = vpack.c.bf16 %v1458, %v1458
    %vm1460 = vcmask 31744
    %v1462 = vsel %vm1460, %v1459, 0
    %vm1464 = vcmask 1041408
    %v1466 = vsel %vm1464, %v1034, 0
    %1468 = vmatprep.subr.bf16.mxu0 0
    %1469 = vmatpush1.bf16.msra.mxu0 %v1466
    %1470 = vmatprep.subr.bf16.mxu0 0
    %1471 = vmatpush1.bf16.msra.mxu0 0
    %1472 = vmatprep.subr.bf16.mxu0 0
    %1473 = vmatpush1.bf16.msra.mxu0 0
    %1474 = vmatprep.subr.bf16.mxu0 0
    %1475 = vmatpush1.bf16.msra.mxu0 0
    %1476 = vmatprep.subr.bf16.mxu0 0
    %1477 = vmatpush1.bf16.msra.mxu0 0
    %1478 = vmatprep.subr.bf16.mxu0 0
    %1479 = vmatpush1.bf16.msra.mxu0 0
    %1480 = vmatprep.subr.bf16.mxu0 0
    %1481 = vmatpush1.bf16.msra.mxu0 0
    %1482 = vmatprep.subr.bf16.mxu0 0
    %1483 = vmatpush1.bf16.msra.mxu0 0
    %1484 = vmatprep.subr.bf16.mxu0 0
    %1485 = vmatpush1.bf16.msra.mxu0 0
    %1486 = vmatprep.subr.bf16.mxu0 0
    %1487 = vmatpush1.bf16.msra.mxu0 0
    %1488 = vmatprep.subr.bf16.mxu0 0
    %1489 = vmatpush1.bf16.msra.mxu0 0
    %1490 = vmatprep.subr.bf16.mxu0 0
    %1491 = vmatpush1.bf16.msra.mxu0 0
    %1492 = vmatprep.subr.bf16.mxu0 0
    %1493 = vmatpush1.bf16.msra.mxu0 0
    %1494 = vmatprep.subr.bf16.mxu0 0
    %1495 = vmatpush1.bf16.msra.mxu0 0
    %1496 = vmatprep.subr.bf16.mxu0 0
    %1497 = vmatpush1.bf16.msra.mxu0 0
    %1498 = vmatprep.subr.bf16.mxu0 0
    %1499 = vmatpush1.bf16.msra.mxu0 0
    %1500 = vmatprep.mubr.bf16.mxu0 0
    %1501 = vmatmul.mubr.bf16.gmra.mrb[0].mxu0 %v1462
    %v1502 = vpop.f32.mrb[0].mxu0
    %v1503 = vadd.f32 0.0, %v1502
    %v1504 = vpop.f32.mrb[0].mxu0
    %v1505 = vpop.f32.mrb[0].mxu0
    %v1506 = vpop.f32.mrb[0].mxu0
    %1507 = vdwg.mxu0
    %v1508 = vmul.f32 %v1503, %v870
    %v1509 = vadd.f32 %v1508, 0.0
    %v1510 = vmul.f32 %v1431, %v1457
    %v1511 = vpack.c.bf16 %v1510, %v1510
    %v1513 = vsel %vm1460, %v1511, 0
    %1515 = vmatprep.subr.bf16.mxu0 0
    %1516 = vmatpush1.bf16.msra.mxu0 %v1466
    %1517 = vmatprep.subr.bf16.mxu0 0
    %1518 = vmatpush1.bf16.msra.mxu0 0
    %1519 = vmatprep.subr.bf16.mxu0 0
    %1520 = vmatpush1.bf16.msra.mxu0 0
    %1521 = vmatprep.subr.bf16.mxu0 0
    %1522 = vmatpush1.bf16.msra.mxu0 0
    %1523 = vmatprep.subr.bf16.mxu0 0
    %1524 = vmatpush1.bf16.msra.mxu0 0
    %1525 = vmatprep.subr.bf16.mxu0 0
    %1526 = vmatpush1.bf16.msra.mxu0 0
    %1527 = vmatprep.subr.bf16.mxu0 0
    %1528 = vmatpush1.bf16.msra.mxu0 0
    %1529 = vmatprep.subr.bf16.mxu0 0
    %1530 = vmatpush1.bf16.msra.mxu0 0
    %1531 = vmatprep.subr.bf16.mxu0 0
    %1532 = vmatpush1.bf16.msra.mxu0 0
    %1533 = vmatprep.subr.bf16.mxu0 0
    %1534 = vmatpush1.bf16.msra.mxu0 0
    %1535 = vmatprep.subr.bf16.mxu0 0
    %1536 = vmatpush1.bf16.msra.mxu0 0
    %1537 = vmatprep.subr.bf16.mxu0 0
    %1538 = vmatpush1.bf16.msra.mxu0 0
    %1539 = vmatprep.subr.bf16.mxu0 0
    %1540 = vmatpush1.bf16.msra.mxu0 0
    %1541 = vmatprep.subr.bf16.mxu0 0
    %1542 = vmatpush1.bf16.msra.mxu0 0
    %1543 = vmatprep.subr.bf16.mxu0 0
    %1544 = vmatpush1.bf16.msra.mxu0 0
    %1545 = vmatprep.subr.bf16.mxu0 0
    %1546 = vmatpush1.bf16.msra.mxu0 0
    %1547 = vmatprep.mubr.bf16.mxu0 0
    %1548 = vmatmul.mubr.bf16.gmra.mrb[0].mxu0 %v1513
    %v1549 = vpop.f32.mrb[0].mxu0
    %v1550 = vadd.f32 0.0, %v1549
    %v1551 = vpop.f32.mrb[0].mxu0
    %v1552 = vpop.f32.mrb[0].mxu0
    %v1553 = vpop.f32.mrb[0].mxu0
    %1554 = vdwg.mxu0
    %v1555 = vmul.f32 %v1550, %v874
    %v1556 = vadd.f32 %v1509, %v1555
    %v1557 = vmul.f32 %v1434, %v1457
    %v1558 = vpack.c.bf16 %v1557, %v1557
    %v1560 = vsel %vm1460, %v1558, 0
    %1562 = vmatprep.subr.bf16.mxu0 0
    %1563 = vmatpush1.bf16.msra.mxu0 %v1466
    %1564 = vmatprep.subr.bf16.mxu0 0
    %1565 = vmatpush1.bf16.msra.mxu0 0
    %1566 = vmatprep.subr.bf16.mxu0 0
    %1567 = vmatpush1.bf16.msra.mxu0 0
    %1568 = vmatprep.subr.bf16.mxu0 0
    %1569 = vmatpush1.bf16.msra.mxu0 0
    %1570 = vmatprep.subr.bf16.mxu0 0
    %1571 = vmatpush1.bf16.msra.mxu0 0
    %1572 = vmatprep.subr.bf16.mxu0 0
    %1573 = vmatpush1.bf16.msra.mxu0 0
    %1574 = vmatprep.subr.bf16.mxu0 0
    %1575 = vmatpush1.bf16.msra.mxu0 0
    %1576 = vmatprep.subr.bf16.mxu0 0
    %1577 = vmatpush1.bf16.msra.mxu0 0
    %1578 = vmatprep.subr.bf16.mxu0 0
    %1579 = vmatpush1.bf16.msra.mxu0 0
    %1580 = vmatprep.subr.bf16.mxu0 0
    %1581 = vmatpush1.bf16.msra.mxu0 0
    %1582 = vmatprep.subr.bf16.mxu0 0
    %1583 = vmatpush1.bf16.msra.mxu0 0
    %1584 = vmatprep.subr.bf16.mxu0 0
    %1585 = vmatpush1.bf16.msra.mxu0 0
    %1586 = vmatprep.subr.bf16.mxu0 0
    %1587 = vmatpush1.bf16.msra.mxu0 0
    %1588 = vmatprep.subr.bf16.mxu0 0
    %1589 = vmatpush1.bf16.msra.mxu0 0
    %1590 = vmatprep.subr.bf16.mxu0 0
    %1591 = vmatpush1.bf16.msra.mxu0 0
    %1592 = vmatprep.subr.bf16.mxu0 0
    %1593 = vmatpush1.bf16.msra.mxu0 0
    %1594 = vmatprep.mubr.bf16.mxu0 0
    %1595 = vmatmul.mubr.bf16.gmra.mrb[0].mxu0 %v1560
    %v1596 = vpop.f32.mrb[0].mxu0
    %v1597 = vadd.f32 0.0, %v1596
    %v1598 = vpop.f32.mrb[0].mxu0
    %v1599 = vpop.f32.mrb[0].mxu0
    %v1600 = vpop.f32.mrb[0].mxu0
    %1601 = vdwg.mxu0
    %v1602 = vmul.f32 %v1597, %v880
    %v1603 = vadd.f32 %v1556, %v1602
    %v1604 = vmul.f32 %v1437, %v1457
    %v1605 = vpack.c.bf16 %v1604, %v1604
    %v1607 = vsel %vm1460, %v1605, 0
    %1609 = vmatprep.subr.bf16.mxu0 0
    %1610 = vmatpush1.bf16.msra.mxu0 %v1466
    %1611 = vmatprep.subr.bf16.mxu0 0
    %1612 = vmatpush1.bf16.msra.mxu0 0
    %1613 = vmatprep.subr.bf16.mxu0 0
    %1614 = vmatpush1.bf16.msra.mxu0 0
    %1615 = vmatprep.subr.bf16.mxu0 0
    %1616 = vmatpush1.bf16.msra.mxu0 0
    %1617 = vmatprep.subr.bf16.mxu0 0
    %1618 = vmatpush1.bf16.msra.mxu0 0
    %1619 = vmatprep.subr.bf16.mxu0 0
    %1620 = vmatpush1.bf16.msra.mxu0 0
    %1621 = vmatprep.subr.bf16.mxu0 0
    %1622 = vmatpush1.bf16.msra.mxu0 0
    %1623 = vmatprep.subr.bf16.mxu0 0
    %1624 = vmatpush1.bf16.msra.mxu0 0
    %1625 = vmatprep.subr.bf16.mxu0 0
    %1626 = vmatpush1.bf16.msra.mxu0 0
    %1627 = vmatprep.subr.bf16.mxu0 0
    %1628 = vmatpush1.bf16.msra.mxu0 0
    %1629 = vmatprep.subr.bf16.mxu0 0
    %1630 = vmatpush1.bf16.msra.mxu0 0
    %1631 = vmatprep.subr.bf16.mxu0 0
    %1632 = vmatpush1.bf16.msra.mxu0 0
    %1633 = vmatprep.subr.bf16.mxu0 0
    %1634 = vmatpush1.bf16.msra.mxu0 0
    %1635 = vmatprep.subr.bf16.mxu0 0
    %1636 = vmatpush1.bf16.msra.mxu0 0
    %1637 = vmatprep.subr.bf16.mxu0 0
    %1638 = vmatpush1.bf16.msra.mxu0 0
    %1639 = vmatprep.subr.bf16.mxu0 0
    %1640 = vmatpush1.bf16.msra.mxu0 0
    %1641 = vmatprep.mubr.bf16.mxu0 0
    %1642 = vmatmul.mubr.bf16.gmra.mrb[0].mxu0 %v1607
    %v1643 = vpop.f32.mrb[0].mxu0
    %v1644 = vadd.f32 0.0, %v1643
    %v1645 = vpop.f32.mrb[0].mxu0
    %v1646 = vpop.f32.mrb[0].mxu0
    %v1647 = vpop.f32.mrb[0].mxu0
    %1648 = vdwg.mxu0
    %v1649 = vmul.f32 %v1644, %v884
    %v1650 = vadd.f32 %v1603, %v1649
    %v1651 = vmul.f32 %v1440, %v1457
    %v1652 = vpack.c.bf16 %v1651, %v1651
    %v1654 = vsel %vm1460, %v1652, 0
    %1656 = vmatprep.subr.bf16.mxu0 0
    %1657 = vmatpush1.bf16.msra.mxu0 %v1466
    %1658 = vmatprep.subr.bf16.mxu0 0
    %1659 = vmatpush1.bf16.msra.mxu0 0
    %1660 = vmatprep.subr.bf16.mxu0 0
    %1661 = vmatpush1.bf16.msra.mxu0 0
    %1662 = vmatprep.subr.bf16.mxu0 0
    %1663 = vmatpush1.bf16.msra.mxu0 0
    %1664 = vmatprep.subr.bf16.mxu0 0
    %1665 = vmatpush1.bf16.msra.mxu0 0
    %1666 = vmatprep.subr.bf16.mxu0 0
    %1667 = vmatpush1.bf16.msra.mxu0 0
    %1668 = vmatprep.subr.bf16.mxu0 0
    %1669 = vmatpush1.bf16.msra.mxu0 0
    %1670 = vmatprep.subr.bf16.mxu0 0
    %1671 = vmatpush1.bf16.msra.mxu0 0
    %1672 = vmatprep.subr.bf16.mxu0 0
    %1673 = vmatpush1.bf16.msra.mxu0 0
    %1674 = vmatprep.subr.bf16.mxu0 0
    %1675 = vmatpush1.bf16.msra.mxu0 0
    %1676 = vmatprep.subr.bf16.mxu0 0
    %1677 = vmatpush1.bf16.msra.mxu0 0
    %1678 = vmatprep.subr.bf16.mxu0 0
    %1679 = vmatpush1.bf16.msra.mxu0 0
    %1680 = vmatprep.subr.bf16.mxu0 0
    %1681 = vmatpush1.bf16.msra.mxu0 0
    %1682 = vmatprep.subr.bf16.mxu0 0
    %1683 = vmatpush1.bf16.msra.mxu0 0
    %1684 = vmatprep.subr.bf16.mxu0 0
    %1685 = vmatpush1.bf16.msra.mxu0 0
    %1686 = vmatprep.subr.bf16.mxu0 0
    %1687 = vmatpush1.bf16.msra.mxu0 0
    %1688 = vmatprep.mubr.bf16.mxu0 0
    %1689 = vmatmul.mubr.bf16.gmra.mrb[0].mxu0 %v1654
    %v1690 = vpop.f32.mrb[0].mxu0
    %v1691 = vadd.f32 0.0, %v1690
    %v1692 = vpop.f32.mrb[0].mxu0
    %v1693 = vpop.f32.mrb[0].mxu0
    %v1694 = vpop.f32.mrb[0].mxu0
    %1695 = vdwg.mxu0
    %v1696 = vmul.f32 %v1691, %v890
    %v1697 = vadd.f32 %v1650, %v1696
    %v1698 = vmul.f32 %v1443, %v1457
    %v1699 = vpack.c.bf16 %v1698, %v1698
    %v1701 = vsel %vm1460, %v1699, 0
    %1703 = vmatprep.subr.bf16.mxu0 0
    %1704 = vmatpush1.bf16.msra.mxu0 %v1466
    %1705 = vmatprep.subr.bf16.mxu0 0
    %1706 = vmatpush1.bf16.msra.mxu0 0
    %1707 = vmatprep.subr.bf16.mxu0 0
    %1708 = vmatpush1.bf16.msra.mxu0 0
    %1709 = vmatprep.subr.bf16.mxu0 0
    %1710 = vmatpush1.bf16.msra.mxu0 0
    %1711 = vmatprep.subr.bf16.mxu0 0
    %1712 = vmatpush1.bf16.msra.mxu0 0
    %1713 = vmatprep.subr.bf16.mxu0 0
    %1714 = vmatpush1.bf16.msra.mxu0 0
    %1715 = vmatprep.subr.bf16.mxu0 0
    %1716 = vmatpush1.bf16.msra.mxu0 0
    %1717 = vmatprep.subr.bf16.mxu0 0
    %1718 = vmatpush1.bf16.msra.mxu0 0
    %1719 = vmatprep.subr.bf16.mxu0 0
    %1720 = vmatpush1.bf16.msra.mxu0 0
    %1721 = vmatprep.subr.bf16.mxu0 0
    %1722 = vmatpush1.bf16.msra.mxu0 0
    %1723 = vmatprep.subr.bf16.mxu0 0
    %1724 = vmatpush1.bf16.msra.mxu0 0
    %1725 = vmatprep.subr.bf16.mxu0 0
    %1726 = vmatpush1.bf16.msra.mxu0 0
    %1727 = vmatprep.subr.bf16.mxu0 0
    %1728 = vmatpush1.bf16.msra.mxu0 0
    %1729 = vmatprep.subr.bf16.mxu0 0
    %1730 = vmatpush1.bf16.msra.mxu0 0
    %1731 = vmatprep.subr.bf16.mxu0 0
    %1732 = vmatpush1.bf16.msra.mxu0 0
    %1733 = vmatprep.subr.bf16.mxu0 0
    %1734 = vmatpush1.bf16.msra.mxu0 0
    %1735 = vmatprep.mubr.bf16.mxu0 0
    %1736 = vmatmul.mubr.bf16.gmra.mrb[0].mxu0 %v1701
    %v1737 = vpop.f32.mrb[0].mxu0
    %v1738 = vadd.f32 0.0, %v1737
    %v1739 = vpop.f32.mrb[0].mxu0
    %v1740 = vpop.f32.mrb[0].mxu0
    %v1741 = vpop.f32.mrb[0].mxu0
    %1742 = vdwg.mxu0
    %v1743 = vmul.f32 %v1738, %v894
    %v1744 = vadd.f32 %v1697, %v1743
    %v1745 = vmul.f32 %v1446, %v1457
    %v1746 = vpack.c.bf16 %v1745, %v1745
    %v1748 = vsel %vm1460, %v1746, 0
    %1750 = vmatprep.subr.bf16.mxu0 0
    %1751 = vmatpush1.bf16.msra.mxu0 %v1466
    %1752 = vmatprep.subr.bf16.mxu0 0
    %1753 = vmatpush1.bf16.msra.mxu0 0
    %1754 = vmatprep.subr.bf16.mxu0 0
    %1755 = vmatpush1.bf16.msra.mxu0 0
    %1756 = vmatprep.subr.bf16.mxu0 0
    %1757 = vmatpush1.bf16.msra.mxu0 0
    %1758 = vmatprep.subr.bf16.mxu0 0
    %1759 = vmatpush1.bf16.msra.mxu0 0
    %1760 = vmatprep.subr.bf16.mxu0 0
    %1761 = vmatpush1.bf16.msra.mxu0 0
    %1762 = vmatprep.subr.bf16.mxu0 0
    %1763 = vmatpush1.bf16.msra.mxu0 0
    %1764 = vmatprep.subr.bf16.mxu0 0
    %1765 = vmatpush1.bf16.msra.mxu0 0
    %1766 = vmatprep.subr.bf16.mxu0 0
    %1767 = vmatpush1.bf16.msra.mxu0 0
    %1768 = vmatprep.subr.bf16.mxu0 0
    %1769 = vmatpush1.bf16.msra.mxu0 0
    %1770 = vmatprep.subr.bf16.mxu0 0
    %1771 = vmatpush1.bf16.msra.mxu0 0
    %1772 = vmatprep.subr.bf16.mxu0 0
    %1773 = vmatpush1.bf16.msra.mxu0 0
    %1774 = vmatprep.subr.bf16.mxu0 0
    %1775 = vmatpush1.bf16.msra.mxu0 0
    %1776 = vmatprep.subr.bf16.mxu0 0
    %1777 = vmatpush1.bf16.msra.mxu0 0
    %1778 = vmatprep.subr.bf16.mxu0 0
    %1779 = vmatpush1.bf16.msra.mxu0 0
    %1780 = vmatprep.subr.bf16.mxu0 0
    %1781 = vmatpush1.bf16.msra.mxu0 0
    %1782 = vmatprep.mubr.bf16.mxu0 0
    %1783 = vmatmul.mubr.bf16.gmra.mrb[0].mxu0 %v1748
    %v1784 = vpop.f32.mrb[0].mxu0
    %v1785 = vadd.f32 0.0, %v1784
    %v1786 = vpop.f32.mrb[0].mxu0
    %v1787 = vpop.f32.mrb[0].mxu0
    %v1788 = vpop.f32.mrb[0].mxu0
    %1789 = vdwg.mxu0
    %v1790 = vmul.f32 %v1785, %v900
    %v1791 = vadd.f32 %v1744, %v1790
    %v1792 = vmul.f32 %v1449, %v1457
    %v1793 = vpack.c.bf16 %v1792, %v1792
    %v1795 = vsel %vm1460, %v1793, 0
    %1797 = vmatprep.subr.bf16.mxu0 0
    %1798 = vmatpush1.bf16.msra.mxu0 %v1466
    %1799 = vmatprep.subr.bf16.mxu0 0
    %1800 = vmatpush1.bf16.msra.mxu0 0
    %1801 = vmatprep.subr.bf16.mxu0 0
    %1802 = vmatpush1.bf16.msra.mxu0 0
    %1803 = vmatprep.subr.bf16.mxu0 0
    %1804 = vmatpush1.bf16.msra.mxu0 0
    %1805 = vmatprep.subr.bf16.mxu0 0
    %1806 = vmatpush1.bf16.msra.mxu0 0
    %1807 = vmatprep.subr.bf16.mxu0 0
    %1808 = vmatpush1.bf16.msra.mxu0 0
    %1809 = vmatprep.subr.bf16.mxu0 0
    %1810 = vmatpush1.bf16.msra.mxu0 0
    %1811 = vmatprep.subr.bf16.mxu0 0
    %1812 = vmatpush1.bf16.msra.mxu0 0
    %1813 = vmatprep.subr.bf16.mxu0 0
    %1814 = vmatpush1.bf16.msra.mxu0 0
    %1815 = vmatprep.subr.bf16.mxu0 0
    %1816 = vmatpush1.bf16.msra.mxu0 0
    %1817 = vmatprep.subr.bf16.mxu0 0
    %1818 = vmatpush1.bf16.msra.mxu0 0
    %1819 = vmatprep.subr.bf16.mxu0 0
    %1820 = vmatpush1.bf16.msra.mxu0 0
    %1821 = vmatprep.subr.bf16.mxu0 0
    %1822 = vmatpush1.bf16.msra.mxu0 0
    %1823 = vmatprep.subr.bf16.mxu0 0
    %1824 = vmatpush1.bf16.msra.mxu0 0
    %1825 = vmatprep.subr.bf16.mxu0 0
    %1826 = vmatpush1.bf16.msra.mxu0 0
    %1827 = vmatprep.subr.bf16.mxu0 0
    %1828 = vmatpush1.bf16.msra.mxu0 0
    %1829 = vmatprep.mubr.bf16.mxu0 0
    %1830 = vmatmul.mubr.bf16.gmra.mrb[0].mxu0 %v1795
    %v1831 = vpop.f32.mrb[0].mxu0
    %v1832 = vadd.f32 0.0, %v1831
    %v1833 = vpop.f32.mrb[0].mxu0
    %v1834 = vpop.f32.mrb[0].mxu0
    %v1835 = vpop.f32.mrb[0].mxu0
    %1836 = vdwg.mxu0
    %v1837 = vmul.f32 %v1832, %v904
    %v1838 = vadd.f32 %v1791, %v1837
    %v1839 = vpack.c.bf16 %v1838, %v1838
    %v1840 = vld [vmem:[#allocation22] sm:$0xf]
    %v1841 = vld [vmem:[#allocation22 + $0x4] sm:$0xf]
    %v1842 = vld [vmem:[#allocation22 + $0x8] sm:$0xf]
    %v1843 = vld [vmem:[#allocation22 + $0xc] sm:$0xf]
    %v1844 = vld [vmem:[#allocation22 + $0x10] sm:$0xf]
    %v1845 = vld [vmem:[#allocation22 + $0x14] sm:$0xf]
    %v1846 = vld [vmem:[#allocation22 + $0x18] sm:$0xf]
    %v1847 = vld [vmem:[#allocation22 + $0x1c] sm:$0xf]
    %v1848 = vld [vmem:[#allocation22 + $0x20] sm:$0xf]
    %v1849 = vld [vmem:[#allocation22 + $0x24] sm:$0xf]
    %v1850 = vld [vmem:[#allocation22 + $0x28] sm:$0xf]
    %v1851 = vld [vmem:[#allocation22 + $0x2c] sm:$0xf]
    %v1852 = vld [vmem:[#allocation22 + $0x30] sm:$0xf]
    %v1853 = vld [vmem:[#allocation22 + $0x34] sm:$0xf]
    %v1854 = vld [vmem:[#allocation22 + $0x38] sm:$0xf]
    %v1855 = vld [vmem:[#allocation22 + $0x3c] sm:$0xf]
    %v1856 = vld [vmem:[#allocation23] sm:$0x1]
    %v1858 = vlaneseq
    %v1859 = vshrl.u32 %v1858, 7
    %v1860 = vsub.s32 0, %v1859
    %v1861 = vrot.slane %v1856, %v1860
    %v1879 = vunpack.c.l.b16 %v1840
    %v1880 = vunpack.c.l.b16 %v1841
    %v1881 = vunpack.c.l.b16 %v1842
    %v1882 = vunpack.c.l.b16 %v1843
    %v1883 = vunpack.c.l.b16 %v1844
    %v1884 = vunpack.c.l.b16 %v1845
    %v1885 = vunpack.c.l.b16 %v1846
    %v1886 = vunpack.c.l.b16 %v1847
    %v1887 = vunpack.c.l.b16 %v1848
    %v1888 = vunpack.c.l.b16 %v1849
    %v1889 = vunpack.c.l.b16 %v1850
    %v1890 = vunpack.c.l.b16 %v1851
    %v1891 = vunpack.c.l.b16 %v1852
    %v1892 = vunpack.c.l.b16 %v1853
    %v1893 = vunpack.c.l.b16 %v1854
    %v1894 = vunpack.c.l.b16 %v1855
    %v1895 = vpack.c.b16 %v1880, %v1879
    %v1896 = vpack.c.b16 %v1882, %v1881
    %v1897 = vpack.c.b16 %v1884, %v1883
    %v1898 = vpack.c.b16 %v1886, %v1885
    %v1899 = vpack.c.b16 %v1888, %v1887
    %v1900 = vpack.c.b16 %v1890, %v1889
    %v1901 = vpack.c.b16 %v1892, %v1891
    %v1902 = vpack.c.b16 %v1894, %v1893
    %1911 = vmatprep.subr.bf16.mxu0 0
    %1912 = vmatpush1.bf16.msra.mxu0 %v1895
    %1913 = vmatprep.subr.bf16.mxu0 0
    %1914 = vmatpush1.bf16.msra.mxu0 %v1896
    %1915 = vmatprep.subr.bf16.mxu0 0
    %1916 = vmatpush1.bf16.msra.mxu0 %v1897
    %1917 = vmatprep.subr.bf16.mxu0 0
    %1918 = vmatpush1.bf16.msra.mxu0 %v1898
    %1919 = vmatprep.subr.bf16.mxu0 0
    %1920 = vmatpush1.bf16.msra.mxu0 %v1899
    %1921 = vmatprep.subr.bf16.mxu0 0
    %1922 = vmatpush1.bf16.msra.mxu0 %v1900
    %1923 = vmatprep.subr.bf16.mxu0 0
    %1924 = vmatpush1.bf16.msra.mxu0 %v1901
    %1925 = vmatprep.subr.bf16.mxu0 0
    %1926 = vmatpush1.bf16.msra.mxu0 %v1902
    %1927 = vmatprep.subr.bf16.mxu0 0
    %1928 = vmatpush1.bf16.msra.mxu0 0
    %1929 = vmatprep.subr.bf16.mxu0 0
    %1930 = vmatpush1.bf16.msra.mxu0 0
    %1931 = vmatprep.subr.bf16.mxu0 0
    %1932 = vmatpush1.bf16.msra.mxu0 0
    %1933 = vmatprep.subr.bf16.mxu0 0
    %1934 = vmatpush1.bf16.msra.mxu0 0
    %1935 = vmatprep.subr.bf16.mxu0 0
    %1936 = vmatpush1.bf16.msra.mxu0 0
    %1937 = vmatprep.subr.bf16.mxu0 0
    %1938 = vmatpush1.bf16.msra.mxu0 0
    %1939 = vmatprep.subr.bf16.mxu0 0
    %1940 = vmatpush1.bf16.msra.mxu0 0
    %1941 = vmatprep.subr.bf16.mxu0 0
    %1942 = vmatpush1.bf16.msra.mxu0 0
    %1943 = vmatprep.mubr.bf16.mxu0 0
    %1944 = vmatmul.mubr.bf16.gmra.mrb[0].mxu0 %v1839
    %v1945 = vpop.f32.mrb[0].mxu0
    %v1946 = vadd.f32 %v1861, %v1945
    %v1947 = vpop.f32.mrb[0].mxu0
    %v1948 = vpop.f32.mrb[0].mxu0
    %v1949 = vpop.f32.mrb[0].mxu0
    %1950 = vdwg.mxu0
    %v1951 = vld [vmem:[#allocation10] sm:$0xf]
    %v1952 = vld [vmem:[#allocation10 + $0x4] sm:$0xf]
    %v1953 = vld [vmem:[#allocation10 + $0x8] sm:$0xf]
    %v1954 = vld [vmem:[#allocation10 + $0xc] sm:$0xf]
    %v1955 = vld [vmem:[#allocation10 + $0x10] sm:$0xf]
    %v1956 = vld [vmem:[#allocation10 + $0x14] sm:$0xf]
    %v1957 = vld [vmem:[#allocation10 + $0x18] sm:$0xf]
    %v1958 = vld [vmem:[#allocation10 + $0x1c] sm:$0xf]
    %v1967 = vunpack.c.l.b16 %v1951
    %v1968 = vunpack.c.l.b16 %v1952
    %v1969 = vunpack.c.l.b16 %v1953
    %v1970 = vunpack.c.l.b16 %v1954
    %v1971 = vunpack.c.l.b16 %v1955
    %v1972 = vunpack.c.l.b16 %v1956
    %v1973 = vunpack.c.l.b16 %v1957
    %v1974 = vunpack.c.l.b16 %v1958
    %v1975 = vpack.c.b16 %v1968, %v1967
    %v1976 = vpack.c.b16 %v1970, %v1969
    %v1977 = vpack.c.b16 %v1972, %v1971
    %v1978 = vpack.c.b16 %v1974, %v1973
    %v1980 = vsel %vm487, %v1975, 0
    %v1983 = vsel %vm487, %v1976, 0
    %v1986 = vsel %vm487, %v1977, 0
    %v1989 = vsel %vm487, %v1978, 0
    %1991 = vmatprep.subr.bf16.mxu0 0
    %1992 = vmatpush1.bf16.msra.mxu0 %v556
    %1993 = vmatprep.subr.bf16.mxu0 0
    %1994 = vmatpush1.bf16.msra.mxu0 %v557
    %1995 = vmatprep.subr.bf16.mxu0 0
    %1996 = vmatpush1.bf16.msra.mxu0 %v558
    %1997 = vmatprep.subr.bf16.mxu0 0
    %1998 = vmatpush1.bf16.msra.mxu0 %v559
    %1999 = vmatprep.subr.bf16.mxu0 0
    %2000 = vmatpush1.bf16.msra.mxu0 0
    %2001 = vmatprep.subr.bf16.mxu0 0
    %2002 = vmatpush1.bf16.msra.mxu0 0
    %2003 = vmatprep.subr.bf16.mxu0 0
    %2004 = vmatpush1.bf16.msra.mxu0 0
    %2005 = vmatprep.subr.bf16.mxu0 0
    %2006 = vmatpush1.bf16.msra.mxu0 0
    %2007 = vmatprep.subr.bf16.mxu0 0
    %2008 = vmatpush1.bf16.msra.mxu0 0
    %2009 = vmatprep.subr.bf16.mxu0 0
    %2010 = vmatpush1.bf16.msra.mxu0 0
    %2011 = vmatprep.subr.bf16.mxu0 0
    %2012 = vmatpush1.bf16.msra.mxu0 0
    %2013 = vmatprep.subr.bf16.mxu0 0
    %2014 = vmatpush1.bf16.msra.mxu0 0
    %2015 = vmatprep.subr.bf16.mxu0 0
    %2016 = vmatpush1.bf16.msra.mxu0 0
    %2017 = vmatprep.subr.bf16.mxu0 0
    %2018 = vmatpush1.bf16.msra.mxu0 0
    %2019 = vmatprep.subr.bf16.mxu0 0
    %2020 = vmatpush1.bf16.msra.mxu0 0
    %2021 = vmatprep.subr.bf16.mxu0 0
    %2022 = vmatpush1.bf16.msra.mxu0 0
    %2023 = vmatprep.mubr.bf16.mxu0 0
    %2024 = vmatmul.mubr.bf16.gmra.mrb[0].mxu0 %v1980
    %v2025 = vpop.f32.mrb[0].mxu0
    %v2026 = vadd.f32 %v538, %v2025
    %v2027 = vpop.f32.mrb[0].mxu0
    %v2028 = vpop.f32.mrb[0].mxu0
    %v2029 = vadd.f32 %v538, %v2028
    %v2030 = vpop.f32.mrb[0].mxu0
    %2031 = vmatprep.mubr.bf16.mxu0 0
    %2032 = vmatmul.mubr.bf16.gmra.mrb[0].mxu0 %v1983
    %v2033 = vpop.f32.mrb[0].mxu0
    %v2034 = vadd.f32 %v538, %v2033
    %v2035 = vpop.f32.mrb[0].mxu0
    %v2036 = vpop.f32.mrb[0].mxu0
    %v2037 = vadd.f32 %v538, %v2036
    %v2038 = vpop.f32.mrb[0].mxu0
    %2039 = vmatprep.mubr.bf16.mxu0 0
    %2040 = vmatmul.mubr.bf16.gmra.mrb[0].mxu0 %v1986
    %v2041 = vpop.f32.mrb[0].mxu0
    %v2042 = vadd.f32 %v538, %v2041
    %v2043 = vpop.f32.mrb[0].mxu0
    %v2044 = vpop.f32.mrb[0].mxu0
    %v2045 = vadd.f32 %v538, %v2044
    %v2046 = vpop.f32.mrb[0].mxu0
    %2047 = vmatprep.mubr.bf16.mxu0 0
    %2048 = vmatmul.mubr.bf16.gmra.mrb[0].mxu0 %v1989
    %v2049 = vpop.f32.mrb[0].mxu0
    %v2050 = vadd.f32 %v538, %v2049
    %v2051 = vpop.f32.mrb[0].mxu0
    %v2052 = vpop.f32.mrb[0].mxu0
    %v2053 = vadd.f32 %v538, %v2052
    %v2054 = vpop.f32.mrb[0].mxu0
    %2055 = vdwg.mxu0
    %v2056 = vmax.f32 %v2026, 0.0
    %v2057 = vmax.f32 %v2029, 0.0
    %v2058 = vmax.f32 %v2034, 0.0
    %v2059 = vmax.f32 %v2037, 0.0
    %v2060 = vmax.f32 %v2042, 0.0
    %v2061 = vmax.f32 %v2045, 0.0
    %v2062 = vmax.f32 %v2050, 0.0
    %v2063 = vmax.f32 %v2053, 0.0
    %v2064 = vpack.c.bf16 %v2057, %v2056
    %v2065 = vpack.c.bf16 %v2059, %v2058
    %v2066 = vpack.c.bf16 %v2061, %v2060
    %v2067 = vpack.c.bf16 %v2063, %v2062
    %v2068 = vld [vmem:[#allocation26] sm:$0xff]
    %v2069 = vld [vmem:[#allocation26 + $0x8] sm:$0xff]
    %v2070 = vld [vmem:[#allocation26 + $0x10] sm:$0xff]
    %v2071 = vld [vmem:[#allocation26 + $0x18] sm:$0xff]
    %v2072 = vld [vmem:[#allocation26 + $0x20] sm:$0xff]
    %v2073 = vld [vmem:[#allocation26 + $0x28] sm:$0xff]
    %v2074 = vld [vmem:[#allocation26 + $0x30] sm:$0xff]
    %v2075 = vld [vmem:[#allocation26 + $0x38] sm:$0xff]
    %v2076 = vld [vmem:[#allocation26 + $0x40] sm:$0xff]
    %v2077 = vld [vmem:[#allocation26 + $0x48] sm:$0xff]
    %v2078 = vld [vmem:[#allocation26 + $0x50] sm:$0xff]
    %v2079 = vld [vmem:[#allocation26 + $0x58] sm:$0xff]
    %v2080 = vld [vmem:[#allocation26 + $0x60] sm:$0xff]
    %v2081 = vld [vmem:[#allocation26 + $0x68] sm:$0xff]
    %v2082 = vld [vmem:[#allocation26 + $0x70] sm:$0xff]
    %v2083 = vld [vmem:[#allocation26 + $0x78] sm:$0xff]
    %v2084 = vld [vmem:[#allocation26 + $0x80] sm:$0xff]
    %v2085 = vld [vmem:[#allocation26 + $0x88] sm:$0xff]
    %v2086 = vld [vmem:[#allocation26 + $0x90] sm:$0xff]
    %v2087 = vld [vmem:[#allocation26 + $0x98] sm:$0xff]
    %v2088 = vld [vmem:[#allocation26 + $0xa0] sm:$0xff]
    %v2089 = vld [vmem:[#allocation26 + $0xa8] sm:$0xff]
    %v2090 = vld [vmem:[#allocation26 + $0xb0] sm:$0xff]
    %v2091 = vld [vmem:[#allocation26 + $0xb8] sm:$0xff]
    %v2092 = vld [vmem:[#allocation26 + $0xc0] sm:$0xff]
    %v2093 = vld [vmem:[#allocation26 + $0xc8] sm:$0xff]
    %v2094 = vld [vmem:[#allocation26 + $0xd0] sm:$0xff]
    %v2095 = vld [vmem:[#allocation26 + $0xd8] sm:$0xff]
    %v2096 = vld [vmem:[#allocation26 + $0xe0] sm:$0xff]
    %v2097 = vld [vmem:[#allocation26 + $0xe8] sm:$0xff]
    %v2098 = vld [vmem:[#allocation26 + $0xf0] sm:$0xff]
    %v2099 = vld [vmem:[#allocation26 + $0xf8] sm:$0xff]
    %v2100 = vld [vmem:[#allocation29] sm:$0xf]
    %v2102 = vlaneseq
    %v2103 = vshrl.u32 %v2102, 7
    %v2104 = vsub.s32 0, %v2103
    %v2105 = vrot.slane %v2100, %v2104
    %v2106 = vlaneseq
    %v2107 = vshrl.u32 %v2106, 7
    %v2108 = vsub.s32 1, %v2107
    %v2109 = vrot.slane %v2100, %v2108
    %v2110 = vlaneseq
    %v2111 = vshrl.u32 %v2110, 7
    %v2112 = vsub.s32 2, %v2111
    %v2113 = vrot.slane %v2100, %v2112
    %v2114 = vlaneseq
    %v2115 = vshrl.u32 %v2114, 7
    %v2116 = vsub.s32 3, %v2115
    %v2117 = vrot.slane %v2100, %v2116
    %v2154 = vunpack.c.l.b16 %v2068
    %v2155 = vunpack.c.h.b16 %v2068
    %v2156 = vunpack.c.l.b16 %v2069
    %v2157 = vunpack.c.h.b16 %v2069
    %v2158 = vunpack.c.l.b16 %v2070
    %v2159 = vunpack.c.h.b16 %v2070
    %v2160 = vunpack.c.l.b16 %v2071
    %v2161 = vunpack.c.h.b16 %v2071
    %v2162 = vunpack.c.l.b16 %v2072
    %v2163 = vunpack.c.h.b16 %v2072
    %v2164 = vunpack.c.l.b16 %v2073
    %v2165 = vunpack.c.h.b16 %v2073
    %v2166 = vunpack.c.l.b16 %v2074
    %v2167 = vunpack.c.h.b16 %v2074
    %v2168 = vunpack.c.l.b16 %v2075
    %v2169 = vunpack.c.h.b16 %v2075
    %v2170 = vunpack.c.l.b16 %v2076
    %v2171 = vunpack.c.h.b16 %v2076
    %v2172 = vunpack.c.l.b16 %v2077
    %v2173 = vunpack.c.h.b16 %v2077
    %v2174 = vunpack.c.l.b16 %v2078
    %v2175 = vunpack.c.h.b16 %v2078
    %v2176 = vunpack.c.l.b16 %v2079
    %v2177 = vunpack.c.h.b16 %v2079
    %v2178 = vunpack.c.l.b16 %v2080
    %v2179 = vunpack.c.h.b16 %v2080
    %v2180 = vunpack.c.l.b16 %v2081
    %v2181 = vunpack.c.h.b16 %v2081
    %v2182 = vunpack.c.l.b16 %v2082
    %v2183 = vunpack.c.h.b16 %v2082
    %v2184 = vunpack.c.l.b16 %v2083
    %v2185 = vunpack.c.h.b16 %v2083
    %v2186 = vunpack.c.l.b16 %v2084
    %v2187 = vunpack.c.h.b16 %v2084
    %v2188 = vunpack.c.l.b16 %v2085
    %v2189 = vunpack.c.h.b16 %v2085
    %v2190 = vunpack.c.l.b16 %v2086
    %v2191 = vunpack.c.h.b16 %v2086
    %v2192 = vunpack.c.l.b16 %v2087
    %v2193 = vunpack.c.h.b16 %v2087
    %v2194 = vunpack.c.l.b16 %v2088
    %v2195 = vunpack.c.h.b16 %v2088
    %v2196 = vunpack.c.l.b16 %v2089
    %v2197 = vunpack.c.h.b16 %v2089
    %v2198 = vunpack.c.l.b16 %v2090
    %v2199 = vunpack.c.h.b16 %v2090
    %v2200 = vunpack.c.l.b16 %v2091
    %v2201 = vunpack.c.h.b16 %v2091
    %v2202 = vunpack.c.l.b16 %v2092
    %v2203 = vunpack.c.h.b16 %v2092
    %v2204 = vunpack.c.l.b16 %v2093
    %v2205 = vunpack.c.h.b16 %v2093
    %v2206 = vunpack.c.l.b16 %v2094
    %v2207 = vunpack.c.h.b16 %v2094
    %v2208 = vunpack.c.l.b16 %v2095
    %v2209 = vunpack.c.h.b16 %v2095
    %v2210 = vunpack.c.l.b16 %v2096
    %v2211 = vunpack.c.h.b16 %v2096
    %v2212 = vunpack.c.l.b16 %v2097
    %v2213 = vunpack.c.h.b16 %v2097
    %v2214 = vunpack.c.l.b16 %v2098
    %v2215 = vunpack.c.h.b16 %v2098
    %v2216 = vunpack.c.l.b16 %v2099
    %v2217 = vunpack.c.h.b16 %v2099
    %v2218 = vpack.c.b16 %v2158, %v2154
    %v2219 = vpack.c.b16 %v2159, %v2155
    %v2220 = vpack.c.b16 %v2160, %v2156
    %v2221 = vpack.c.b16 %v2161, %v2157
    %v2222 = vpack.c.b16 %v2166, %v2162
    %v2223 = vpack.c.b16 %v2167, %v2163
    %v2224 = vpack.c.b16 %v2168, %v2164
    %v2225 = vpack.c.b16 %v2169, %v2165
    %v2226 = vpack.c.b16 %v2174, %v2170
    %v2227 = vpack.c.b16 %v2175, %v2171
    %v2228 = vpack.c.b16 %v2176, %v2172
    %v2229 = vpack.c.b16 %v2177, %v2173
    %v2230 = vpack.c.b16 %v2182, %v2178
    %v2231 = vpack.c.b16 %v2183, %v2179
    %v2232 = vpack.c.b16 %v2184, %v2180
    %v2233 = vpack.c.b16 %v2185, %v2181
    %v2234 = vpack.c.b16 %v2190, %v2186
    %v2235 = vpack.c.b16 %v2191, %v2187
    %v2236 = vpack.c.b16 %v2192, %v2188
    %v2237 = vpack.c.b16 %v2193, %v2189
    %v2238 = vpack.c.b16 %v2198, %v2194
    %v2239 = vpack.c.b16 %v2199, %v2195
    %v2240 = vpack.c.b16 %v2200, %v2196
    %v2241 = vpack.c.b16 %v2201, %v2197
    %v2242 = vpack.c.b16 %v2206, %v2202
    %v2243 = vpack.c.b16 %v2207, %v2203
    %v2244 = vpack.c.b16 %v2208, %v2204
    %v2245 = vpack.c.b16 %v2209, %v2205
    %v2246 = vpack.c.b16 %v2214, %v2210
    %v2247 = vpack.c.b16 %v2215, %v2211
    %v2248 = vpack.c.b16 %v2216, %v2212
    %v2249 = vpack.c.b16 %v2217, %v2213
    %2282 = vmatprep.subr.bf16.mxu0 %v2219
    %2283 = vmatpush1.bf16.msra.mxu0 %v2218
    %2284 = vmatprep.subr.bf16.mxu0 %v2223
    %2285 = vmatpush1.bf16.msra.mxu0 %v2222
    %2286 = vmatprep.subr.bf16.mxu0 %v2227
    %2287 = vmatpush1.bf16.msra.mxu0 %v2226
    %2288 = vmatprep.subr.bf16.mxu0 %v2231
    %2289 = vmatpush1.bf16.msra.mxu0 %v2230
    %2290 = vmatprep.subr.bf16.mxu0 %v2235
    %2291 = vmatpush1.bf16.msra.mxu0 %v2234
    %2292 = vmatprep.subr.bf16.mxu0 %v2239
    %2293 = vmatpush1.bf16.msra.mxu0 %v2238
    %2294 = vmatprep.subr.bf16.mxu0 %v2243
    %2295 = vmatpush1.bf16.msra.mxu0 %v2242
    %2296 = vmatprep.subr.bf16.mxu0 %v2247
    %2297 = vmatpush1.bf16.msra.mxu0 %v2246
    %2298 = vmatprep.subr.bf16.mxu0 0
    %2299 = vmatpush1.bf16.msra.mxu0 0
    %2300 = vmatprep.subr.bf16.mxu0 0
    %2301 = vmatpush1.bf16.msra.mxu0 0
    %2302 = vmatprep.subr.bf16.mxu0 0
    %2303 = vmatpush1.bf16.msra.mxu0 0
    %2304 = vmatprep.subr.bf16.mxu0 0
    %2305 = vmatpush1.bf16.msra.mxu0 0
    %2306 = vmatprep.subr.bf16.mxu0 0
    %2307 = vmatpush1.bf16.msra.mxu0 0
    %2308 = vmatprep.subr.bf16.mxu0 0
    %2309 = vmatpush1.bf16.msra.mxu0 0
    %2310 = vmatprep.subr.bf16.mxu0 0
    %2311 = vmatpush1.bf16.msra.mxu0 0
    %2312 = vmatprep.subr.bf16.mxu0 0
    %2313 = vmatpush1.bf16.msra.mxu0 0
    %2314 = vmatprep.mubr.bf16.mxu0 0
    %2315 = vmatmul.mubr.bf16.gmra.mrb[0].mxu0 %v2064
    %v2316 = vpop.f32.mrb[0].mxu0
    %v2317 = vadd.f32 %v2105, %v2316
    %v2318 = vpop.f32.mrb[0].mxu0
    %v2319 = vadd.f32 %v2109, %v2318
    %v2320 = vpop.f32.mrb[0].mxu0
    %v2321 = vadd.f32 %v2105, %v2320
    %v2322 = vpop.f32.mrb[0].mxu0
    %v2323 = vadd.f32 %v2109, %v2322
    %2324 = vmatprep.mubr.bf16.mxu0 0
    %2325 = vmatmul.mubr.bf16.gmra.mrb[0].mxu0 %v2065
    %v2326 = vpop.f32.mrb[0].mxu0
    %v2327 = vadd.f32 %v2105, %v2326
    %v2328 = vpop.f32.mrb[0].mxu0
    %v2329 = vadd.f32 %v2109, %v2328
    %v2330 = vpop.f32.mrb[0].mxu0
    %v2331 = vadd.f32 %v2105, %v2330
    %v2332 = vpop.f32.mrb[0].mxu0
    %v2333 = vadd.f32 %v2109, %v2332
    %2334 = vmatprep.mubr.bf16.mxu0 0
    %2335 = vmatmul.mubr.bf16.gmra.mrb[0].mxu0 %v2066
    %v2336 = vpop.f32.mrb[0].mxu0
    %v2337 = vadd.f32 %v2105, %v2336
    %v2338 = vpop.f32.mrb[0].mxu0
    %v2339 = vadd.f32 %v2109, %v2338
    %v2340 = vpop.f32.mrb[0].mxu0
    %v2341 = vadd.f32 %v2105, %v2340
    %v2342 = vpop.f32.mrb[0].mxu0
    %v2343 = vadd.f32 %v2109, %v2342
    %2344 = vmatprep.mubr.bf16.mxu0 0
    %2345 = vmatmul.mubr.bf16.gmra.mrb[0].mxu0 %v2067
    %v2346 = vpop.f32.mrb[0].mxu0
    %v2347 = vadd.f32 %v2105, %v2346
    %v2348 = vpop.f32.mrb[0].mxu0
    %v2349 = vadd.f32 %v2109, %v2348
    %v2350 = vpop.f32.mrb[0].mxu0
    %v2351 = vadd.f32 %v2105, %v2350
    %v2352 = vpop.f32.mrb[0].mxu0
    %v2353 = vadd.f32 %v2109, %v2352
    %2354 = vdwg.mxu0
    %2355 = vmatprep.subr.bf16.mxu0 %v2221
    %2356 = vmatpush1.bf16.msra.mxu0 %v2220
    %2357 = vmatprep.subr.bf16.mxu0 %v2225
    %2358 = vmatpush1.bf16.msra.mxu0 %v2224
    %2359 = vmatprep.subr.bf16.mxu0 %v2229
    %2360 = vmatpush1.bf16.msra.mxu0 %v2228
    %2361 = vmatprep.subr.bf16.mxu0 %v2233
    %2362 = vmatpush1.bf16.msra.mxu0 %v2232
    %2363 = vmatprep.subr.bf16.mxu0 %v2237
    %2364 = vmatpush1.bf16.msra.mxu0 %v2236
    %2365 = vmatprep.subr.bf16.mxu0 %v2241
    %2366 = vmatpush1.bf16.msra.mxu0 %v2240
    %2367 = vmatprep.subr.bf16.mxu0 %v2245
    %2368 = vmatpush1.bf16.msra.mxu0 %v2244
    %2369 = vmatprep.subr.bf16.mxu0 %v2249
    %2370 = vmatpush1.bf16.msra.mxu0 %v2248
    %2371 = vmatprep.subr.bf16.mxu0 0
    %2372 = vmatpush1.bf16.msra.mxu0 0
    %2373 = vmatprep.subr.bf16.mxu0 0
    %2374 = vmatpush1.bf16.msra.mxu0 0
    %2375 = vmatprep.subr.bf16.mxu0 0
    %2376 = vmatpush1.bf16.msra.mxu0 0
    %2377 = vmatprep.subr.bf16.mxu0 0
    %2378 = vmatpush1.bf16.msra.mxu0 0
    %2379 = vmatprep.subr.bf16.mxu0 0
    %2380 = vmatpush1.bf16.msra.mxu0 0
    %2381 = vmatprep.subr.bf16.mxu0 0
    %2382 = vmatpush1.bf16.msra.mxu0 0
    %2383 = vmatprep.subr.bf16.mxu0 0
    %2384 = vmatpush1.bf16.msra.mxu0 0
    %2385 = vmatprep.subr.bf16.mxu0 0
    %2386 = vmatpush1.bf16.msra.mxu0 0
    %2387 = vmatprep.mubr.bf16.mxu0 0
    %2388 = vmatmul.mubr.bf16.gmra.mrb[0].mxu0 %v2064
    %v2389 = vpop.f32.mrb[0].mxu0
    %v2390 = vadd.f32 %v2113, %v2389
    %v2391 = vpop.f32.mrb[0].mxu0
    %v2392 = vadd.f32 %v2117, %v2391
    %v2393 = vpop.f32.mrb[0].mxu0
    %v2394 = vadd.f32 %v2113, %v2393
    %v2395 = vpop.f32.mrb[0].mxu0
    %v2396 = vadd.f32 %v2117, %v2395
    %2397 = vmatprep.mubr.bf16.mxu0 0
    %2398 = vmatmul.mubr.bf16.gmra.mrb[0].mxu0 %v2065
    %v2399 = vpop.f32.mrb[0].mxu0
    %v2400 = vadd.f32 %v2113, %v2399
    %v2401 = vpop.f32.mrb[0].mxu0
    %v2402 = vadd.f32 %v2117, %v2401
    %v2403 = vpop.f32.mrb[0].mxu0
    %v2404 = vadd.f32 %v2113, %v2403
    %v2405 = vpop.f32.mrb[0].mxu0
    %v2406 = vadd.f32 %v2117, %v2405
    %2407 = vmatprep.mubr.bf16.mxu0 0
    %2408 = vmatmul.mubr.bf16.gmra.mrb[0].mxu0 %v2066
    %v2409 = vpop.f32.mrb[0].mxu0
    %v2410 = vadd.f32 %v2113, %v2409
    %v2411 = vpop.f32.mrb[0].mxu0
    %v2412 = vadd.f32 %v2117, %v2411
    %v2413 = vpop.f32.mrb[0].mxu0
    %v2414 = vadd.f32 %v2113, %v2413
    %v2415 = vpop.f32.mrb[0].mxu0
    %v2416 = vadd.f32 %v2117, %v2415
    %2417 = vmatprep.mubr.bf16.mxu0 0
    %2418 = vmatmul.mubr.bf16.gmra.mrb[0].mxu0 %v2067
    %v2419 = vpop.f32.mrb[0].mxu0
    %v2420 = vadd.f32 %v2113, %v2419
    %v2421 = vpop.f32.mrb[0].mxu0
    %v2422 = vadd.f32 %v2117, %v2421
    %v2423 = vpop.f32.mrb[0].mxu0
    %v2424 = vadd.f32 %v2113, %v2423
    %v2425 = vpop.f32.mrb[0].mxu0
    %v2426 = vadd.f32 %v2117, %v2425
    %2427 = vdwg.mxu0
    %v2428 = vld [vmem:[#allocation28] sm:$0xff]
    %v2429 = vld [vmem:[#allocation28 + $0x8] sm:$0xff]
    %v2430 = vld [vmem:[#allocation28 + $0x10] sm:$0xff]
    %v2431 = vld [vmem:[#allocation28 + $0x18] sm:$0xff]
    %v2432 = vld [vmem:[#allocation28 + $0x20] sm:$0xff]
    %v2433 = vld [vmem:[#allocation28 + $0x28] sm:$0xff]
    %v2434 = vld [vmem:[#allocation28 + $0x30] sm:$0xff]
    %v2435 = vld [vmem:[#allocation28 + $0x38] sm:$0xff]
    %v2436 = vld [vmem:[#allocation28 + $0x40] sm:$0xff]
    %v2437 = vld [vmem:[#allocation28 + $0x48] sm:$0xff]
    %v2438 = vld [vmem:[#allocation28 + $0x50] sm:$0xff]
    %v2439 = vld [vmem:[#allocation28 + $0x58] sm:$0xff]
    %v2440 = vld [vmem:[#allocation28 + $0x60] sm:$0xff]
    %v2441 = vld [vmem:[#allocation28 + $0x68] sm:$0xff]
    %v2442 = vld [vmem:[#allocation28 + $0x70] sm:$0xff]
    %v2443 = vld [vmem:[#allocation28 + $0x78] sm:$0xff]
    %v2444 = vld [vmem:[#allocation28 + $0x80] sm:$0xff]
    %v2445 = vld [vmem:[#allocation28 + $0x88] sm:$0xff]
    %v2446 = vld [vmem:[#allocation28 + $0x90] sm:$0xff]
    %v2447 = vld [vmem:[#allocation28 + $0x98] sm:$0xff]
    %v2448 = vld [vmem:[#allocation28 + $0xa0] sm:$0xff]
    %v2449 = vld [vmem:[#allocation28 + $0xa8] sm:$0xff]
    %v2450 = vld [vmem:[#allocation28 + $0xb0] sm:$0xff]
    %v2451 = vld [vmem:[#allocation28 + $0xb8] sm:$0xff]
    %v2452 = vld [vmem:[#allocation28 + $0xc0] sm:$0xff]
    %v2453 = vld [vmem:[#allocation28 + $0xc8] sm:$0xff]
    %v2454 = vld [vmem:[#allocation28 + $0xd0] sm:$0xff]
    %v2455 = vld [vmem:[#allocation28 + $0xd8] sm:$0xff]
    %v2456 = vld [vmem:[#allocation28 + $0xe0] sm:$0xff]
    %v2457 = vld [vmem:[#allocation28 + $0xe8] sm:$0xff]
    %v2458 = vld [vmem:[#allocation28 + $0xf0] sm:$0xff]
    %v2459 = vld [vmem:[#allocation28 + $0xf8] sm:$0xff]
    %v2492 = vunpack.c.l.b16 %v2428
    %v2493 = vunpack.c.h.b16 %v2428
    %v2494 = vunpack.c.l.b16 %v2429
    %v2495 = vunpack.c.h.b16 %v2429
    %v2496 = vunpack.c.l.b16 %v2430
    %v2497 = vunpack.c.h.b16 %v2430
    %v2498 = vunpack.c.l.b16 %v2431
    %v2499 = vunpack.c.h.b16 %v2431
    %v2500 = vunpack.c.l.b16 %v2432
    %v2501 = vunpack.c.h.b16 %v2432
    %v2502 = vunpack.c.l.b16 %v2433
    %v2503 = vunpack.c.h.b16 %v2433
    %v2504 = vunpack.c.l.b16 %v2434
    %v2505 = vunpack.c.h.b16 %v2434
    %v2506 = vunpack.c.l.b16 %v2435
    %v2507 = vunpack.c.h.b16 %v2435
    %v2508 = vunpack.c.l.b16 %v2436
    %v2509 = vunpack.c.h.b16 %v2436
    %v2510 = vunpack.c.l.b16 %v2437
    %v2511 = vunpack.c.h.b16 %v2437
    %v2512 = vunpack.c.l.b16 %v2438
    %v2513 = vunpack.c.h.b16 %v2438
    %v2514 = vunpack.c.l.b16 %v2439
    %v2515 = vunpack.c.h.b16 %v2439
    %v2516 = vunpack.c.l.b16 %v2440
    %v2517 = vunpack.c.h.b16 %v2440
    %v2518 = vunpack.c.l.b16 %v2441
    %v2519 = vunpack.c.h.b16 %v2441
    %v2520 = vunpack.c.l.b16 %v2442
    %v2521 = vunpack.c.h.b16 %v2442
    %v2522 = vunpack.c.l.b16 %v2443
    %v2523 = vunpack.c.h.b16 %v2443
    %v2524 = vunpack.c.l.b16 %v2444
    %v2525 = vunpack.c.h.b16 %v2444
    %v2526 = vunpack.c.l.b16 %v2445
    %v2527 = vunpack.c.h.b16 %v2445
    %v2528 = vunpack.c.l.b16 %v2446
    %v2529 = vunpack.c.h.b16 %v2446
    %v2530 = vunpack.c.l.b16 %v2447
    %v2531 = vunpack.c.h.b16 %v2447
    %v2532 = vunpack.c.l.b16 %v2448
    %v2533 = vunpack.c.h.b16 %v2448
    %v2534 = vunpack.c.l.b16 %v2449
    %v2535 = vunpack.c.h.b16 %v2449
    %v2536 = vunpack.c.l.b16 %v2450
    %v2537 = vunpack.c.h.b16 %v2450
    %v2538 = vunpack.c.l.b16 %v2451
    %v2539 = vunpack.c.h.b16 %v2451
    %v2540 = vunpack.c.l.b16 %v2452
    %v2541 = vunpack.c.h.b16 %v2452
    %v2542 = vunpack.c.l.b16 %v2453
    %v2543 = vunpack.c.h.b16 %v2453
    %v2544 = vunpack.c.l.b16 %v2454
    %v2545 = vunpack.c.h.b16 %v2454
    %v2546 = vunpack.c.l.b16 %v2455
    %v2547 = vunpack.c.h.b16 %v2455
    %v2548 = vunpack.c.l.b16 %v2456
    %v2549 = vunpack.c.h.b16 %v2456
    %v2550 = vunpack.c.l.b16 %v2457
    %v2551 = vunpack.c.h.b16 %v2457
    %v2552 = vunpack.c.l.b16 %v2458
    %v2553 = vunpack.c.h.b16 %v2458
    %v2554 = vunpack.c.l.b16 %v2459
    %v2555 = vunpack.c.h.b16 %v2459
    %v2556 = vpack.c.b16 %v2496, %v2492
    %v2557 = vpack.c.b16 %v2497, %v2493
    %v2558 = vpack.c.b16 %v2498, %v2494
    %v2559 = vpack.c.b16 %v2499, %v2495
    %v2560 = vpack.c.b16 %v2504, %v2500
    %v2561 = vpack.c.b16 %v2505, %v2501
    %v2562 = vpack.c.b16 %v2506, %v2502
    %v2563 = vpack.c.b16 %v2507, %v2503
    %v2564 = vpack.c.b16 %v2512, %v2508
    %v2565 = vpack.c.b16 %v2513, %v2509
    %v2566 = vpack.c.b16 %v2514, %v2510
    %v2567 = vpack.c.b16 %v2515, %v2511
    %v2568 = vpack.c.b16 %v2520, %v2516
    %v2569 = vpack.c.b16 %v2521, %v2517
    %v2570 = vpack.c.b16 %v2522, %v2518
    %v2571 = vpack.c.b16 %v2523, %v2519
    %v2572 = vpack.c.b16 %v2528, %v2524
    %v2573 = vpack.c.b16 %v2529, %v2525
    %v2574 = vpack.c.b16 %v2530, %v2526
    %v2575 = vpack.c.b16 %v2531, %v2527
    %v2576 = vpack.c.b16 %v2536, %v2532
    %v2577 = vpack.c.b16 %v2537, %v2533
    %v2578 = vpack.c.b16 %v2538, %v2534
    %v2579 = vpack.c.b16 %v2539, %v2535
    %v2580 = vpack.c.b16 %v2544, %v2540
    %v2581 = vpack.c.b16 %v2545, %v2541
    %v2582 = vpack.c.b16 %v2546, %v2542
    %v2583 = vpack.c.b16 %v2547, %v2543
    %v2584 = vpack.c.b16 %v2552, %v2548
    %v2585 = vpack.c.b16 %v2553, %v2549
    %v2586 = vpack.c.b16 %v2554, %v2550
    %v2587 = vpack.c.b16 %v2555, %v2551
    %2620 = vmatprep.subr.bf16.mxu0 %v2557
    %2621 = vmatpush1.bf16.msra.mxu0 %v2556
    %2622 = vmatprep.subr.bf16.mxu0 %v2561
    %2623 = vmatpush1.bf16.msra.mxu0 %v2560
    %2624 = vmatprep.subr.bf16.mxu0 %v2565
    %2625 = vmatpush1.bf16.msra.mxu0 %v2564
    %2626 = vmatprep.subr.bf16.mxu0 %v2569
    %2627 = vmatpush1.bf16.msra.mxu0 %v2568
    %2628 = vmatprep.subr.bf16.mxu0 %v2573
    %2629 = vmatpush1.bf16.msra.mxu0 %v2572
    %2630 = vmatprep.subr.bf16.mxu0 %v2577
    %2631 = vmatpush1.bf16.msra.mxu0 %v2576
    %2632 = vmatprep.subr.bf16.mxu0 %v2581
    %2633 = vmatpush1.bf16.msra.mxu0 %v2580
    %2634 = vmatprep.subr.bf16.mxu0 %v2585
    %2635 = vmatpush1.bf16.msra.mxu0 %v2584
    %2636 = vmatprep.subr.bf16.mxu0 0
    %2637 = vmatpush1.bf16.msra.mxu0 0
    %2638 = vmatprep.subr.bf16.mxu0 0
    %2639 = vmatpush1.bf16.msra.mxu0 0
    %2640 = vmatprep.subr.bf16.mxu0 0
    %2641 = vmatpush1.bf16.msra.mxu0 0
    %2642 = vmatprep.subr.bf16.mxu0 0
    %2643 = vmatpush1.bf16.msra.mxu0 0
    %2644 = vmatprep.subr.bf16.mxu0 0
    %2645 = vmatpush1.bf16.msra.mxu0 0
    %2646 = vmatprep.subr.bf16.mxu0 0
    %2647 = vmatpush1.bf16.msra.mxu0 0
    %2648 = vmatprep.subr.bf16.mxu0 0
    %2649 = vmatpush1.bf16.msra.mxu0 0
    %2650 = vmatprep.subr.bf16.mxu0 0
    %2651 = vmatpush1.bf16.msra.mxu0 0
    %2652 = vmatprep.mubr.bf16.mxu0 0
    %2653 = vmatmul.mubr.bf16.gmra.mrb[0].mxu0 0
    %v2654 = vpop.f32.mrb[0].mxu0
    %v2655 = vadd.f32 0.0, %v2654
    %v2656 = vpop.f32.mrb[0].mxu0
    %v2657 = vadd.f32 0.0, %v2656
    %v2658 = vpop.f32.mrb[0].mxu0
    %v2659 = vpop.f32.mrb[0].mxu0
    %2660 = vdwg.mxu0
    %2661 = vmatprep.subr.bf16.mxu0 %v2559
    %2662 = vmatpush1.bf16.msra.mxu0 %v2558
    %2663 = vmatprep.subr.bf16.mxu0 %v2563
    %2664 = vmatpush1.bf16.msra.mxu0 %v2562
    %2665 = vmatprep.subr.bf16.mxu0 %v2567
    %2666 = vmatpush1.bf16.msra.mxu0 %v2566
    %2667 = vmatprep.subr.bf16.mxu0 %v2571
    %2668 = vmatpush1.bf16.msra.mxu0 %v2570
    %2669 = vmatprep.subr.bf16.mxu0 %v2575
    %2670 = vmatpush1.bf16.msra.mxu0 %v2574
    %2671 = vmatprep.subr.bf16.mxu0 %v2579
    %2672 = vmatpush1.bf16.msra.mxu0 %v2578
    %2673 = vmatprep.subr.bf16.mxu0 %v2583
    %2674 = vmatpush1.bf16.msra.mxu0 %v2582
    %2675 = vmatprep.subr.bf16.mxu0 %v2587
    %2676 = vmatpush1.bf16.msra.mxu0 %v2586
    %2677 = vmatprep.subr.bf16.mxu0 0
    %2678 = vmatpush1.bf16.msra.mxu0 0
    %2679 = vmatprep.subr.bf16.mxu0 0
    %2680 = vmatpush1.bf16.msra.mxu0 0
    %2681 = vmatprep.subr.bf16.mxu0 0
    %2682 = vmatpush1.bf16.msra.mxu0 0
    %2683 = vmatprep.subr.bf16.mxu0 0
    %2684 = vmatpush1.bf16.msra.mxu0 0
    %2685 = vmatprep.subr.bf16.mxu0 0
    %2686 = vmatpush1.bf16.msra.mxu0 0
    %2687 = vmatprep.subr.bf16.mxu0 0
    %2688 = vmatpush1.bf16.msra.mxu0 0
    %2689 = vmatprep.subr.bf16.mxu0 0
    %2690 = vmatpush1.bf16.msra.mxu0 0
    %2691 = vmatprep.subr.bf16.mxu0 0
    %2692 = vmatpush1.bf16.msra.mxu0 0
    %2693 = vmatprep.mubr.bf16.mxu0 0
    %2694 = vmatmul.mubr.bf16.gmra.mrb[0].mxu0 0
    %v2695 = vpop.f32.mrb[0].mxu0
    %v2696 = vadd.f32 0.0, %v2695
    %v2697 = vpop.f32.mrb[0].mxu0
    %v2698 = vadd.f32 0.0, %v2697
    %v2699 = vpop.f32.mrb[0].mxu0
    %v2700 = vpop.f32.mrb[0].mxu0
    %2701 = vdwg.mxu0
    %v2702 = vadd.f32 %v2317, %v2655
    %v2703 = vadd.f32 %v2319, %v2657
    %v2704 = vadd.f32 %v2390, %v2696
    %v2705 = vadd.f32 %v2392, %v2698
    %v2706 = vmul.f32 %v2702, 0.5
    %v2707 = vtanh.pop %v2706
    %v2708 = vmul.f32 %v2707, 0.5
    %v2709 = vadd.f32 %v2708, 0.5
    %v2710 = vmul.f32 %v2703, 0.5
    %v2711 = vtanh.pop %v2710
    %v2712 = vmul.f32 %v2711, 0.5
    %v2713 = vadd.f32 %v2712, 0.5
    %v2714 = vtanh.pop %v2704
    %v2715 = vmul.f32 %v2705, 0.5
    %v2716 = vtanh.pop %v2715
    %v2717 = vmul.f32 %v2716, 0.5
    %v2718 = vadd.f32 %v2717, 0.5
    %v2719 = vmul.f32 %v2713, 0.0
    %v2720 = vmul.f32 %v2709, %v2714
    %v2721 = vadd.f32 %v2719, %v2720
    %v2722 = vtanh.pop %v2721
    %v2723 = vmul.f32 %v2718, %v2722
    %v2724 = vpack.c.bf16 %v2723, %v2723
    %2725 = vmatprep.subr.bf16.mxu0 %v2557
    %2726 = vmatpush1.bf16.msra.mxu0 %v2556
    %2727 = vmatprep.subr.bf16.mxu0 %v2561
    %2728 = vmatpush1.bf16.msra.mxu0 %v2560
    %2729 = vmatprep.subr.bf16.mxu0 %v2565
    %2730 = vmatpush1.bf16.msra.mxu0 %v2564
    %2731 = vmatprep.subr.bf16.mxu0 %v2569
    %2732 = vmatpush1.bf16.msra.mxu0 %v2568
    %2733 = vmatprep.subr.bf16.mxu0 %v2573
    %2734 = vmatpush1.bf16.msra.mxu0 %v2572
    %2735 = vmatprep.subr.bf16.mxu0 %v2577
    %2736 = vmatpush1.bf16.msra.mxu0 %v2576
    %2737 = vmatprep.subr.bf16.mxu0 %v2581
    %2738 = vmatpush1.bf16.msra.mxu0 %v2580
    %2739 = vmatprep.subr.bf16.mxu0 %v2585
    %2740 = vmatpush1.bf16.msra.mxu0 %v2584
    %2741 = vmatprep.subr.bf16.mxu0 0
    %2742 = vmatpush1.bf16.msra.mxu0 0
    %2743 = vmatprep.subr.bf16.mxu0 0
    %2744 = vmatpush1.bf16.msra.mxu0 0
    %2745 = vmatprep.subr.bf16.mxu0 0
    %2746 = vmatpush1.bf16.msra.mxu0 0
    %2747 = vmatprep.subr.bf16.mxu0 0
    %2748 = vmatpush1.bf16.msra.mxu0 0
    %2749 = vmatprep.subr.bf16.mxu0 0
    %2750 = vmatpush1.bf16.msra.mxu0 0
    %2751 = vmatprep.subr.bf16.mxu0 0
    %2752 = vmatpush1.bf16.msra.mxu0 0
    %2753 = vmatprep.subr.bf16.mxu0 0
    %2754 = vmatpush1.bf16.msra.mxu0 0
    %2755 = vmatprep.subr.bf16.mxu0 0
    %2756 = vmatpush1.bf16.msra.mxu0 0
    %2757 = vmatprep.mubr.bf16.mxu0 0
    %2758 = vmatmul.mubr.bf16.gmra.mrb[0].mxu0 %v2724
    %v2759 = vpop.f32.mrb[0].mxu0
    %v2760 = vadd.f32 0.0, %v2759
    %v2761 = vpop.f32.mrb[0].mxu0
    %v2762 = vadd.f32 0.0, %v2761
    %v2763 = vpop.f32.mrb[0].mxu0
    %v2764 = vpop.f32.mrb[0].mxu0
    %2765 = vdwg.mxu0
    %2766 = vmatprep.subr.bf16.mxu0 %v2559
    %2767 = vmatpush1.bf16.msra.mxu0 %v2558
    %2768 = vmatprep.subr.bf16.mxu0 %v2563
    %2769 = vmatpush1.bf16.msra.mxu0 %v2562
    %2770 = vmatprep.subr.bf16.mxu0 %v2567
    %2771 = vmatpush1.bf16.msra.mxu0 %v2566
    %2772 = vmatprep.subr.bf16.mxu0 %v2571
    %2773 = vmatpush1.bf16.msra.mxu0 %v2570
    %2774 = vmatprep.subr.bf16.mxu0 %v2575
    %2775 = vmatpush1.bf16.msra.mxu0 %v2574
    %2776 = vmatprep.subr.bf16.mxu0 %v2579
    %2777 = vmatpush1.bf16.msra.mxu0 %v2578
    %2778 = vmatprep.subr.bf16.mxu0 %v2583
    %2779 = vmatpush1.bf16.msra.mxu0 %v2582
    %2780 = vmatprep.subr.bf16.mxu0 %v2587
    %2781 = vmatpush1.bf16.msra.mxu0 %v2586
    %2782 = vmatprep.subr.bf16.mxu0 0
    %2783 = vmatpush1.bf16.msra.mxu0 0
    %2784 = vmatprep.subr.bf16.mxu0 0
    %2785 = vmatpush1.bf16.msra.mxu0 0
    %2786 = vmatprep.subr.bf16.mxu0 0
    %2787 = vmatpush1.bf16.msra.mxu0 0
    %2788 = vmatprep.subr.bf16.mxu0 0
    %2789 = vmatpush1.bf16.msra.mxu0 0
    %2790 = vmatprep.subr.bf16.mxu0 0
    %2791 = vmatpush1.bf16.msra.mxu0 0
    %2792 = vmatprep.subr.bf16.mxu0 0
    %2793 = vmatpush1.bf16.msra.mxu0 0
    %2794 = vmatprep.subr.bf16.mxu0 0
    %2795 = vmatpush1.bf16.msra.mxu0 0
    %2796 = vmatprep.subr.bf16.mxu0 0
    %2797 = vmatpush1.bf16.msra.mxu0 0
    %2798 = vmatprep.mubr.bf16.mxu0 0
    %2799 = vmatmul.mubr.bf16.gmra.mrb[0].mxu0 %v2724
    %v2800 = vpop.f32.mrb[0].mxu0
    %v2801 = vadd.f32 0.0, %v2800
    %v2802 = vpop.f32.mrb[0].mxu0
    %v2803 = vadd.f32 0.0, %v2802
    %v2804 = vpop.f32.mrb[0].mxu0
    %v2805 = vpop.f32.mrb[0].mxu0
    %2806 = vdwg.mxu0
    %v2807 = vadd.f32 %v2321, %v2760
    %v2808 = vadd.f32 %v2323, %v2762
    %v2809 = vadd.f32 %v2394, %v2801
    %v2810 = vadd.f32 %v2396, %v2803
    %v2811 = vmul.f32 %v2807, 0.5
    %v2812 = vtanh.pop %v2811
    %v2813 = vmul.f32 %v2812, 0.5
    %v2814 = vadd.f32 %v2813, 0.5
    %v2815 = vmul.f32 %v2808, 0.5
    %v2816 = vtanh.pop %v2815
    %v2817 = vmul.f32 %v2816, 0.5
    %v2818 = vadd.f32 %v2817, 0.5
    %v2819 = vtanh.pop %v2809
    %v2820 = vmul.f32 %v2810, 0.5
    %v2821 = vtanh.pop %v2820
    %v2822 = vmul.f32 %v2821, 0.5
    %v2823 = vadd.f32 %v2822, 0.5
    %v2824 = vmul.f32 %v2818, %v2721
    %v2825 = vmul.f32 %v2814, %v2819
    %v2826 = vadd.f32 %v2824, %v2825
    %v2827 = vtanh.pop %v2826
    %v2828 = vmul.f32 %v2823, %v2827
    %v2829 = vpack.c.bf16 %v2828, %v2828
    %2830 = vmatprep.subr.bf16.mxu0 %v2557
    %2831 = vmatpush1.bf16.msra.mxu0 %v2556
    %2832 = vmatprep.subr.bf16.mxu0 %v2561
    %2833 = vmatpush1.bf16.msra.mxu0 %v2560
    %2834 = vmatprep.subr.bf16.mxu0 %v2565
    %2835 = vmatpush1.bf16.msra.mxu0 %v2564
    %2836 = vmatprep.subr.bf16.mxu0 %v2569
    %2837 = vmatpush1.bf16.msra.mxu0 %v2568
    %2838 = vmatprep.subr.bf16.mxu0 %v2573
    %2839 = vmatpush1.bf16.msra.mxu0 %v2572
    %2840 = vmatprep.subr.bf16.mxu0 %v2577
    %2841 = vmatpush1.bf16.msra.mxu0 %v2576
    %2842 = vmatprep.subr.bf16.mxu0 %v2581
    %2843 = vmatpush1.bf16.msra.mxu0 %v2580
    %2844 = vmatprep.subr.bf16.mxu0 %v2585
    %2845 = vmatpush1.bf16.msra.mxu0 %v2584
    %2846 = vmatprep.subr.bf16.mxu0 0
    %2847 = vmatpush1.bf16.msra.mxu0 0
    %2848 = vmatprep.subr.bf16.mxu0 0
    %2849 = vmatpush1.bf16.msra.mxu0 0
    %2850 = vmatprep.subr.bf16.mxu0 0
    %2851 = vmatpush1.bf16.msra.mxu0 0
    %2852 = vmatprep.subr.bf16.mxu0 0
    %2853 = vmatpush1.bf16.msra.mxu0 0
    %2854 = vmatprep.subr.bf16.mxu0 0
    %2855 = vmatpush1.bf16.msra.mxu0 0
    %2856 = vmatprep.subr.bf16.mxu0 0
    %2857 = vmatpush1.bf16.msra.mxu0 0
    %2858 = vmatprep.subr.bf16.mxu0 0
    %2859 = vmatpush1.bf16.msra.mxu0 0
    %2860 = vmatprep.subr.bf16.mxu0 0
    %2861 = vmatpush1.bf16.msra.mxu0 0
    %2862 = vmatprep.mubr.bf16.mxu0 0
    %2863 = vmatmul.mubr.bf16.gmra.mrb[0].mxu0 %v2829
    %v2864 = vpop.f32.mrb[0].mxu0
    %v2865 = vadd.f32 0.0, %v2864
    %v2866 = vpop.f32.mrb[0].mxu0
    %v2867 = vadd.f32 0.0, %v2866
    %v2868 = vpop.f32.mrb[0].mxu0
    %v2869 = vpop.f32.mrb[0].mxu0
    %2870 = vdwg.mxu0
    %2871 = vmatprep.subr.bf16.mxu0 %v2559
    %2872 = vmatpush1.bf16.msra.mxu0 %v2558
    %2873 = vmatprep.subr.bf16.mxu0 %v2563
    %2874 = vmatpush1.bf16.msra.mxu0 %v2562
    %2875 = vmatprep.subr.bf16.mxu0 %v2567
    %2876 = vmatpush1.bf16.msra.mxu0 %v2566
    %2877 = vmatprep.subr.bf16.mxu0 %v2571
    %2878 = vmatpush1.bf16.msra.mxu0 %v2570
    %2879 = vmatprep.subr.bf16.mxu0 %v2575
    %2880 = vmatpush1.bf16.msra.mxu0 %v2574
    %2881 = vmatprep.subr.bf16.mxu0 %v2579
    %2882 = vmatpush1.bf16.msra.mxu0 %v2578
    %2883 = vmatprep.subr.bf16.mxu0 %v2583
    %2884 = vmatpush1.bf16.msra.mxu0 %v2582
    %2885 = vmatprep.subr.bf16.mxu0 %v2587
    %2886 = vmatpush1.bf16.msra.mxu0 %v2586
    %2887 = vmatprep.subr.bf16.mxu0 0
    %2888 = vmatpush1.bf16.msra.mxu0 0
    %2889 = vmatprep.subr.bf16.mxu0 0
    %2890 = vmatpush1.bf16.msra.mxu0 0
    %2891 = vmatprep.subr.bf16.mxu0 0
    %2892 = vmatpush1.bf16.msra.mxu0 0
    %2893 = vmatprep.subr.bf16.mxu0 0
    %2894 = vmatpush1.bf16.msra.mxu0 0
    %2895 = vmatprep.subr.bf16.mxu0 0
    %2896 = vmatpush1.bf16.msra.mxu0 0
    %2897 = vmatprep.subr.bf16.mxu0 0
    %2898 = vmatpush1.bf16.msra.mxu0 0
    %2899 = vmatprep.subr.bf16.mxu0 0
    %2900 = vmatpush1.bf16.msra.mxu0 0
    %2901 = vmatprep.subr.bf16.mxu0 0
    %2902 = vmatpush1.bf16.msra.mxu0 0
    %2903 = vmatprep.mubr.bf16.mxu0 0
    %2904 = vmatmul.mubr.bf16.gmra.mrb[0].mxu0 %v2829
    %v2905 = vpop.f32.mrb[0].mxu0
    %v2906 = vadd.f32 0.0, %v2905
    %v2907 = vpop.f32.mrb[0].mxu0
    %v2908 = vadd.f32 0.0, %v2907
    %v2909 = vpop.f32.mrb[0].mxu0
    %v2910 = vpop.f32.mrb[0].mxu0
    %2911 = vdwg.mxu0
    %v2912 = vadd.f32 %v2327, %v2865
    %v2913 = vadd.f32 %v2329, %v2867
    %v2914 = vadd.f32 %v2400, %v2906
    %v2915 = vadd.f32 %v2402, %v2908
    %v2916 = vmul.f32 %v2912, 0.5
    %v2917 = vtanh.pop %v2916
    %v2918 = vmul.f32 %v2917, 0.5
    %v2919 = vadd.f32 %v2918, 0.5
    %v2920 = vmul.f32 %v2913, 0.5
    %v2921 = vtanh.pop %v2920
    %v2922 = vmul.f32 %v2921, 0.5
    %v2923 = vadd.f32 %v2922, 0.5
    %v2924 = vtanh.pop %v2914
    %v2925 = vmul.f32 %v2915, 0.5
    %v2926 = vtanh.pop %v2925
    %v2927 = vmul.f32 %v2926, 0.5
    %v2928 = vadd.f32 %v2927, 0.5
    %v2929 = vmul.f32 %v2923, %v2826
    %v2930 = vmul.f32 %v2919, %v2924
    %v2931 = vadd.f32 %v2929, %v2930
    %v2932 = vtanh.pop %v2931
    %v2933 = vmul.f32 %v2928, %v2932
    %v2934 = vpack.c.bf16 %v2933, %v2933
    %2935 = vmatprep.subr.bf16.mxu0 %v2557
    %2936 = vmatpush1.bf16.msra.mxu0 %v2556
    %2937 = vmatprep.subr.bf16.mxu0 %v2561
    %2938 = vmatpush1.bf16.msra.mxu0 %v2560
    %2939 = vmatprep.subr.bf16.mxu0 %v2565
    %2940 = vmatpush1.bf16.msra.mxu0 %v2564
    %2941 = vmatprep.subr.bf16.mxu0 %v2569
    %2942 = vmatpush1.bf16.msra.mxu0 %v2568
    %2943 = vmatprep.subr.bf16.mxu0 %v2573
    %2944 = vmatpush1.bf16.msra.mxu0 %v2572
    %2945 = vmatprep.subr.bf16.mxu0 %v2577
    %2946 = vmatpush1.bf16.msra.mxu0 %v2576
    %2947 = vmatprep.subr.bf16.mxu0 %v2581
    %2948 = vmatpush1.bf16.msra.mxu0 %v2580
    %2949 = vmatprep.subr.bf16.mxu0 %v2585
    %2950 = vmatpush1.bf16.msra.mxu0 %v2584
    %2951 = vmatprep.subr.bf16.mxu0 0
    %2952 = vmatpush1.bf16.msra.mxu0 0
    %2953 = vmatprep.subr.bf16.mxu0 0
    %2954 = vmatpush1.bf16.msra.mxu0 0
    %2955 = vmatprep.subr.bf16.mxu0 0
    %2956 = vmatpush1.bf16.msra.mxu0 0
    %2957 = vmatprep.subr.bf16.mxu0 0
    %2958 = vmatpush1.bf16.msra.mxu0 0
    %2959 = vmatprep.subr.bf16.mxu0 0
    %2960 = vmatpush1.bf16.msra.mxu0 0
    %2961 = vmatprep.subr.bf16.mxu0 0
    %2962 = vmatpush1.bf16.msra.mxu0 0
    %2963 = vmatprep.subr.bf16.mxu0 0
    %2964 = vmatpush1.bf16.msra.mxu0 0
    %2965 = vmatprep.subr.bf16.mxu0 0
    %2966 = vmatpush1.bf16.msra.mxu0 0
    %2967 = vmatprep.mubr.bf16.mxu0 0
    %2968 = vmatmul.mubr.bf16.gmra.mrb[0].mxu0 %v2934
    %v2969 = vpop.f32.mrb[0].mxu0
    %v2970 = vadd.f32 0.0, %v2969
    %v2971 = vpop.f32.mrb[0].mxu0
    %v2972 = vadd.f32 0.0, %v2971
    %v2973 = vpop.f32.mrb[0].mxu0
    %v2974 = vpop.f32.mrb[0].mxu0
    %2975 = vdwg.mxu0
    %2976 = vmatprep.subr.bf16.mxu0 %v2559
    %2977 = vmatpush1.bf16.msra.mxu0 %v2558
    %2978 = vmatprep.subr.bf16.mxu0 %v2563
    %2979 = vmatpush1.bf16.msra.mxu0 %v2562
    %2980 = vmatprep.subr.bf16.mxu0 %v2567
    %2981 = vmatpush1.bf16.msra.mxu0 %v2566
    %2982 = vmatprep.subr.bf16.mxu0 %v2571
    %2983 = vmatpush1.bf16.msra.mxu0 %v2570
    %2984 = vmatprep.subr.bf16.mxu0 %v2575
    %2985 = vmatpush1.bf16.msra.mxu0 %v2574
    %2986 = vmatprep.subr.bf16.mxu0 %v2579
    %2987 = vmatpush1.bf16.msra.mxu0 %v2578
    %2988 = vmatprep.subr.bf16.mxu0 %v2583
    %2989 = vmatpush1.bf16.msra.mxu0 %v2582
    %2990 = vmatprep.subr.bf16.mxu0 %v2587
    %2991 = vmatpush1.bf16.msra.mxu0 %v2586
    %2992 = vmatprep.subr.bf16.mxu0 0
    %2993 = vmatpush1.bf16.msra.mxu0 0
    %2994 = vmatprep.subr.bf16.mxu0 0
    %2995 = vmatpush1.bf16.msra.mxu0 0
    %2996 = vmatprep.subr.bf16.mxu0 0
    %2997 = vmatpush1.bf16.msra.mxu0 0
    %2998 = vmatprep.subr.bf16.mxu0 0
    %2999 = vmatpush1.bf16.msra.mxu0 0
    %3000 = vmatprep.subr.bf16.mxu0 0
    %3001 = vmatpush1.bf16.msra.mxu0 0
    %3002 = vmatprep.subr.bf16.mxu0 0
    %3003 = vmatpush1.bf16.msra.mxu0 0
    %3004 = vmatprep.subr.bf16.mxu0 0
    %3005 = vmatpush1.bf16.msra.mxu0 0
    %3006 = vmatprep.subr.bf16.mxu0 0
    %3007 = vmatpush1.bf16.msra.mxu0 0
    %3008 = vmatprep.mubr.bf16.mxu0 0
    %3009 = vmatmul.mubr.bf16.gmra.mrb[0].mxu0 %v2934
    %v3010 = vpop.f32.mrb[0].mxu0
    %v3011 = vadd.f32 0.0, %v3010
    %v3012 = vpop.f32.mrb[0].mxu0
    %v3013 = vadd.f32 0.0, %v3012
    %v3014 = vpop.f32.mrb[0].mxu0
    %v3015 = vpop.f32.mrb[0].mxu0
    %3016 = vdwg.mxu0
    %v3017 = vadd.f32 %v2331, %v2970
    %v3018 = vadd.f32 %v2333, %v2972
    %v3019 = vadd.f32 %v2404, %v3011
    %v3020 = vadd.f32 %v2406, %v3013
    %v3021 = vmul.f32 %v3017, 0.5
    %v3022 = vtanh.pop %v3021
    %v3023 = vmul.f32 %v3022, 0.5
    %v3024 = vadd.f32 %v3023, 0.5
    %v3025 = vmul.f32 %v3018, 0.5
    %v3026 = vtanh.pop %v3025
    %v3027 = vmul.f32 %v3026, 0.5
    %v3028 = vadd.f32 %v3027, 0.5
    %v3029 = vtanh.pop %v3019
    %v3030 = vmul.f32 %v3020, 0.5
    %v3031 = vtanh.pop %v3030
    %v3032 = vmul.f32 %v3031, 0.5
    %v3033 = vadd.f32 %v3032, 0.5
    %v3034 = vmul.f32 %v3028, %v2931
    %v3035 = vmul.f32 %v3024, %v3029
    %v3036 = vadd.f32 %v3034, %v3035
    %v3037 = vtanh.pop %v3036
    %v3038 = vmul.f32 %v3033, %v3037
    %v3039 = vpack.c.bf16 %v3038, %v3038
    %3040 = vmatprep.subr.bf16.mxu0 %v2557
    %3041 = vmatpush1.bf16.msra.mxu0 %v2556
    %3042 = vmatprep.subr.bf16.mxu0 %v2561
    %3043 = vmatpush1.bf16.msra.mxu0 %v2560
    %3044 = vmatprep.subr.bf16.mxu0 %v2565
    %3045 = vmatpush1.bf16.msra.mxu0 %v2564
    %3046 = vmatprep.subr.bf16.mxu0 %v2569
    %3047 = vmatpush1.bf16.msra.mxu0 %v2568
    %3048 = vmatprep.subr.bf16.mxu0 %v2573
    %3049 = vmatpush1.bf16.msra.mxu0 %v2572
    %3050 = vmatprep.subr.bf16.mxu0 %v2577
    %3051 = vmatpush1.bf16.msra.mxu0 %v2576
    %3052 = vmatprep.subr.bf16.mxu0 %v2581
    %3053 = vmatpush1.bf16.msra.mxu0 %v2580
    %3054 = vmatprep.subr.bf16.mxu0 %v2585
    %3055 = vmatpush1.bf16.msra.mxu0 %v2584
    %3056 = vmatprep.subr.bf16.mxu0 0
    %3057 = vmatpush1.bf16.msra.mxu0 0
    %3058 = vmatprep.subr.bf16.mxu0 0
    %3059 = vmatpush1.bf16.msra.mxu0 0
    %3060 = vmatprep.subr.bf16.mxu0 0
    %3061 = vmatpush1.bf16.msra.mxu0 0
    %3062 = vmatprep.subr.bf16.mxu0 0
    %3063 = vmatpush1.bf16.msra.mxu0 0
    %3064 = vmatprep.subr.bf16.mxu0 0
    %3065 = vmatpush1.bf16.msra.mxu0 0
    %3066 = vmatprep.subr.bf16.mxu0 0
    %3067 = vmatpush1.bf16.msra.mxu0 0
    %3068 = vmatprep.subr.bf16.mxu0 0
    %3069 = vmatpush1.bf16.msra.mxu0 0
    %3070 = vmatprep.subr.bf16.mxu0 0
    %3071 = vmatpush1.bf16.msra.mxu0 0
    %3072 = vmatprep.mubr.bf16.mxu0 0
    %3073 = vmatmul.mubr.bf16.gmra.mrb[0].mxu0 %v3039
    %v3074 = vpop.f32.mrb[0].mxu0
    %v3075 = vadd.f32 0.0, %v3074
    %v3076 = vpop.f32.mrb[0].mxu0
    %v3077 = vadd.f32 0.0, %v3076
    %v3078 = vpop.f32.mrb[0].mxu0
    %v3079 = vpop.f32.mrb[0].mxu0
    %3080 = vdwg.mxu0
    %3081 = vmatprep.subr.bf16.mxu0 %v2559
    %3082 = vmatpush1.bf16.msra.mxu0 %v2558
    %3083 = vmatprep.subr.bf16.mxu0 %v2563
    %3084 = vmatpush1.bf16.msra.mxu0 %v2562
    %3085 = vmatprep.subr.bf16.mxu0 %v2567
    %3086 = vmatpush1.bf16.msra.mxu0 %v2566
    %3087 = vmatprep.subr.bf16.mxu0 %v2571
    %3088 = vmatpush1.bf16.msra.mxu0 %v2570
    %3089 = vmatprep.subr.bf16.mxu0 %v2575
    %3090 = vmatpush1.bf16.msra.mxu0 %v2574
    %3091 = vmatprep.subr.bf16.mxu0 %v2579
    %3092 = vmatpush1.bf16.msra.mxu0 %v2578
    %3093 = vmatprep.subr.bf16.mxu0 %v2583
    %3094 = vmatpush1.bf16.msra.mxu0 %v2582
    %3095 = vmatprep.subr.bf16.mxu0 %v2587
    %3096 = vmatpush1.bf16.msra.mxu0 %v2586
    %3097 = vmatprep.subr.bf16.mxu0 0
    %3098 = vmatpush1.bf16.msra.mxu0 0
    %3099 = vmatprep.subr.bf16.mxu0 0
    %3100 = vmatpush1.bf16.msra.mxu0 0
    %3101 = vmatprep.subr.bf16.mxu0 0
    %3102 = vmatpush1.bf16.msra.mxu0 0
    %3103 = vmatprep.subr.bf16.mxu0 0
    %3104 = vmatpush1.bf16.msra.mxu0 0
    %3105 = vmatprep.subr.bf16.mxu0 0
    %3106 = vmatpush1.bf16.msra.mxu0 0
    %3107 = vmatprep.subr.bf16.mxu0 0
    %3108 = vmatpush1.bf16.msra.mxu0 0
    %3109 = vmatprep.subr.bf16.mxu0 0
    %3110 = vmatpush1.bf16.msra.mxu0 0
    %3111 = vmatprep.subr.bf16.mxu0 0
    %3112 = vmatpush1.bf16.msra.mxu0 0
    %3113 = vmatprep.mubr.bf16.mxu0 0
    %3114 = vmatmul.mubr.bf16.gmra.mrb[0].mxu0 %v3039
    %v3115 = vpop.f32.mrb[0].mxu0
    %v3116 = vadd.f32 0.0, %v3115
    %v3117 = vpop.f32.mrb[0].mxu0
    %v3118 = vadd.f32 0.0, %v3117
    %v3119 = vpop.f32.mrb[0].mxu0
    %v3120 = vpop.f32.mrb[0].mxu0
    %3121 = vdwg.mxu0
    %v3122 = vadd.f32 %v2337, %v3075
    %v3123 = vadd.f32 %v2339, %v3077
    %v3124 = vadd.f32 %v2410, %v3116
    %v3125 = vadd.f32 %v2412, %v3118
    %v3126 = vmul.f32 %v3122, 0.5
    %v3127 = vtanh.pop %v3126
    %v3128 = vmul.f32 %v3127, 0.5
    %v3129 = vadd.f32 %v3128, 0.5
    %v3130 = vmul.f32 %v3123, 0.5
    %v3131 = vtanh.pop %v3130
    %v3132 = vmul.f32 %v3131, 0.5
    %v3133 = vadd.f32 %v3132, 0.5
    %v3134 = vtanh.pop %v3124
    %v3135 = vmul.f32 %v3125, 0.5
    %v3136 = vtanh.pop %v3135
    %v3137 = vmul.f32 %v3136, 0.5
    %v3138 = vadd.f32 %v3137, 0.5
    %v3139 = vmul.f32 %v3133, %v3036
    %v3140 = vmul.f32 %v3129, %v3134
    %v3141 = vadd.f32 %v3139, %v3140
    %v3142 = vtanh.pop %v3141
    %v3143 = vmul.f32 %v3138, %v3142
    %v3144 = vpack.c.bf16 %v3143, %v3143
    %3145 = vmatprep.subr.bf16.mxu0 %v2557
    %3146 = vmatpush1.bf16.msra.mxu0 %v2556
    %3147 = vmatprep.subr.bf16.mxu0 %v2561
    %3148 = vmatpush1.bf16.msra.mxu0 %v2560
    %3149 = vmatprep.subr.bf16.mxu0 %v2565
    %3150 = vmatpush1.bf16.msra.mxu0 %v2564
    %3151 = vmatprep.subr.bf16.mxu0 %v2569
    %3152 = vmatpush1.bf16.msra.mxu0 %v2568
    %3153 = vmatprep.subr.bf16.mxu0 %v2573
    %3154 = vmatpush1.bf16.msra.mxu0 %v2572
    %3155 = vmatprep.subr.bf16.mxu0 %v2577
    %3156 = vmatpush1.bf16.msra.mxu0 %v2576
    %3157 = vmatprep.subr.bf16.mxu0 %v2581
    %3158 = vmatpush1.bf16.msra.mxu0 %v2580
    %3159 = vmatprep.subr.bf16.mxu0 %v2585
    %3160 = vmatpush1.bf16.msra.mxu0 %v2584
    %3161 = vmatprep.subr.bf16.mxu0 0
    %3162 = vmatpush1.bf16.msra.mxu0 0
    %3163 = vmatprep.subr.bf16.mxu0 0
    %3164 = vmatpush1.bf16.msra.mxu0 0
    %3165 = vmatprep.subr.bf16.mxu0 0
    %3166 = vmatpush1.bf16.msra.mxu0 0
    %3167 = vmatprep.subr.bf16.mxu0 0
    %3168 = vmatpush1.bf16.msra.mxu0 0
    %3169 = vmatprep.subr.bf16.mxu0 0
    %3170 = vmatpush1.bf16.msra.mxu0 0
    %3171 = vmatprep.subr.bf16.mxu0 0
    %3172 = vmatpush1.bf16.msra.mxu0 0
    %3173 = vmatprep.subr.bf16.mxu0 0
    %3174 = vmatpush1.bf16.msra.mxu0 0
    %3175 = vmatprep.subr.bf16.mxu0 0
    %3176 = vmatpush1.bf16.msra.mxu0 0
    %3177 = vmatprep.mubr.bf16.mxu0 0
    %3178 = vmatmul.mubr.bf16.gmra.mrb[0].mxu0 %v3144
    %v3179 = vpop.f32.mrb[0].mxu0
    %v3180 = vadd.f32 0.0, %v3179
    %v3181 = vpop.f32.mrb[0].mxu0
    %v3182 = vadd.f32 0.0, %v3181
    %v3183 = vpop.f32.mrb[0].mxu0
    %v3184 = vpop.f32.mrb[0].mxu0
    %3185 = vdwg.mxu0
    %3186 = vmatprep.subr.bf16.mxu0 %v2559
    %3187 = vmatpush1.bf16.msra.mxu0 %v2558
    %3188 = vmatprep.subr.bf16.mxu0 %v2563
    %3189 = vmatpush1.bf16.msra.mxu0 %v2562
    %3190 = vmatprep.subr.bf16.mxu0 %v2567
    %3191 = vmatpush1.bf16.msra.mxu0 %v2566
    %3192 = vmatprep.subr.bf16.mxu0 %v2571
    %3193 = vmatpush1.bf16.msra.mxu0 %v2570
    %3194 = vmatprep.subr.bf16.mxu0 %v2575
    %3195 = vmatpush1.bf16.msra.mxu0 %v2574
    %3196 = vmatprep.subr.bf16.mxu0 %v2579
    %3197 = vmatpush1.bf16.msra.mxu0 %v2578
    %3198 = vmatprep.subr.bf16.mxu0 %v2583
    %3199 = vmatpush1.bf16.msra.mxu0 %v2582
    %3200 = vmatprep.subr.bf16.mxu0 %v2587
    %3201 = vmatpush1.bf16.msra.mxu0 %v2586
    %3202 = vmatprep.subr.bf16.mxu0 0
    %3203 = vmatpush1.bf16.msra.mxu0 0
    %3204 = vmatprep.subr.bf16.mxu0 0
    %3205 = vmatpush1.bf16.msra.mxu0 0
    %3206 = vmatprep.subr.bf16.mxu0 0
    %3207 = vmatpush1.bf16.msra.mxu0 0
    %3208 = vmatprep.subr.bf16.mxu0 0
    %3209 = vmatpush1.bf16.msra.mxu0 0
    %3210 = vmatprep.subr.bf16.mxu0 0
    %3211 = vmatpush1.bf16.msra.mxu0 0
    %3212 = vmatprep.subr.bf16.mxu0 0
    %3213 = vmatpush1.bf16.msra.mxu0 0
    %3214 = vmatprep.subr.bf16.mxu0 0
    %3215 = vmatpush1.bf16.msra.mxu0 0
    %3216 = vmatprep.subr.bf16.mxu0 0
    %3217 = vmatpush1.bf16.msra.mxu0 0
    %3218 = vmatprep.mubr.bf16.mxu0 0
    %3219 = vmatmul.mubr.bf16.gmra.mrb[0].mxu0 %v3144
    %v3220 = vpop.f32.mrb[0].mxu0
    %v3221 = vadd.f32 0.0, %v3220
    %v3222 = vpop.f32.mrb[0].mxu0
    %v3223 = vadd.f32 0.0, %v3222
    %v3224 = vpop.f32.mrb[0].mxu0
    %v3225 = vpop.f32.mrb[0].mxu0
    %3226 = vdwg.mxu0
    %v3227 = vadd.f32 %v2341, %v3180
    %v3228 = vadd.f32 %v2343, %v3182
    %v3229 = vadd.f32 %v2414, %v3221
    %v3230 = vadd.f32 %v2416, %v3223
    %v3231 = vmul.f32 %v3227, 0.5
    %v3232 = vtanh.pop %v3231
    %v3233 = vmul.f32 %v3232, 0.5
    %v3234 = vadd.f32 %v3233, 0.5
    %v3235 = vmul.f32 %v3228, 0.5
    %v3236 = vtanh.pop %v3235
    %v3237 = vmul.f32 %v3236, 0.5
    %v3238 = vadd.f32 %v3237, 0.5
    %v3239 = vtanh.pop %v3229
    %v3240 = vmul.f32 %v3230, 0.5
    %v3241 = vtanh.pop %v3240
    %v3242 = vmul.f32 %v3241, 0.5
    %v3243 = vadd.f32 %v3242, 0.5
    %v3244 = vmul.f32 %v3238, %v3141
    %v3245 = vmul.f32 %v3234, %v3239
    %v3246 = vadd.f32 %v3244, %v3245
    %v3247 = vtanh.pop %v3246
    %v3248 = vmul.f32 %v3243, %v3247
    %v3249 = vpack.c.bf16 %v3248, %v3248
    %3250 = vmatprep.subr.bf16.mxu0 %v2557
    %3251 = vmatpush1.bf16.msra.mxu0 %v2556
    %3252 = vmatprep.subr.bf16.mxu0 %v2561
    %3253 = vmatpush1.bf16.msra.mxu0 %v2560
    %3254 = vmatprep.subr.bf16.mxu0 %v2565
    %3255 = vmatpush1.bf16.msra.mxu0 %v2564
    %3256 = vmatprep.subr.bf16.mxu0 %v2569
    %3257 = vmatpush1.bf16.msra.mxu0 %v2568
    %3258 = vmatprep.subr.bf16.mxu0 %v2573
    %3259 = vmatpush1.bf16.msra.mxu0 %v2572
    %3260 = vmatprep.subr.bf16.mxu0 %v2577
    %3261 = vmatpush1.bf16.msra.mxu0 %v2576
    %3262 = vmatprep.subr.bf16.mxu0 %v2581
    %3263 = vmatpush1.bf16.msra.mxu0 %v2580
    %3264 = vmatprep.subr.bf16.mxu0 %v2585
    %3265 = vmatpush1.bf16.msra.mxu0 %v2584
    %3266 = vmatprep.subr.bf16.mxu0 0
    %3267 = vmatpush1.bf16.msra.mxu0 0
    %3268 = vmatprep.subr.bf16.mxu0 0
    %3269 = vmatpush1.bf16.msra.mxu0 0
    %3270 = vmatprep.subr.bf16.mxu0 0
    %3271 = vmatpush1.bf16.msra.mxu0 0
    %3272 = vmatprep.subr.bf16.mxu0 0
    %3273 = vmatpush1.bf16.msra.mxu0 0
    %3274 = vmatprep.subr.bf16.mxu0 0
    %3275 = vmatpush1.bf16.msra.mxu0 0
    %3276 = vmatprep.subr.bf16.mxu0 0
    %3277 = vmatpush1.bf16.msra.mxu0 0
    %3278 = vmatprep.subr.bf16.mxu0 0
    %3279 = vmatpush1.bf16.msra.mxu0 0
    %3280 = vmatprep.subr.bf16.mxu0 0
    %3281 = vmatpush1.bf16.msra.mxu0 0
    %3282 = vmatprep.mubr.bf16.mxu0 0
    %3283 = vmatmul.mubr.bf16.gmra.mrb[0].mxu0 %v3249
    %v3284 = vpop.f32.mrb[0].mxu0
    %v3285 = vadd.f32 0.0, %v3284
    %v3286 = vpop.f32.mrb[0].mxu0
    %v3287 = vadd.f32 0.0, %v3286
    %v3288 = vpop.f32.mrb[0].mxu0
    %v3289 = vpop.f32.mrb[0].mxu0
    %3290 = vdwg.mxu0
    %3291 = vmatprep.subr.bf16.mxu0 %v2559
    %3292 = vmatpush1.bf16.msra.mxu0 %v2558
    %3293 = vmatprep.subr.bf16.mxu0 %v2563
    %3294 = vmatpush1.bf16.msra.mxu0 %v2562
    %3295 = vmatprep.subr.bf16.mxu0 %v2567
    %3296 = vmatpush1.bf16.msra.mxu0 %v2566
    %3297 = vmatprep.subr.bf16.mxu0 %v2571
    %3298 = vmatpush1.bf16.msra.mxu0 %v2570
    %3299 = vmatprep.subr.bf16.mxu0 %v2575
    %3300 = vmatpush1.bf16.msra.mxu0 %v2574
    %3301 = vmatprep.subr.bf16.mxu0 %v2579
    %3302 = vmatpush1.bf16.msra.mxu0 %v2578
    %3303 = vmatprep.subr.bf16.mxu0 %v2583
    %3304 = vmatpush1.bf16.msra.mxu0 %v2582
    %3305 = vmatprep.subr.bf16.mxu0 %v2587
    %3306 = vmatpush1.bf16.msra.mxu0 %v2586
    %3307 = vmatprep.subr.bf16.mxu0 0
    %3308 = vmatpush1.bf16.msra.mxu0 0
    %3309 = vmatprep.subr.bf16.mxu0 0
    %3310 = vmatpush1.bf16.msra.mxu0 0
    %3311 = vmatprep.subr.bf16.mxu0 0
    %3312 = vmatpush1.bf16.msra.mxu0 0
    %3313 = vmatprep.subr.bf16.mxu0 0
    %3314 = vmatpush1.bf16.msra.mxu0 0
    %3315 = vmatprep.subr.bf16.mxu0 0
    %3316 = vmatpush1.bf16.msra.mxu0 0
    %3317 = vmatprep.subr.bf16.mxu0 0
    %3318 = vmatpush1.bf16.msra.mxu0 0
    %3319 = vmatprep.subr.bf16.mxu0 0
    %3320 = vmatpush1.bf16.msra.mxu0 0
    %3321 = vmatprep.subr.bf16.mxu0 0
    %3322 = vmatpush1.bf16.msra.mxu0 0
    %3323 = vmatprep.mubr.bf16.mxu0 0
    %3324 = vmatmul.mubr.bf16.gmra.mrb[0].mxu0 %v3249
    %v3325 = vpop.f32.mrb[0].mxu0
    %v3326 = vadd.f32 0.0, %v3325
    %v3327 = vpop.f32.mrb[0].mxu0
    %v3328 = vadd.f32 0.0, %v3327
    %v3329 = vpop.f32.mrb[0].mxu0
    %v3330 = vpop.f32.mrb[0].mxu0
    %3331 = vdwg.mxu0
    %v3332 = vadd.f32 %v2347, %v3285
    %v3333 = vadd.f32 %v2349, %v3287
    %v3334 = vadd.f32 %v2420, %v3326
    %v3335 = vadd.f32 %v2422, %v3328
    %v3336 = vmul.f32 %v3332, 0.5
    %v3337 = vtanh.pop %v3336
    %v3338 = vmul.f32 %v3337, 0.5
    %v3339 = vadd.f32 %v3338, 0.5
    %v3340 = vmul.f32 %v3333, 0.5
    %v3341 = vtanh.pop %v3340
    %v3342 = vmul.f32 %v3341, 0.5
    %v3343 = vadd.f32 %v3342, 0.5
    %v3344 = vtanh.pop %v3334
    %v3345 = vmul.f32 %v3335, 0.5
    %v3346 = vtanh.pop %v3345
    %v3347 = vmul.f32 %v3346, 0.5
    %v3348 = vadd.f32 %v3347, 0.5
    %v3349 = vmul.f32 %v3343, %v3246
    %v3350 = vmul.f32 %v3339, %v3344
    %v3351 = vadd.f32 %v3349, %v3350
    %v3352 = vtanh.pop %v3351
    %v3353 = vmul.f32 %v3348, %v3352
    %v3354 = vpack.c.bf16 %v3353, %v3353
    %3355 = vmatprep.subr.bf16.mxu0 %v2557
    %3356 = vmatpush1.bf16.msra.mxu0 %v2556
    %3357 = vmatprep.subr.bf16.mxu0 %v2561
    %3358 = vmatpush1.bf16.msra.mxu0 %v2560
    %3359 = vmatprep.subr.bf16.mxu0 %v2565
    %3360 = vmatpush1.bf16.msra.mxu0 %v2564
    %3361 = vmatprep.subr.bf16.mxu0 %v2569
    %3362 = vmatpush1.bf16.msra.mxu0 %v2568
    %3363 = vmatprep.subr.bf16.mxu0 %v2573
    %3364 = vmatpush1.bf16.msra.mxu0 %v2572
    %3365 = vmatprep.subr.bf16.mxu0 %v2577
    %3366 = vmatpush1.bf16.msra.mxu0 %v2576
    %3367 = vmatprep.subr.bf16.mxu0 %v2581
    %3368 = vmatpush1.bf16.msra.mxu0 %v2580
    %3369 = vmatprep.subr.bf16.mxu0 %v2585
    %3370 = vmatpush1.bf16.msra.mxu0 %v2584
    %3371 = vmatprep.subr.bf16.mxu0 0
    %3372 = vmatpush1.bf16.msra.mxu0 0
    %3373 = vmatprep.subr.bf16.mxu0 0
    %3374 = vmatpush1.bf16.msra.mxu0 0
    %3375 = vmatprep.subr.bf16.mxu0 0
    %3376 = vmatpush1.bf16.msra.mxu0 0
    %3377 = vmatprep.subr.bf16.mxu0 0
    %3378 = vmatpush1.bf16.msra.mxu0 0
    %3379 = vmatprep.subr.bf16.mxu0 0
    %3380 = vmatpush1.bf16.msra.mxu0 0
    %3381 = vmatprep.subr.bf16.mxu0 0
    %3382 = vmatpush1.bf16.msra.mxu0 0
    %3383 = vmatprep.subr.bf16.mxu0 0
    %3384 = vmatpush1.bf16.msra.mxu0 0
    %3385 = vmatprep.subr.bf16.mxu0 0
    %3386 = vmatpush1.bf16.msra.mxu0 0
    %3387 = vmatprep.mubr.bf16.mxu0 0
    %3388 = vmatmul.mubr.bf16.gmra.mrb[0].mxu0 %v3354
    %v3389 = vpop.f32.mrb[0].mxu0
    %v3390 = vadd.f32 0.0, %v3389
    %v3391 = vpop.f32.mrb[0].mxu0
    %v3392 = vadd.f32 0.0, %v3391
    %v3393 = vpop.f32.mrb[0].mxu0
    %v3394 = vpop.f32.mrb[0].mxu0
    %3395 = vdwg.mxu0
    %3396 = vmatprep.subr.bf16.mxu0 %v2559
    %3397 = vmatpush1.bf16.msra.mxu0 %v2558
    %3398 = vmatprep.subr.bf16.mxu0 %v2563
    %3399 = vmatpush1.bf16.msra.mxu0 %v2562
    %3400 = vmatprep.subr.bf16.mxu0 %v2567
    %3401 = vmatpush1.bf16.msra.mxu0 %v2566
    %3402 = vmatprep.subr.bf16.mxu0 %v2571
    %3403 = vmatpush1.bf16.msra.mxu0 %v2570
    %3404 = vmatprep.subr.bf16.mxu0 %v2575
    %3405 = vmatpush1.bf16.msra.mxu0 %v2574
    %3406 = vmatprep.subr.bf16.mxu0 %v2579
    %3407 = vmatpush1.bf16.msra.mxu0 %v2578
    %3408 = vmatprep.subr.bf16.mxu0 %v2583
    %3409 = vmatpush1.bf16.msra.mxu0 %v2582
    %3410 = vmatprep.subr.bf16.mxu0 %v2587
    %3411 = vmatpush1.bf16.msra.mxu0 %v2586
    %3412 = vmatprep.subr.bf16.mxu0 0
    %3413 = vmatpush1.bf16.msra.mxu0 0
    %3414 = vmatprep.subr.bf16.mxu0 0
    %3415 = vmatpush1.bf16.msra.mxu0 0
    %3416 = vmatprep.subr.bf16.mxu0 0
    %3417 = vmatpush1.bf16.msra.mxu0 0
    %3418 = vmatprep.subr.bf16.mxu0 0
    %3419 = vmatpush1.bf16.msra.mxu0 0
    %3420 = vmatprep.subr.bf16.mxu0 0
    %3421 = vmatpush1.bf16.msra.mxu0 0
    %3422 = vmatprep.subr.bf16.mxu0 0
    %3423 = vmatpush1.bf16.msra.mxu0 0
    %3424 = vmatprep.subr.bf16.mxu0 0
    %3425 = vmatpush1.bf16.msra.mxu0 0
    %3426 = vmatprep.subr.bf16.mxu0 0
    %3427 = vmatpush1.bf16.msra.mxu0 0
    %3428 = vmatprep.mubr.bf16.mxu0 0
    %3429 = vmatmul.mubr.bf16.gmra.mrb[0].mxu0 %v3354
    %v3430 = vpop.f32.mrb[0].mxu0
    %v3431 = vadd.f32 0.0, %v3430
    %v3432 = vpop.f32.mrb[0].mxu0
    %v3433 = vadd.f32 0.0, %v3432
    %v3434 = vpop.f32.mrb[0].mxu0
    %v3435 = vpop.f32.mrb[0].mxu0
    %3436 = vdwg.mxu0
    %v3437 = vadd.f32 %v2351, %v3390
    %v3438 = vadd.f32 %v2353, %v3392
    %v3439 = vadd.f32 %v2424, %v3431
    %v3440 = vadd.f32 %v2426, %v3433
    %v3441 = vmul.f32 %v3437, 0.5
    %v3442 = vtanh.pop %v3441
    %v3443 = vmul.f32 %v3442, 0.5
    %v3444 = vadd.f32 %v3443, 0.5
    %v3445 = vmul.f32 %v3438, 0.5
    %v3446 = vtanh.pop %v3445
    %v3447 = vmul.f32 %v3446, 0.5
    %v3448 = vadd.f32 %v3447, 0.5
    %v3449 = vtanh.pop %v3439
    %v3450 = vmul.f32 %v3440, 0.5
    %v3451 = vtanh.pop %v3450
    %v3452 = vmul.f32 %v3451, 0.5
    %v3453 = vadd.f32 %v3452, 0.5
    %v3454 = vmul.f32 %v3448, %v3351
    %v3455 = vmul.f32 %v3444, %v3449
    %v3456 = vadd.f32 %v3454, %v3455
    %v3457 = vtanh.pop %v3456
    %v3458 = vmul.f32 %v3453, %v3457
    %v3459 = vpack.c.bf16 %v1946, %v1946
    %v3460 = vld [vmem:[%s43] sm:$0xff]
    %v3461 = vld [vmem:[%s43 + $0x8] sm:$0xff]
    %v3462 = vld [vmem:[%s43 + $0x10] sm:$0xff]
    %v3463 = vld [vmem:[%s43 + $0x18] sm:$0xff]
    %v3464 = vld [vmem:[%s43 + $0x20] sm:$0xff]
    %v3465 = vld [vmem:[%s43 + $0x28] sm:$0xff]
    %v3466 = vld [vmem:[%s43 + $0x30] sm:$0xff]
    %v3467 = vld [vmem:[%s43 + $0x38] sm:$0xff]
    %v3468 = vld [vmem:[%s43 + $0x40] sm:$0xff]
    %v3469 = vld [vmem:[%s43 + $0x48] sm:$0xff]
    %v3470 = vld [vmem:[%s43 + $0x50] sm:$0xff]
    %v3471 = vld [vmem:[%s43 + $0x58] sm:$0xff]
    %v3472 = vld [vmem:[%s43 + $0x60] sm:$0xff]
    %v3473 = vld [vmem:[%s43 + $0x68] sm:$0xff]
    %v3474 = vld [vmem:[%s43 + $0x70] sm:$0xff]
    %v3475 = vld [vmem:[%s43 + $0x78] sm:$0xff]
    %v3476 = vpack.c.bf16 %v531, %v531
    %v3477 = vld [vmem:[#allocation31] sm:$0xff]
    %v3478 = vld [vmem:[#allocation31 + $0x8] sm:$0xff]
    %v3479 = vld [vmem:[#allocation31 + $0x10] sm:$0xff]
    %v3480 = vld [vmem:[#allocation31 + $0x18] sm:$0xff]
    %v3481 = vld [vmem:[#allocation31 + $0x20] sm:$0xff]
    %v3482 = vld [vmem:[#allocation31 + $0x28] sm:$0xff]
    %v3483 = vld [vmem:[#allocation31 + $0x30] sm:$0xff]
    %v3484 = vld [vmem:[#allocation31 + $0x38] sm:$0xff]
    %v3485 = vld [vmem:[#allocation31 + $0x40] sm:$0xff]
    %v3486 = vld [vmem:[#allocation31 + $0x48] sm:$0xff]
    %v3487 = vld [vmem:[#allocation31 + $0x50] sm:$0xff]
    %v3488 = vld [vmem:[#allocation31 + $0x58] sm:$0xff]
    %v3489 = vld [vmem:[#allocation31 + $0x60] sm:$0xff]
    %v3490 = vld [vmem:[#allocation31 + $0x68] sm:$0xff]
    %v3491 = vld [vmem:[#allocation31 + $0x70] sm:$0xff]
    %v3492 = vld [vmem:[#allocation31 + $0x78] sm:$0xff]
    %v3509 = vunpack.c.l.b16 %v3477
    %v3510 = vunpack.c.h.b16 %v3477
    %v3511 = vunpack.c.l.b16 %v3478
    %v3512 = vunpack.c.h.b16 %v3478
    %v3513 = vunpack.c.l.b16 %v3479
    %v3514 = vunpack.c.h.b16 %v3479
    %v3515 = vunpack.c.l.b16 %v3480
    %v3516 = vunpack.c.h.b16 %v3480
    %v3517 = vunpack.c.l.b16 %v3481
    %v3518 = vunpack.c.h.b16 %v3481
    %v3519 = vunpack.c.l.b16 %v3482
    %v3520 = vunpack.c.h.b16 %v3482
    %v3521 = vunpack.c.l.b16 %v3483
    %v3522 = vunpack.c.h.b16 %v3483
    %v3523 = vunpack.c.l.b16 %v3484
    %v3524 = vunpack.c.h.b16 %v3484
    %v3525 = vunpack.c.l.b16 %v3485
    %v3526 = vunpack.c.h.b16 %v3485
    %v3527 = vunpack.c.l.b16 %v3486
    %v3528 = vunpack.c.h.b16 %v3486
    %v3529 = vunpack.c.l.b16 %v3487
    %v3530 = vunpack.c.h.b16 %v3487
    %v3531 = vunpack.c.l.b16 %v3488
    %v3532 = vunpack.c.h.b16 %v3488
    %v3533 = vunpack.c.l.b16 %v3489
    %v3534 = vunpack.c.h.b16 %v3489
    %v3535 = vunpack.c.l.b16 %v3490
    %v3536 = vunpack.c.h.b16 %v3490
    %v3537 = vunpack.c.l.b16 %v3491
    %v3538 = vunpack.c.h.b16 %v3491
    %v3539 = vunpack.c.l.b16 %v3492
    %v3540 = vunpack.c.h.b16 %v3492
    %v3541 = vpack.c.b16 %v3511, %v3509
    %v3542 = vpack.c.b16 %v3512, %v3510
    %v3543 = vpack.c.b16 %v3515, %v3513
    %v3544 = vpack.c.b16 %v3516, %v3514
    %v3545 = vpack.c.b16 %v3519, %v3517
    %v3546 = vpack.c.b16 %v3520, %v3518
    %v3547 = vpack.c.b16 %v3523, %v3521
    %v3548 = vpack.c.b16 %v3524, %v3522
    %v3549 = vpack.c.b16 %v3527, %v3525
    %v3550 = vpack.c.b16 %v3528, %v3526
    %v3551 = vpack.c.b16 %v3531, %v3529
    %v3552 = vpack.c.b16 %v3532, %v3530
    %v3553 = vpack.c.b16 %v3535, %v3533
    %v3554 = vpack.c.b16 %v3536, %v3534
    %v3555 = vpack.c.b16 %v3539, %v3537
    %v3556 = vpack.c.b16 %v3540, %v3538
    %3573 = vmatprep.subr.bf16.mxu0 %v3542
    %3574 = vmatpush1.bf16.msra.mxu0 %v3541
    %3575 = vmatprep.subr.bf16.mxu0 %v3544
    %3576 = vmatpush1.bf16.msra.mxu0 %v3543
    %3577 = vmatprep.subr.bf16.mxu0 %v3546
    %3578 = vmatpush1.bf16.msra.mxu0 %v3545
    %3579 = vmatprep.subr.bf16.mxu0 %v3548
    %3580 = vmatpush1.bf16.msra.mxu0 %v3547
    %3581 = vmatprep.subr.bf16.mxu0 %v3550
    %3582 = vmatpush1.bf16.msra.mxu0 %v3549
    %3583 = vmatprep.subr.bf16.mxu0 %v3552
    %3584 = vmatpush1.bf16.msra.mxu0 %v3551
    %3585 = vmatprep.subr.bf16.mxu0 %v3554
    %3586 = vmatpush1.bf16.msra.mxu0 %v3553
    %3587 = vmatprep.subr.bf16.mxu0 %v3556
    %3588 = vmatpush1.bf16.msra.mxu0 %v3555
    %3589 = vmatprep.subr.bf16.mxu0 0
    %3590 = vmatpush1.bf16.msra.mxu0 0
    %3591 = vmatprep.subr.bf16.mxu0 0
    %3592 = vmatpush1.bf16.msra.mxu0 0
    %3593 = vmatprep.subr.bf16.mxu0 0
    %3594 = vmatpush1.bf16.msra.mxu0 0
    %3595 = vmatprep.subr.bf16.mxu0 0
    %3596 = vmatpush1.bf16.msra.mxu0 0
    %3597 = vmatprep.subr.bf16.mxu0 0
    %3598 = vmatpush1.bf16.msra.mxu0 0
    %3599 = vmatprep.subr.bf16.mxu0 0
    %3600 = vmatpush1.bf16.msra.mxu0 0
    %3601 = vmatprep.subr.bf16.mxu0 0
    %3602 = vmatpush1.bf16.msra.mxu0 0
    %3603 = vmatprep.subr.bf16.mxu0 0
    %3604 = vmatpush1.bf16.msra.mxu0 0
    %3605 = vmatprep.mubr.bf16.mxu0 0
    %3606 = vmatmul.mubr.bf16.gmra.mrb[0].mxu0 %v3476
    %v3607 = vpop.f32.mrb[0].mxu0
    %v3608 = vadd.f32 0.0, %v3607
    %v3609 = vpop.f32.mrb[0].mxu0
    %v3610 = vadd.f32 0.0, %v3609
    %v3611 = vpop.f32.mrb[0].mxu0
    %v3612 = vpop.f32.mrb[0].mxu0
    %3613 = vdwg.mxu0
    %v3630 = vunpack.c.l.b16 %v3460
    %v3631 = vunpack.c.h.b16 %v3460
    %v3632 = vunpack.c.l.b16 %v3461
    %v3633 = vunpack.c.h.b16 %v3461
    %v3634 = vunpack.c.l.b16 %v3462
    %v3635 = vunpack.c.h.b16 %v3462
    %v3636 = vunpack.c.l.b16 %v3463
    %v3637 = vunpack.c.h.b16 %v3463
    %v3638 = vunpack.c.l.b16 %v3464
    %v3639 = vunpack.c.h.b16 %v3464
    %v3640 = vunpack.c.l.b16 %v3465
    %v3641 = vunpack.c.h.b16 %v3465
    %v3642 = vunpack.c.l.b16 %v3466
    %v3643 = vunpack.c.h.b16 %v3466
    %v3644 = vunpack.c.l.b16 %v3467
    %v3645 = vunpack.c.h.b16 %v3467
    %v3646 = vunpack.c.l.b16 %v3468
    %v3647 = vunpack.c.h.b16 %v3468
    %v3648 = vunpack.c.l.b16 %v3469
    %v3649 = vunpack.c.h.b16 %v3469
    %v3650 = vunpack.c.l.b16 %v3470
    %v3651 = vunpack.c.h.b16 %v3470
    %v3652 = vunpack.c.l.b16 %v3471
    %v3653 = vunpack.c.h.b16 %v3471
    %v3654 = vunpack.c.l.b16 %v3472
    %v3655 = vunpack.c.h.b16 %v3472
    %v3656 = vunpack.c.l.b16 %v3473
    %v3657 = vunpack.c.h.b16 %v3473
    %v3658 = vunpack.c.l.b16 %v3474
    %v3659 = vunpack.c.h.b16 %v3474
    %v3660 = vunpack.c.l.b16 %v3475
    %v3661 = vunpack.c.h.b16 %v3475
    %v3662 = vpack.c.b16 %v3632, %v3630
    %v3663 = vpack.c.b16 %v3633, %v3631
    %v3664 = vpack.c.b16 %v3636, %v3634
    %v3665 = vpack.c.b16 %v3637, %v3635
    %v3666 = vpack.c.b16 %v3640, %v3638
    %v3667 = vpack.c.b16 %v3641, %v3639
    %v3668 = vpack.c.b16 %v3644, %v3642
    %v3669 = vpack.c.b16 %v3645, %v3643
    %v3670 = vpack.c.b16 %v3648, %v3646
    %v3671 = vpack.c.b16 %v3649, %v3647
    %v3672 = vpack.c.b16 %v3652, %v3650
    %v3673 = vpack.c.b16 %v3653, %v3651
    %v3674 = vpack.c.b16 %v3656, %v3654
    %v3675 = vpack.c.b16 %v3657, %v3655
    %v3676 = vpack.c.b16 %v3660, %v3658
    %v3677 = vpack.c.b16 %v3661, %v3659
    %3694 = vmatprep.subr.bf16.mxu0 %v3663
    %3695 = vmatpush1.bf16.msra.mxu0 %v3662
    %3696 = vmatprep.subr.bf16.mxu0 %v3665
    %3697 = vmatpush1.bf16.msra.mxu0 %v3664
    %3698 = vmatprep.subr.bf16.mxu0 %v3667
    %3699 = vmatpush1.bf16.msra.mxu0 %v3666
    %3700 = vmatprep.subr.bf16.mxu0 %v3669
    %3701 = vmatpush1.bf16.msra.mxu0 %v3668
    %3702 = vmatprep.subr.bf16.mxu0 %v3671
    %3703 = vmatpush1.bf16.msra.mxu0 %v3670
    %3704 = vmatprep.subr.bf16.mxu0 %v3673
    %3705 = vmatpush1.bf16.msra.mxu0 %v3672
    %3706 = vmatprep.subr.bf16.mxu0 %v3675
    %3707 = vmatpush1.bf16.msra.mxu0 %v3674
    %3708 = vmatprep.subr.bf16.mxu0 %v3677
    %3709 = vmatpush1.bf16.msra.mxu0 %v3676
    %3710 = vmatprep.subr.bf16.mxu0 0
    %3711 = vmatpush1.bf16.msra.mxu0 0
    %3712 = vmatprep.subr.bf16.mxu0 0
    %3713 = vmatpush1.bf16.msra.mxu0 0
    %3714 = vmatprep.subr.bf16.mxu0 0
    %3715 = vmatpush1.bf16.msra.mxu0 0
    %3716 = vmatprep.subr.bf16.mxu0 0
    %3717 = vmatpush1.bf16.msra.mxu0 0
    %3718 = vmatprep.subr.bf16.mxu0 0
    %3719 = vmatpush1.bf16.msra.mxu0 0
    %3720 = vmatprep.subr.bf16.mxu0 0
    %3721 = vmatpush1.bf16.msra.mxu0 0
    %3722 = vmatprep.subr.bf16.mxu0 0
    %3723 = vmatpush1.bf16.msra.mxu0 0
    %3724 = vmatprep.subr.bf16.mxu0 0
    %3725 = vmatpush1.bf16.msra.mxu0 0
    %3726 = vmatprep.mubr.bf16.mxu0 0
    %3727 = vmatmul.mubr.bf16.gmra.mrb[0].mxu0 %v3459
    %v3728 = vpop.f32.mrb[0].mxu0
    %v3729 = vadd.f32 %v3608, %v3728
    %v3730 = vpop.f32.mrb[0].mxu0
    %v3731 = vadd.f32 %v3610, %v3730
    %v3732 = vpop.f32.mrb[0].mxu0
    %v3733 = vpop.f32.mrb[0].mxu0
    %3734 = vdwg.mxu0
    %v3735 = vpack.c.bf16 %v532, %v532
    %v3736 = vld [vmem:[#allocation32] sm:$0xff]
    %v3737 = vld [vmem:[#allocation32 + $0x8] sm:$0xff]
    %v3738 = vld [vmem:[#allocation32 + $0x10] sm:$0xff]
    %v3739 = vld [vmem:[#allocation32 + $0x18] sm:$0xff]
    %v3740 = vld [vmem:[#allocation32 + $0x20] sm:$0xff]
    %v3741 = vld [vmem:[#allocation32 + $0x28] sm:$0xff]
    %v3742 = vld [vmem:[#allocation32 + $0x30] sm:$0xff]
    %v3743 = vld [vmem:[#allocation32 + $0x38] sm:$0xff]
    %v3744 = vld [vmem:[#allocation32 + $0x40] sm:$0xff]
    %v3745 = vld [vmem:[#allocation32 + $0x48] sm:$0xff]
    %v3746 = vld [vmem:[#allocation32 + $0x50] sm:$0xff]
    %v3747 = vld [vmem:[#allocation32 + $0x58] sm:$0xff]
    %v3748 = vld [vmem:[#allocation32 + $0x60] sm:$0xff]
    %v3749 = vld [vmem:[#allocation32 + $0x68] sm:$0xff]
    %v3750 = vld [vmem:[#allocation32 + $0x70] sm:$0xff]
    %v3751 = vld [vmem:[#allocation32 + $0x78] sm:$0xff]
    %v3768 = vunpack.c.l.b16 %v3736
    %v3769 = vunpack.c.h.b16 %v3736
    %v3770 = vunpack.c.l.b16 %v3737
    %v3771 = vunpack.c.h.b16 %v3737
    %v3772 = vunpack.c.l.b16 %v3738
    %v3773 = vunpack.c.h.b16 %v3738
    %v3774 = vunpack.c.l.b16 %v3739
    %v3775 = vunpack.c.h.b16 %v3739
    %v3776 = vunpack.c.l.b16 %v3740
    %v3777 = vunpack.c.h.b16 %v3740
    %v3778 = vunpack.c.l.b16 %v3741
    %v3779 = vunpack.c.h.b16 %v3741
    %v3780 = vunpack.c.l.b16 %v3742
    %v3781 = vunpack.c.h.b16 %v3742
    %v3782 = vunpack.c.l.b16 %v3743
    %v3783 = vunpack.c.h.b16 %v3743
    %v3784 = vunpack.c.l.b16 %v3744
    %v3785 = vunpack.c.h.b16 %v3744
    %v3786 = vunpack.c.l.b16 %v3745
    %v3787 = vunpack.c.h.b16 %v3745
    %v3788 = vunpack.c.l.b16 %v3746
    %v3789 = vunpack.c.h.b16 %v3746
    %v3790 = vunpack.c.l.b16 %v3747
    %v3791 = vunpack.c.h.b16 %v3747
    %v3792 = vunpack.c.l.b16 %v3748
    %v3793 = vunpack.c.h.b16 %v3748
    %v3794 = vunpack.c.l.b16 %v3749
    %v3795 = vunpack.c.h.b16 %v3749
    %v3796 = vunpack.c.l.b16 %v3750
    %v3797 = vunpack.c.h.b16 %v3750
    %v3798 = vunpack.c.l.b16 %v3751
    %v3799 = vunpack.c.h.b16 %v3751
    %v3800 = vpack.c.b16 %v3770, %v3768
    %v3801 = vpack.c.b16 %v3771, %v3769
    %v3802 = vpack.c.b16 %v3774, %v3772
    %v3803 = vpack.c.b16 %v3775, %v3773
    %v3804 = vpack.c.b16 %v3778, %v3776
    %v3805 = vpack.c.b16 %v3779, %v3777
    %v3806 = vpack.c.b16 %v3782, %v3780
    %v3807 = vpack.c.b16 %v3783, %v3781
    %v3808 = vpack.c.b16 %v3786, %v3784
    %v3809 = vpack.c.b16 %v3787, %v3785
    %v3810 = vpack.c.b16 %v3790, %v3788
    %v3811 = vpack.c.b16 %v3791, %v3789
    %v3812 = vpack.c.b16 %v3794, %v3792
    %v3813 = vpack.c.b16 %v3795, %v3793
    %v3814 = vpack.c.b16 %v3798, %v3796
    %v3815 = vpack.c.b16 %v3799, %v3797
    %3832 = vmatprep.subr.bf16.mxu0 %v3801
    %3833 = vmatpush1.bf16.msra.mxu0 %v3800
    %3834 = vmatprep.subr.bf16.mxu0 %v3803
    %3835 = vmatpush1.bf16.msra.mxu0 %v3802
    %3836 = vmatprep.subr.bf16.mxu0 %v3805
    %3837 = vmatpush1.bf16.msra.mxu0 %v3804
    %3838 = vmatprep.subr.bf16.mxu0 %v3807
    %3839 = vmatpush1.bf16.msra.mxu0 %v3806
    %3840 = vmatprep.subr.bf16.mxu0 %v3809
    %3841 = vmatpush1.bf16.msra.mxu0 %v3808
    %3842 = vmatprep.subr.bf16.mxu0 %v3811
    %3843 = vmatpush1.bf16.msra.mxu0 %v3810
    %3844 = vmatprep.subr.bf16.mxu0 %v3813
    %3845 = vmatpush1.bf16.msra.mxu0 %v3812
    %3846 = vmatprep.subr.bf16.mxu0 %v3815
    %3847 = vmatpush1.bf16.msra.mxu0 %v3814
    %3848 = vmatprep.subr.bf16.mxu0 0
    %3849 = vmatpush1.bf16.msra.mxu0 0
    %3850 = vmatprep.subr.bf16.mxu0 0
    %3851 = vmatpush1.bf16.msra.mxu0 0
    %3852 = vmatprep.subr.bf16.mxu0 0
    %3853 = vmatpush1.bf16.msra.mxu0 0
    %3854 = vmatprep.subr.bf16.mxu0 0
    %3855 = vmatpush1.bf16.msra.mxu0 0
    %3856 = vmatprep.subr.bf16.mxu0 0
    %3857 = vmatpush1.bf16.msra.mxu0 0
    %3858 = vmatprep.subr.bf16.mxu0 0
    %3859 = vmatpush1.bf16.msra.mxu0 0
    %3860 = vmatprep.subr.bf16.mxu0 0
    %3861 = vmatpush1.bf16.msra.mxu0 0
    %3862 = vmatprep.subr.bf16.mxu0 0
    %3863 = vmatpush1.bf16.msra.mxu0 0
    %3864 = vmatprep.mubr.bf16.mxu0 0
    %3865 = vmatmul.mubr.bf16.gmra.mrb[0].mxu0 %v3735
    %v3866 = vpop.f32.mrb[0].mxu0
    %v3867 = vadd.f32 0.0, %v3866
    %v3868 = vpop.f32.mrb[0].mxu0
    %v3869 = vadd.f32 0.0, %v3868
    %v3870 = vpop.f32.mrb[0].mxu0
    %v3871 = vpop.f32.mrb[0].mxu0
    %3872 = vdwg.mxu0
    %v3873 = vadd.f32 %v3729, %v3867
    %v3874 = vadd.f32 %v3731, %v3869
    %v3875 = vld [vmem:[#allocation34] sm:$0xff]
    %v3876 = vld [vmem:[#allocation34 + $0x8] sm:$0xff]
    %v3877 = vld [vmem:[#allocation34 + $0x10] sm:$0xff]
    %v3878 = vld [vmem:[#allocation34 + $0x18] sm:$0xff]
    %v3879 = vld [vmem:[#allocation34 + $0x20] sm:$0xff]
    %v3880 = vld [vmem:[#allocation34 + $0x28] sm:$0xff]
    %v3881 = vld [vmem:[#allocation34 + $0x30] sm:$0xff]
    %v3882 = vld [vmem:[#allocation34 + $0x38] sm:$0xff]
    %v3883 = vld [vmem:[#allocation34 + $0x40] sm:$0xff]
    %v3884 = vld [vmem:[#allocation34 + $0x48] sm:$0xff]
    %v3885 = vld [vmem:[#allocation34 + $0x50] sm:$0xff]
    %v3886 = vld [vmem:[#allocation34 + $0x58] sm:$0xff]
    %v3887 = vld [vmem:[#allocation34 + $0x60] sm:$0xff]
    %v3888 = vld [vmem:[#allocation34 + $0x68] sm:$0xff]
    %v3889 = vld [vmem:[#allocation34 + $0x70] sm:$0xff]
    %v3890 = vld [vmem:[#allocation34 + $0x78] sm:$0xff]
    %v3907 = vunpack.c.l.b16 %v3875
    %v3908 = vunpack.c.h.b16 %v3875
    %v3909 = vunpack.c.l.b16 %v3876
    %v3910 = vunpack.c.h.b16 %v3876
    %v3911 = vunpack.c.l.b16 %v3877
    %v3912 = vunpack.c.h.b16 %v3877
    %v3913 = vunpack.c.l.b16 %v3878
    %v3914 = vunpack.c.h.b16 %v3878
    %v3915 = vunpack.c.l.b16 %v3879
    %v3916 = vunpack.c.h.b16 %v3879
    %v3917 = vunpack.c.l.b16 %v3880
    %v3918 = vunpack.c.h.b16 %v3880
    %v3919 = vunpack.c.l.b16 %v3881
    %v3920 = vunpack.c.h.b16 %v3881
    %v3921 = vunpack.c.l.b16 %v3882
    %v3922 = vunpack.c.h.b16 %v3882
    %v3923 = vunpack.c.l.b16 %v3883
    %v3924 = vunpack.c.h.b16 %v3883
    %v3925 = vunpack.c.l.b16 %v3884
    %v3926 = vunpack.c.h.b16 %v3884
    %v3927 = vunpack.c.l.b16 %v3885
    %v3928 = vunpack.c.h.b16 %v3885
    %v3929 = vunpack.c.l.b16 %v3886
    %v3930 = vunpack.c.h.b16 %v3886
    %v3931 = vunpack.c.l.b16 %v3887
    %v3932 = vunpack.c.h.b16 %v3887
    %v3933 = vunpack.c.l.b16 %v3888
    %v3934 = vunpack.c.h.b16 %v3888
    %v3935 = vunpack.c.l.b16 %v3889
    %v3936 = vunpack.c.h.b16 %v3889
    %v3937 = vunpack.c.l.b16 %v3890
    %v3938 = vunpack.c.h.b16 %v3890
    %v3939 = vpack.c.b16 %v3909, %v3907
    %v3940 = vpack.c.b16 %v3910, %v3908
    %v3941 = vpack.c.b16 %v3913, %v3911
    %v3942 = vpack.c.b16 %v3914, %v3912
    %v3943 = vpack.c.b16 %v3917, %v3915
    %v3944 = vpack.c.b16 %v3918, %v3916
    %v3945 = vpack.c.b16 %v3921, %v3919
    %v3946 = vpack.c.b16 %v3922, %v3920
    %v3947 = vpack.c.b16 %v3925, %v3923
    %v3948 = vpack.c.b16 %v3926, %v3924
    %v3949 = vpack.c.b16 %v3929, %v3927
    %v3950 = vpack.c.b16 %v3930, %v3928
    %v3951 = vpack.c.b16 %v3933, %v3931
    %v3952 = vpack.c.b16 %v3934, %v3932
    %v3953 = vpack.c.b16 %v3937, %v3935
    %v3954 = vpack.c.b16 %v3938, %v3936
    %3971 = vmatprep.subr.bf16.mxu0 %v3940
    %3972 = vmatpush1.bf16.msra.mxu0 %v3939
    %3973 = vmatprep.subr.bf16.mxu0 %v3942
    %3974 = vmatpush1.bf16.msra.mxu0 %v3941
    %3975 = vmatprep.subr.bf16.mxu0 %v3944
    %3976 = vmatpush1.bf16.msra.mxu0 %v3943
    %3977 = vmatprep.subr.bf16.mxu0 %v3946
    %3978 = vmatpush1.bf16.msra.mxu0 %v3945
    %3979 = vmatprep.subr.bf16.mxu0 %v3948
    %3980 = vmatpush1.bf16.msra.mxu0 %v3947
    %3981 = vmatprep.subr.bf16.mxu0 %v3950
    %3982 = vmatpush1.bf16.msra.mxu0 %v3949
    %3983 = vmatprep.subr.bf16.mxu0 %v3952
    %3984 = vmatpush1.bf16.msra.mxu0 %v3951
    %3985 = vmatprep.subr.bf16.mxu0 %v3954
    %3986 = vmatpush1.bf16.msra.mxu0 %v3953
    %3987 = vmatprep.subr.bf16.mxu0 0
    %3988 = vmatpush1.bf16.msra.mxu0 0
    %3989 = vmatprep.subr.bf16.mxu0 0
    %3990 = vmatpush1.bf16.msra.mxu0 0
    %3991 = vmatprep.subr.bf16.mxu0 0
    %3992 = vmatpush1.bf16.msra.mxu0 0
    %3993 = vmatprep.subr.bf16.mxu0 0
    %3994 = vmatpush1.bf16.msra.mxu0 0
    %3995 = vmatprep.subr.bf16.mxu0 0
    %3996 = vmatpush1.bf16.msra.mxu0 0
    %3997 = vmatprep.subr.bf16.mxu0 0
    %3998 = vmatpush1.bf16.msra.mxu0 0
    %3999 = vmatprep.subr.bf16.mxu0 0
    %4000 = vmatpush1.bf16.msra.mxu0 0
    %4001 = vmatprep.subr.bf16.mxu0 0
    %4002 = vmatpush1.bf16.msra.mxu0 0
    %4003 = vmatprep.mubr.bf16.mxu0 0
    %4004 = vmatmul.mubr.bf16.gmra.mrb[0].mxu0 %v906
    %v4005 = vpop.f32.mrb[0].mxu0
    %v4006 = vadd.f32 0.0, %v4005
    %v4007 = vpop.f32.mrb[0].mxu0
    %v4008 = vadd.f32 0.0, %v4007
    %v4009 = vpop.f32.mrb[0].mxu0
    %v4010 = vpop.f32.mrb[0].mxu0
    %4011 = vdwg.mxu0
    %v4012 = vadd.f32 %v3873, %v4006
    %v4013 = vadd.f32 %v3874, %v4008
    %v4014 = vpack.c.bf16 %v3458, %v3458
    %v4015 = vld [vmem:[#allocation35] sm:$0xff]
    %v4016 = vld [vmem:[#allocation35 + $0x8] sm:$0xff]
    %v4017 = vld [vmem:[#allocation35 + $0x10] sm:$0xff]
    %v4018 = vld [vmem:[#allocation35 + $0x18] sm:$0xff]
    %v4019 = vld [vmem:[#allocation35 + $0x20] sm:$0xff]
    %v4020 = vld [vmem:[#allocation35 + $0x28] sm:$0xff]
    %v4021 = vld [vmem:[#allocation35 + $0x30] sm:$0xff]
    %v4022 = vld [vmem:[#allocation35 + $0x38] sm:$0xff]
    %v4023 = vld [vmem:[#allocation35 + $0x40] sm:$0xff]
    %v4024 = vld [vmem:[#allocation35 + $0x48] sm:$0xff]
    %v4025 = vld [vmem:[#allocation35 + $0x50] sm:$0xff]
    %v4026 = vld [vmem:[#allocation35 + $0x58] sm:$0xff]
    %v4027 = vld [vmem:[#allocation35 + $0x60] sm:$0xff]
    %v4028 = vld [vmem:[#allocation35 + $0x68] sm:$0xff]
    %v4029 = vld [vmem:[#allocation35 + $0x70] sm:$0xff]
    %v4030 = vld [vmem:[#allocation35 + $0x78] sm:$0xff]
    %v4047 = vunpack.c.l.b16 %v4015
    %v4048 = vunpack.c.h.b16 %v4015
    %v4049 = vunpack.c.l.b16 %v4016
    %v4050 = vunpack.c.h.b16 %v4016
    %v4051 = vunpack.c.l.b16 %v4017
    %v4052 = vunpack.c.h.b16 %v4017
    %v4053 = vunpack.c.l.b16 %v4018
    %v4054 = vunpack.c.h.b16 %v4018
    %v4055 = vunpack.c.l.b16 %v4019
    %v4056 = vunpack.c.h.b16 %v4019
    %v4057 = vunpack.c.l.b16 %v4020
    %v4058 = vunpack.c.h.b16 %v4020
    %v4059 = vunpack.c.l.b16 %v4021
    %v4060 = vunpack.c.h.b16 %v4021
    %v4061 = vunpack.c.l.b16 %v4022
    %v4062 = vunpack.c.h.b16 %v4022
    %v4063 = vunpack.c.l.b16 %v4023
    %v4064 = vunpack.c.h.b16 %v4023
    %v4065 = vunpack.c.l.b16 %v4024
    %v4066 = vunpack.c.h.b16 %v4024
    %v4067 = vunpack.c.l.b16 %v4025
    %v4068 = vunpack.c.h.b16 %v4025
    %v4069 = vunpack.c.l.b16 %v4026
    %v4070 = vunpack.c.h.b16 %v4026
    %v4071 = vunpack.c.l.b16 %v4027
    %v4072 = vunpack.c.h.b16 %v4027
    %v4073 = vunpack.c.l.b16 %v4028
    %v4074 = vunpack.c.h.b16 %v4028
    %v4075 = vunpack.c.l.b16 %v4029
    %v4076 = vunpack.c.h.b16 %v4029
    %v4077 = vunpack.c.l.b16 %v4030
    %v4078 = vunpack.c.h.b16 %v4030
    %v4079 = vpack.c.b16 %v4049, %v4047
    %v4080 = vpack.c.b16 %v4050, %v4048
    %v4081 = vpack.c.b16 %v4053, %v4051
    %v4082 = vpack.c.b16 %v4054, %v4052
    %v4083 = vpack.c.b16 %v4057, %v4055
    %v4084 = vpack.c.b16 %v4058, %v4056
    %v4085 = vpack.c.b16 %v4061, %v4059
    %v4086 = vpack.c.b16 %v4062, %v4060
    %v4087 = vpack.c.b16 %v4065, %v4063
    %v4088 = vpack.c.b16 %v4066, %v4064
    %v4089 = vpack.c.b16 %v4069, %v4067
    %v4090 = vpack.c.b16 %v4070, %v4068
    %v4091 = vpack.c.b16 %v4073, %v4071
    %v4092 = vpack.c.b16 %v4074, %v4072
    %v4093 = vpack.c.b16 %v4077, %v4075
    %v4094 = vpack.c.b16 %v4078, %v4076
    %4111 = vmatprep.subr.bf16.mxu0 %v4080
    %4112 = vmatpush1.bf16.msra.mxu0 %v4079
    %4113 = vmatprep.subr.bf16.mxu0 %v4082
    %4114 = vmatpush1.bf16.msra.mxu0 %v4081
    %4115 = vmatprep.subr.bf16.mxu0 %v4084
    %4116 = vmatpush1.bf16.msra.mxu0 %v4083
    %4117 = vmatprep.subr.bf16.mxu0 %v4086
    %4118 = vmatpush1.bf16.msra.mxu0 %v4085
    %4119 = vmatprep.subr.bf16.mxu0 %v4088
    %4120 = vmatpush1.bf16.msra.mxu0 %v4087
    %4121 = vmatprep.subr.bf16.mxu0 %v4090
    %4122 = vmatpush1.bf16.msra.mxu0 %v4089
    %4123 = vmatprep.subr.bf16.mxu0 %v4092
    %4124 = vmatpush1.bf16.msra.mxu0 %v4091
    %4125 = vmatprep.subr.bf16.mxu0 %v4094
    %4126 = vmatpush1.bf16.msra.mxu0 %v4093
    %4127 = vmatprep.subr.bf16.mxu0 0
    %4128 = vmatpush1.bf16.msra.mxu0 0
    %4129 = vmatprep.subr.bf16.mxu0 0
    %4130 = vmatpush1.bf16.msra.mxu0 0
    %4131 = vmatprep.subr.bf16.mxu0 0
    %4132 = vmatpush1.bf16.msra.mxu0 0
    %4133 = vmatprep.subr.bf16.mxu0 0
    %4134 = vmatpush1.bf16.msra.mxu0 0
    %4135 = vmatprep.subr.bf16.mxu0 0
    %4136 = vmatpush1.bf16.msra.mxu0 0
    %4137 = vmatprep.subr.bf16.mxu0 0
    %4138 = vmatpush1.bf16.msra.mxu0 0
    %4139 = vmatprep.subr.bf16.mxu0 0
    %4140 = vmatpush1.bf16.msra.mxu0 0
    %4141 = vmatprep.subr.bf16.mxu0 0
    %4142 = vmatpush1.bf16.msra.mxu0 0
    %4143 = vmatprep.mubr.bf16.mxu0 0
    %4144 = vmatmul.mubr.bf16.gmra.mrb[0].mxu0 %v4014
    %v4145 = vpop.f32.mrb[0].mxu0
    %v4146 = vadd.f32 0.0, %v4145
    %v4147 = vpop.f32.mrb[0].mxu0
    %v4148 = vadd.f32 0.0, %v4147
    %v4149 = vpop.f32.mrb[0].mxu0
    %v4150 = vpop.f32.mrb[0].mxu0
    %4151 = vdwg.mxu0
    %v4152 = vadd.f32 %v4012, %v4146
    %v4153 = vadd.f32 %v4013, %v4148
    %v4154 = vld [vmem:[%s55] sm:$0x3]
    %v4156 = vlaneseq
    %v4157 = vshrl.u32 %v4156, 7
    %v4158 = vsub.s32 0, %v4157
    %v4159 = vrot.slane %v4154, %v4158
    %v4160 = vlaneseq
    %v4161 = vshrl.u32 %v4160, 7
    %v4162 = vsub.s32 1, %v4161
    %v4163 = vrot.slane %v4154, %v4162
    %v4166 = vadd.f32 %v4152, %v4159
    %v4167 = vadd.f32 %v4153, %v4163
    %v4168 = vld [vmem:[#allocation7] sm:$0xff]
    %v4169 = vld [vmem:[%s53] sm:$0x3f]
    %v4170 = vld [vmem:[%s53 + $0x8] sm:$0x3f]
    %4172 = vset.pattern.permute.xlu0 0
    %4173 = vperm.xlu0 %4172, %v4168
    %v4174 = vpop.permute.xlu0 %4173
    %v4176 = vlaneseq
    %v4177 = vshrl.u32 %v4176, 7
    %v4178 = vsub.s32 0, %v4177
    %v4179 = vrot.slane %v4169, %v4178
    %v4180 = vlaneseq
    %v4181 = vshrl.u32 %v4180, 7
    %v4182 = vsub.s32 0, %v4181
    %v4183 = vrot.slane %v4170, %v4182
    %v4184 = vmul.f32 %v4174, %v4179
    %v4185 = vmul.f32 %v4174, %v4183
    %v4186 = vadd.f32 %v4166, %v4184
    %v4187 = vadd.f32 %v4167, %v4185
    %4188 = vset.pattern.permute.xlu0 1
    %4189 = vperm.xlu0 %4188, %v4168
    %v4190 = vpop.permute.xlu0 %4189
    %v4192 = vlaneseq
    %v4193 = vshrl.u32 %v4192, 7
    %v4194 = vsub.s32 1, %v4193
    %v4195 = vrot.slane %v4169, %v4194
    %v4196 = vlaneseq
    %v4197 = vshrl.u32 %v4196, 7
    %v4198 = vsub.s32 1, %v4197
    %v4199 = vrot.slane %v4170, %v4198
    %v4200 = vmul.f32 %v4190, %v4195
    %v4201 = vmul.f32 %v4190, %v4199
    %v4202 = vadd.f32 %v4186, %v4200
    %v4203 = vadd.f32 %v4187, %v4201
    %4204 = vset.pattern.permute.xlu0 2
    %4205 = vperm.xlu0 %4204, %v4168
    %v4206 = vpop.permute.xlu0 %4205
    %v4208 = vlaneseq
    %v4209 = vshrl.u32 %v4208, 7
    %v4210 = vsub.s32 2, %v4209
    %v4211 = vrot.slane %v4169, %v4210
    %v4212 = vlaneseq
    %v4213 = vshrl.u32 %v4212, 7
    %v4214 = vsub.s32 2, %v4213
    %v4215 = vrot.slane %v4170, %v4214
    %v4216 = vmul.f32 %v4206, %v4211
    %v4217 = vmul.f32 %v4206, %v4215
    %v4218 = vadd.f32 %v4202, %v4216
    %v4219 = vadd.f32 %v4203, %v4217
    %4220 = vset.pattern.permute.xlu0 3
    %4221 = vperm.xlu0 %4220, %v4168
    %v4222 = vpop.permute.xlu0 %4221
    %v4224 = vlaneseq
    %v4225 = vshrl.u32 %v4224, 7
    %v4226 = vsub.s32 3, %v4225
    %v4227 = vrot.slane %v4169, %v4226
    %v4228 = vlaneseq
    %v4229 = vshrl.u32 %v4228, 7
    %v4230 = vsub.s32 3, %v4229
    %v4231 = vrot.slane %v4170, %v4230
    %v4232 = vmul.f32 %v4222, %v4227
    %v4233 = vmul.f32 %v4222, %v4231
    %v4234 = vadd.f32 %v4218, %v4232
    %v4235 = vadd.f32 %v4219, %v4233
    %4236 = vset.pattern.permute.xlu0 4
    %4237 = vperm.xlu0 %4236, %v4168
    %v4238 = vpop.permute.xlu0 %4237
    %v4240 = vlaneseq
    %v4241 = vshrl.u32 %v4240, 7
    %v4242 = vsub.s32 4, %v4241
    %v4243 = vrot.slane %v4169, %v4242
    %v4244 = vlaneseq
    %v4245 = vshrl.u32 %v4244, 7
    %v4246 = vsub.s32 4, %v4245
    %v4247 = vrot.slane %v4170, %v4246
    %v4248 = vmul.f32 %v4238, %v4243
    %v4249 = vmul.f32 %v4238, %v4247
    %v4250 = vadd.f32 %v4234, %v4248
    %v4251 = vadd.f32 %v4235, %v4249
    %4252 = vset.pattern.permute.xlu0 5
    %4253 = vperm.xlu0 %4252, %v4168
    %v4254 = vpop.permute.xlu0 %4253
    %v4256 = vlaneseq
    %v4257 = vshrl.u32 %v4256, 7
    %v4258 = vsub.s32 5, %v4257
    %v4259 = vrot.slane %v4169, %v4258
    %v4260 = vlaneseq
    %v4261 = vshrl.u32 %v4260, 7
    %v4262 = vsub.s32 5, %v4261
    %v4263 = vrot.slane %v4170, %v4262
    %v4264 = vmul.f32 %v4254, %v4259
    %v4265 = vmul.f32 %v4254, %v4263
    %v4266 = vadd.f32 %v4250, %v4264
    %v4267 = vadd.f32 %v4251, %v4265
    %v4268 = vmax.f32 %v4266, 0.0
    %v4269 = vmax.f32 %v4267, 0.0
    %v4270 = vpack.c.bf16 %v4268, %v4268
    %v4271 = vpack.c.bf16 %v4269, %v4269
    %v4272 = vld [vmem:[#allocation37] sm:$0xff]
    %v4273 = vld [vmem:[#allocation37 + $0x8] sm:$0xff]
    %v4274 = vld [vmem:[#allocation37 + $0x10] sm:$0xff]
    %v4275 = vld [vmem:[#allocation37 + $0x18] sm:$0xff]
    %v4276 = vld [vmem:[#allocation37 + $0x20] sm:$0xff]
    %v4277 = vld [vmem:[#allocation37 + $0x28] sm:$0xff]
    %v4278 = vld [vmem:[#allocation37 + $0x30] sm:$0xff]
    %v4279 = vld [vmem:[#allocation37 + $0x38] sm:$0xff]
    %v4280 = vld [vmem:[#allocation37 + $0x40] sm:$0xff]
    %v4281 = vld [vmem:[#allocation37 + $0x48] sm:$0xff]
    %v4282 = vld [vmem:[#allocation37 + $0x50] sm:$0xff]
    %v4283 = vld [vmem:[#allocation37 + $0x58] sm:$0xff]
    %v4284 = vld [vmem:[#allocation37 + $0x60] sm:$0xff]
    %v4285 = vld [vmem:[#allocation37 + $0x68] sm:$0xff]
    %v4286 = vld [vmem:[#allocation37 + $0x70] sm:$0xff]
    %v4287 = vld [vmem:[#allocation37 + $0x78] sm:$0xff]
    %v4288 = vld [vmem:[#allocation37 + $0x80] sm:$0xff]
    %v4289 = vld [vmem:[#allocation37 + $0x88] sm:$0xff]
    %v4290 = vld [vmem:[#allocation37 + $0x90] sm:$0xff]
    %v4291 = vld [vmem:[#allocation37 + $0x98] sm:$0xff]
    %v4292 = vld [vmem:[#allocation37 + $0xa0] sm:$0xff]
    %v4293 = vld [vmem:[#allocation37 + $0xa8] sm:$0xff]
    %v4294 = vld [vmem:[#allocation37 + $0xb0] sm:$0xff]
    %v4295 = vld [vmem:[#allocation37 + $0xb8] sm:$0xff]
    %v4296 = vld [vmem:[#allocation37 + $0xc0] sm:$0xff]
    %v4297 = vld [vmem:[#allocation37 + $0xc8] sm:$0xff]
    %v4298 = vld [vmem:[#allocation37 + $0xd0] sm:$0xff]
    %v4299 = vld [vmem:[#allocation37 + $0xd8] sm:$0xff]
    %v4300 = vld [vmem:[#allocation37 + $0xe0] sm:$0xff]
    %v4301 = vld [vmem:[#allocation37 + $0xe8] sm:$0xff]
    %v4302 = vld [vmem:[#allocation37 + $0xf0] sm:$0xff]
    %v4303 = vld [vmem:[#allocation37 + $0xf8] sm:$0xff]
    %v4304 = vld [vmem:[%s59] sm:$0x3]
    %v4306 = vlaneseq
    %v4307 = vshrl.u32 %v4306, 7
    %v4308 = vsub.s32 0, %v4307
    %v4309 = vrot.slane %v4304, %v4308
    %v4310 = vlaneseq
    %v4311 = vshrl.u32 %v4310, 7
    %v4312 = vsub.s32 1, %v4311
    %v4313 = vrot.slane %v4304, %v4312
    %v4348 = vunpack.c.l.b16 %v4272
    %v4349 = vunpack.c.h.b16 %v4272
    %v4350 = vunpack.c.l.b16 %v4273
    %v4351 = vunpack.c.h.b16 %v4273
    %v4352 = vunpack.c.l.b16 %v4274
    %v4353 = vunpack.c.h.b16 %v4274
    %v4354 = vunpack.c.l.b16 %v4275
    %v4355 = vunpack.c.h.b16 %v4275
    %v4356 = vunpack.c.l.b16 %v4276
    %v4357 = vunpack.c.h.b16 %v4276
    %v4358 = vunpack.c.l.b16 %v4277
    %v4359 = vunpack.c.h.b16 %v4277
    %v4360 = vunpack.c.l.b16 %v4278
    %v4361 = vunpack.c.h.b16 %v4278
    %v4362 = vunpack.c.l.b16 %v4279
    %v4363 = vunpack.c.h.b16 %v4279
    %v4364 = vunpack.c.l.b16 %v4280
    %v4365 = vunpack.c.h.b16 %v4280
    %v4366 = vunpack.c.l.b16 %v4281
    %v4367 = vunpack.c.h.b16 %v4281
    %v4368 = vunpack.c.l.b16 %v4282
    %v4369 = vunpack.c.h.b16 %v4282
    %v4370 = vunpack.c.l.b16 %v4283
    %v4371 = vunpack.c.h.b16 %v4283
    %v4372 = vunpack.c.l.b16 %v4284
    %v4373 = vunpack.c.h.b16 %v4284
    %v4374 = vunpack.c.l.b16 %v4285
    %v4375 = vunpack.c.h.b16 %v4285
    %v4376 = vunpack.c.l.b16 %v4286
    %v4377 = vunpack.c.h.b16 %v4286
    %v4378 = vunpack.c.l.b16 %v4287
    %v4379 = vunpack.c.h.b16 %v4287
    %v4380 = vunpack.c.l.b16 %v4288
    %v4381 = vunpack.c.h.b16 %v4288
    %v4382 = vunpack.c.l.b16 %v4289
    %v4383 = vunpack.c.h.b16 %v4289
    %v4384 = vunpack.c.l.b16 %v4290
    %v4385 = vunpack.c.h.b16 %v4290
    %v4386 = vunpack.c.l.b16 %v4291
    %v4387 = vunpack.c.h.b16 %v4291
    %v4388 = vunpack.c.l.b16 %v4292
    %v4389 = vunpack.c.h.b16 %v4292
    %v4390 = vunpack.c.l.b16 %v4293
    %v4391 = vunpack.c.h.b16 %v4293
    %v4392 = vunpack.c.l.b16 %v4294
    %v4393 = vunpack.c.h.b16 %v4294
    %v4394 = vunpack.c.l.b16 %v4295
    %v4395 = vunpack.c.h.b16 %v4295
    %v4396 = vunpack.c.l.b16 %v4296
    %v4397 = vunpack.c.h.b16 %v4296
    %v4398 = vunpack.c.l.b16 %v4297
    %v4399 = vunpack.c.h.b16 %v4297
    %v4400 = vunpack.c.l.b16 %v4298
    %v4401 = vunpack.c.h.b16 %v4298
    %v4402 = vunpack.c.l.b16 %v4299
    %v4403 = vunpack.c.h.b16 %v4299
    %v4404 = vunpack.c.l.b16 %v4300
    %v4405 = vunpack.c.h.b16 %v4300
    %v4406 = vunpack.c.l.b16 %v4301
    %v4407 = vunpack.c.h.b16 %v4301
    %v4408 = vunpack.c.l.b16 %v4302
    %v4409 = vunpack.c.h.b16 %v4302
    %v4410 = vunpack.c.l.b16 %v4303
    %v4411 = vunpack.c.h.b16 %v4303
    %v4412 = vpack.c.b16 %v4350, %v4348
    %v4413 = vpack.c.b16 %v4351, %v4349
    %v4414 = vpack.c.b16 %v4354, %v4352
    %v4415 = vpack.c.b16 %v4355, %v4353
    %v4416 = vpack.c.b16 %v4358, %v4356
    %v4417 = vpack.c.b16 %v4359, %v4357
    %v4418 = vpack.c.b16 %v4362, %v4360
    %v4419 = vpack.c.b16 %v4363, %v4361
    %v4420 = vpack.c.b16 %v4366, %v4364
    %v4421 = vpack.c.b16 %v4367, %v4365
    %v4422 = vpack.c.b16 %v4370, %v4368
    %v4423 = vpack.c.b16 %v4371, %v4369
    %v4424 = vpack.c.b16 %v4374, %v4372
    %v4425 = vpack.c.b16 %v4375, %v4373
    %v4426 = vpack.c.b16 %v4378, %v4376
    %v4427 = vpack.c.b16 %v4379, %v4377
    %v4428 = vpack.c.b16 %v4382, %v4380
    %v4429 = vpack.c.b16 %v4383, %v4381
    %v4430 = vpack.c.b16 %v4386, %v4384
    %v4431 = vpack.c.b16 %v4387, %v4385
    %v4432 = vpack.c.b16 %v4390, %v4388
    %v4433 = vpack.c.b16 %v4391, %v4389
    %v4434 = vpack.c.b16 %v4394, %v4392
    %v4435 = vpack.c.b16 %v4395, %v4393
    %v4436 = vpack.c.b16 %v4398, %v4396
    %v4437 = vpack.c.b16 %v4399, %v4397
    %v4438 = vpack.c.b16 %v4402, %v4400
    %v4439 = vpack.c.b16 %v4403, %v4401
    %v4440 = vpack.c.b16 %v4406, %v4404
    %v4441 = vpack.c.b16 %v4407, %v4405
    %v4442 = vpack.c.b16 %v4410, %v4408
    %v4443 = vpack.c.b16 %v4411, %v4409
    %4476 = vmatprep.subr.bf16.mxu0 %v4413
    %4477 = vmatpush1.bf16.msra.mxu0 %v4412
    %4478 = vmatprep.subr.bf16.mxu0 %v4415
    %4479 = vmatpush1.bf16.msra.mxu0 %v4414
    %4480 = vmatprep.subr.bf16.mxu0 %v4417
    %4481 = vmatpush1.bf16.msra.mxu0 %v4416
    %4482 = vmatprep.subr.bf16.mxu0 %v4419
    %4483 = vmatpush1.bf16.msra.mxu0 %v4418
    %4484 = vmatprep.subr.bf16.mxu0 %v4421
    %4485 = vmatpush1.bf16.msra.mxu0 %v4420
    %4486 = vmatprep.subr.bf16.mxu0 %v4423
    %4487 = vmatpush1.bf16.msra.mxu0 %v4422
    %4488 = vmatprep.subr.bf16.mxu0 %v4425
    %4489 = vmatpush1.bf16.msra.mxu0 %v4424
    %4490 = vmatprep.subr.bf16.mxu0 %v4427
    %4491 = vmatpush1.bf16.msra.mxu0 %v4426
    %4492 = vmatprep.subr.bf16.mxu0 %v4429
    %4493 = vmatpush1.bf16.msra.mxu0 %v4428
    %4494 = vmatprep.subr.bf16.mxu0 %v4431
    %4495 = vmatpush1.bf16.msra.mxu0 %v4430
    %4496 = vmatprep.subr.bf16.mxu0 %v4433
    %4497 = vmatpush1.bf16.msra.mxu0 %v4432
    %4498 = vmatprep.subr.bf16.mxu0 %v4435
    %4499 = vmatpush1.bf16.msra.mxu0 %v4434
    %4500 = vmatprep.subr.bf16.mxu0 %v4437
    %4501 = vmatpush1.bf16.msra.mxu0 %v4436
    %4502 = vmatprep.subr.bf16.mxu0 %v4439
    %4503 = vmatpush1.bf16.msra.mxu0 %v4438
    %4504 = vmatprep.subr.bf16.mxu0 %v4441
    %4505 = vmatpush1.bf16.msra.mxu0 %v4440
    %4506 = vmatprep.subr.bf16.mxu0 %v4443
    %4507 = vmatpush1.bf16.msra.mxu0 %v4442
    %4508 = vmatprep.mubr.bf16.mxu0 %v4271
    %4509 = vmatmul.mubr.bf16.gmra.mrb[0].mxu0 %v4270
    %v4510 = vpop.f32.mrb[0].mxu0
    %v4511 = vadd.f32 %v4309, %v4510
    %v4512 = vpop.f32.mrb[0].mxu0
    %v4513 = vadd.f32 %v4313, %v4512
    %v4514 = vpop.f32.mrb[0].mxu0
    %v4515 = vpop.f32.mrb[0].mxu0
    %4516 = vdwg.mxu0
    %v4517 = vmax.f32 %v4511, 0.0
    %v4518 = vmax.f32 %v4513, 0.0
    %v4519 = vld [vmem:[%s61] sm:$0x3]
    %v4521 = vlaneseq
    %v4522 = vshrl.u32 %v4521, 7
    %v4523 = vsub.s32 0, %v4522
    %v4524 = vrot.slane %v4519, %v4523
    %v4525 = vlaneseq
    %v4526 = vshrl.u32 %v4525, 7
    %v4527 = vsub.s32 1, %v4526
    %v4528 = vrot.slane %v4519, %v4527
    %v4531 = vmul.f32 %v4517, %v4524
    %v4532 = vmul.f32 %v4518, %v4528
    %v4533 = vadd.f32 %v4531, %v4532
    %4534 = vadd.xlane.f32.xlu0 %v4533
    %v4535 = vpop.xlane.xlu0 %4534
    %v4536 = vld [vmem:[#allocation2] sm:$0x1]
    %v4538 = vlaneseq
    %v4539 = vshrl.u32 %v4538, 7
    %v4540 = vsub.s32 0, %v4539
    %v4541 = vrot.slane %v4536, %v4540
    %v4543 = vadd.f32 %v4535, %v4541
    %vm4544 = vcmask 7168
    %4545 = vst.msk [vmem:[%s65] sm:$0xff] %vm4544, %v4543
    // Predicated region
    $region222: #{tpu_custom_call.1} parent=1 // pred_check
      _
    $region223: #{tpu_custom_call.1} parent=1 // pred_check_branch
      %4547 = sbr.rel (0) target = $region225
    $region224: #{tpu_custom_call.1} parent=1 // pred_region
      _
    $region225: #{tpu_custom_call.1} parent=1 // pred_fallthru
      _
    // Predicated region
    $region226: #{tpu_custom_call.1} parent=1 // pred_check
      _
    $region227: #{tpu_custom_call.1} parent=1 // pred_check_branch
      %4549 = sbr.rel (0) target = $region229
    $region228: #{tpu_custom_call.1} parent=1 // pred_region
      _
    $region229: #{tpu_custom_call.1} parent=1 // pred_fallthru
      _
    %4550 = vsyncpa [#allocation4], 1
    %4551 = vsyncpa [#allocation6], 1
    %4552 = vsyncpa [#allocation9], 1
    %4553 = vsyncpa [#allocation12], 1
    %4554 = vsyncpa [#allocation15], 1
    %4555 = vsyncpa [#allocation18], 1
    %4556 = vsyncpa [#allocation21], 1
    %4557 = vsyncpa [#allocation24], 1
    %4558 = vsyncpa [#allocation27], 1
    %4559 = vsyncpa [#allocation30], 1
    %4560 = vsyncpa [#allocation33], 1
    %4561 = vsyncpa [#allocation36], 1

</llo_original>
